<compile_context>
chip_gen: v6e
topology: v6e:2x2x1
jax: 0.10.0
libtpu: 0.0.40
codegen_flags: <defaults>
</compile_context>

<pallas_src>
import functools
import math

import jax
import jax.numpy as jnp
from jax.experimental import pallas as pl
from jax.experimental.pallas import tpu as pltpu

# ------------ small BERT-for-sequence-classification config --------------------
VOCAB = 128
MAX_POS = 16
TYPE_VOCAB = 2
HIDDEN = 32
NUM_LAYERS = 2
NUM_HEADS = 4
HEAD_DIM = HIDDEN // NUM_HEADS
INTERMEDIATE = 64
NUM_LABELS = 5
LN_EPS = 1e-12
LOGITS_PAD = 128          # lane-dense output width; sliced to NUM_LABELS outside
NEG_BIG = 1e9             # finite additive-mask constant (avoids -inf -> NaN)


# ------------------------------ in-kernel helpers -------------------------------
def _ln(x, g, b):
    mean = jnp.mean(x, axis=-1, keepdims=True)
    var = jnp.mean(jnp.square(x - mean), axis=-1, keepdims=True)
    return (x - mean) * jax.lax.rsqrt(var + LN_EPS) * g + b


def _gelu(y):
    # TODO(synk): HF BERT default is exact erf-GELU; tanh approximation kept
    # because erf lowering is not guaranteed in Mosaic (~1e-3 deviation).
    c = math.sqrt(2.0 / math.pi)
    return 0.5 * y * (1.0 + jnp.tanh(c * (y + 0.044715 * y * y * y)))


# ------------------------------ fused forward kernel ----------------------------
def _bert_kernel(
    ids_ref, mask_ref,
    word_emb_ref, pos_emb_ref, type_emb_ref,
    emb_ln_g_ref, emb_ln_b_ref,
    qkv_w_ref, qkv_b_ref, ao_w_ref, ao_b_ref,
    attn_ln_g_ref, attn_ln_b_ref,
    i_w_ref, i_b_ref, o_w_ref, o_b_ref,
    out_ln_g_ref, out_ln_b_ref,
    pool_w_ref, pool_b_ref, cls_w_ref, cls_b_ref,
    logits_ref,
    ctx_vmem, x_vmem,
    *, B, S, num_heads, head_dim):
    M = B * S
    H = num_heads * head_dim
    D = head_dim

    # ---- fused embeddings (word + position + type) via one-hot matmuls ----
    ids = ids_ref[...]                                            # (M, 1) int32
    vocab_iota = jax.lax.broadcasted_iota(jnp.int32, (M, VOCAB), 1)
    word_oh = (ids == vocab_iota).astype(jnp.float32)             # (M, VOCAB)
    x = jnp.dot(word_oh, word_emb_ref[...], preferred_element_type=jnp.float32)

    # position of row m is (m mod S); built without integer mod via B comparisons
    row_iota = jax.lax.broadcasted_iota(jnp.int32, (M, S), 0)
    pos_iota = jax.lax.broadcasted_iota(jnp.int32, (M, S), 1)
    pos_eq = row_iota == pos_iota
    for b in range(1, B):
        pos_eq = jnp.logical_or(pos_eq, row_iota == pos_iota + b * S)
    pos_oh = pos_eq.astype(jnp.float32)                           # (M, S)
    x = x + jnp.dot(pos_oh, pos_emb_ref[0:S, :], preferred_element_type=jnp.float32)

    # TODO(synk): token_type_ids hard-coded to zeros (segment 0), as in the demo.
    x = x + type_emb_ref[0:1, :]
    x = _ln(x, emb_ln_g_ref[...], emb_ln_b_ref[...])              # (M, H) f32

    # ---- attention bias: block-diagonal batch mask + additive key mask ----
    r_iota = jax.lax.broadcasted_iota(jnp.int32, (M, M), 0)
    c_iota = jax.lax.broadcasted_iota(jnp.int32, (M, M), 1)

    def _in_batch(i, b):
        return jnp.logical_and(i >= b * S, i < (b + 1) * S)

    same_batch = jnp.logical_and(_in_batch(r_iota, 0), _in_batch(c_iota, 0))
    for b in range(1, B):
        same_batch = jnp.logical_or(
            same_batch, jnp.logical_and(_in_batch(r_iota, b), _in_batch(c_iota, b)))
    attn_bias = (jnp.where(same_batch, 0.0, -NEG_BIG)
                 + (mask_ref[...] - 1.0) * NEG_BIG)               # (M, M), finite

    # ---- encoder layers: static loop over resident VMEM weight stacks ----
    # 1/sqrt(head_dim) already folded into the Q third of qkv_w / qkv_b.
    for l in range(NUM_LAYERS):
        qkv = (jnp.dot(x.astype(jnp.bfloat16), qkv_w_ref[l],
                       preferred_element_type=jnp.float32) + qkv_b_ref[l])  # (M, 3H)
        for h in range(num_heads):
            qh = qkv[:, h * D:(h + 1) * D].astype(jnp.bfloat16)
            kh = qkv[:, H + h * D:H + (h + 1) * D].astype(jnp.bfloat16)
            vh = qkv[:, 2 * H + h * D:2 * H + (h + 1) * D].astype(jnp.bfloat16)
            s = jax.lax.dot_general(qh, kh, (((1,), (1,)), ((), ())),
                                    preferred_element_type=jnp.float32)     # (M, M)
            s = s + attn_bias
            s = s - jnp.max(s, axis=-1, keepdims=True)
            p = jnp.exp(s)
            p = p / jnp.sum(p, axis=-1, keepdims=True)            # exact softmax
            # write each head's context straight into its column slice (no concat)
            ctx_vmem[:, h * D:(h + 1) * D] = jnp.dot(
                p.astype(jnp.bfloat16), vh, preferred_element_type=jnp.float32)
        ctx = ctx_vmem[...]                                       # (M, H)

        attn_out = (jnp.dot(ctx.astype(jnp.bfloat16), ao_w_ref[l],
                            preferred_element_type=jnp.float32) + ao_b_ref[l])
        x = _ln(attn_out + x, attn_ln_g_ref[l], attn_ln_b_ref[l])

        inter = _gelu(jnp.dot(x.astype(jnp.bfloat16), i_w_ref[l],
                              preferred_element_type=jnp.float32) + i_b_ref[l])
        ffn = (jnp.dot(inter.astype(jnp.bfloat16), o_w_ref[l],
                       preferred_element_type=jnp.float32) + o_b_ref[l])
        x = _ln(ffn + x, out_ln_g_ref[l], out_ln_b_ref[l])

    # ---- pooler (CLS token) + classifier, lane-dense padded logits ----
    x_vmem[...] = x
    cls_tok = x_vmem[pl.ds(0, B, stride=S), :]                    # (B, H) strided gather
    pooled = jnp.tanh(jnp.dot(cls_tok.astype(jnp.bfloat16), pool_w_ref[...],
                              preferred_element_type=jnp.float32) + pool_b_ref[...])
    logits_ref[...] = (jnp.dot(pooled.astype(jnp.bfloat16), cls_w_ref[...],
                               preferred_element_type=jnp.float32)
                       + cls_b_ref[...]).astype(logits_ref.dtype)


def bert_pallas(ids_col, mask_flat, kp, *, B, S):
    M = B * S
    kern = functools.partial(_bert_kernel, B=B, S=S,
                             num_heads=NUM_HEADS, head_dim=HEAD_DIM)
    # No grid: single invocation, every input is one whole-array VMEM block.
    # TODO(synk): on v7x a second TensorCore could be engaged with a leading
    # "parallel" batch grid axis once B*S outgrows this toy size.
    logits_pad = pl.pallas_call(
        kern,
        out_shape=jax.ShapeDtypeStruct((B, LOGITS_PAD), jnp.float32),
        scratch_shapes=[pltpu.VMEM((M, HIDDEN), jnp.float32),   # per-layer ctx
                        pltpu.VMEM((M, HIDDEN), jnp.float32)],  # final x (CLS gather)
    )(ids_col, mask_flat,
      kp["word_emb"], kp["pos_emb"], kp["type_emb"],
      kp["emb_ln_g"], kp["emb_ln_b"],
      kp["qkv_w"], kp["qkv_b"], kp["ao_w"], kp["ao_b"],
      kp["attn_ln_g"], kp["attn_ln_b"],
      kp["i_w"], kp["i_b"], kp["o_w"], kp["o_b"],
      kp["out_ln_g"], kp["out_ln_b"],
      kp["pool_w"], kp["pool_b"], kp["cls_w_pad"], kp["cls_b_pad"])
    return logits_pad[:, :NUM_LABELS]


# ------------------------------ parameters --------------------------------------
def init_params(key):
    ks = iter(jax.random.split(key, 64))
    nrm = lambda shape: 0.02 * jax.random.normal(next(ks), shape, jnp.float32)
    zeros = lambda shape: jnp.zeros(shape, jnp.float32)
    ones = lambda shape: jnp.ones(shape, jnp.float32)
    L, H, I = NUM_LAYERS, HIDDEN, INTERMEDIATE
    return {
        "word_emb": nrm((VOCAB, H)),
        "pos_emb": nrm((MAX_POS, H)),
        "type_emb": nrm((TYPE_VOCAB, H)),
        "emb_ln_g": ones((1, H)), "emb_ln_b": zeros((1, H)),
        # per-layer weights stacked along a leading layer axis, QKV fused
        "qkv_w": nrm((L, H, 3 * H)), "qkv_b": zeros((L, 1, 3 * H)),
        "ao_w": nrm((L, H, H)), "ao_b": zeros((L, 1, H)),
        "attn_ln_g": ones((L, 1, H)), "attn_ln_b": zeros((L, 1, H)),
        "i_w": nrm((L, H, I)), "i_b": zeros((L, 1, I)),
        "o_w": nrm((L, I, H)), "o_b": zeros((L, 1, H)),
        "out_ln_g": ones((L, 1, H)), "out_ln_b": zeros((L, 1, H)),
        "pool_w": nrm((H, H)), "pool_b": zeros((1, H)),
        "cls_w": nrm((H, NUM_LABELS)), "cls_b": zeros((NUM_LABELS,)),
    }


def prepare_kernel_params(p):
    """One-time (outside the hot path) conversion to kernel-ready parameters:
    fold 1/sqrt(head_dim) into the Q weights/bias, pad the classifier to 128
    lanes, and cast streamed matmul weights to bf16 (LN/bias params stay f32)."""
    scale = 1.0 / math.sqrt(HEAD_DIM)
    qkv_w = p["qkv_w"].at[:, :, :HIDDEN].multiply(scale)
    qkv_b = p["qkv_b"].at[:, :, :HIDDEN].multiply(scale)
    cls_w_pad = jnp.zeros((HIDDEN, LOGITS_PAD), jnp.float32).at[:, :NUM_LABELS].set(p["cls_w"])
    cls_b_pad = jnp.zeros((1, LOGITS_PAD), jnp.float32).at[:, :NUM_LABELS].set(
        p["cls_b"].reshape(1, NUM_LABELS))
    bf = lambda a: a.astype(jnp.bfloat16)
    return {
        "word_emb": p["word_emb"], "pos_emb": p["pos_emb"], "type_emb": p["type_emb"],
        "emb_ln_g": p["emb_ln_g"], "emb_ln_b": p["emb_ln_b"],
        "qkv_w": bf(qkv_w), "qkv_b": qkv_b,
        "ao_w": bf(p["ao_w"]), "ao_b": p["ao_b"],
        "attn_ln_g": p["attn_ln_g"], "attn_ln_b": p["attn_ln_b"],
        "i_w": bf(p["i_w"]), "i_b": p["i_b"],
        "o_w": bf(p["o_w"]), "o_b": p["o_b"],
        "out_ln_g": p["out_ln_g"], "out_ln_b": p["out_ln_b"],
        "pool_w": bf(p["pool_w"]), "pool_b": p["pool_b"],
        "cls_w_pad": bf(cls_w_pad), "cls_b_pad": cls_b_pad,
    }


# ------------------------------ forward pass -------------------------------------
def bert_yelp_forward(kparams, input_ids, attention_mask, labels=None):
    """BertForSequenceClassification forward (eval mode: dropout = identity)."""
    B, S = input_ids.shape
    # only index-layout glue stays in JAX: (B,S) -> (M,1) ids / (1,M) mask
    ids_col = input_ids.reshape(B * S, 1).astype(jnp.int32)
    mask_flat = attention_mask.reshape(1, B * S).astype(jnp.float32)

    logits = bert_pallas(ids_col, mask_flat, kparams, B=B, S=S)

    if labels is None:
        return logits
    # cross-entropy loss head kept as plain-JAX glue (HF num_labels>1 path)
    logp = jax.nn.log_softmax(logits, axis=-1)
    loss = -jnp.mean(jnp.take_along_axis(logp, labels[:, None], axis=-1))
    return loss, logits


# ------------------------------ demo ---------------------------------------------
if __name__ == "__main__":
    key = jax.random.PRNGKey(0)
    pkey, ikey = jax.random.split(key)
    params = init_params(pkey)
    kparams = prepare_kernel_params(params)   # one-time prep, outside the hot path

    B, S = 2, 8
    input_ids = jax.random.randint(ikey, (B, S), 0, VOCAB, dtype=jnp.int32)
    attention_mask = jnp.array(
        [[1, 1, 1, 1, 1, 1, 1, 1],
         [1, 1, 1, 1, 1, 1, 0, 0]], dtype=jnp.int32)
    labels = jnp.array([3, 1], dtype=jnp.int32)

    fwd = jax.jit(lambda p, ids, m: bert_yelp_forward(p, ids, m))
    logits = fwd(kparams, input_ids, attention_mask)
    logits = jax.block_until_ready(logits)
    assert logits.shape == (B, NUM_LABELS)

    loss, logits2 = bert_yelp_forward(kparams, input_ids, attention_mask, labels)
    loss = jax.block_until_ready(loss)
    assert loss.shape == ()

    print("KERNEL_OK")
</pallas_src>

<mosaic_0001>
module attributes {stable_mosaic.version = 11 : i64} {
  func.func @_bert_kernel(%arg0: memref<16x1xi32, #tpu.memory_space<vmem>>, %arg1: memref<1x16xf32, #tpu.memory_space<vmem>>, %arg2: memref<128x32xf32, #tpu.memory_space<vmem>>, %arg3: memref<16x32xf32, #tpu.memory_space<vmem>>, %arg4: memref<2x32xf32, #tpu.memory_space<vmem>>, %arg5: memref<1x32xf32, #tpu.memory_space<vmem>>, %arg6: memref<1x32xf32, #tpu.memory_space<vmem>>, %arg7: memref<2x32x96xbf16, #tpu.memory_space<vmem>>, %arg8: memref<2x1x96xf32, #tpu.memory_space<vmem>>, %arg9: memref<2x32x32xbf16, #tpu.memory_space<vmem>>, %arg10: memref<2x1x32xf32, #tpu.memory_space<vmem>>, %arg11: memref<2x1x32xf32, #tpu.memory_space<vmem>>, %arg12: memref<2x1x32xf32, #tpu.memory_space<vmem>>, %arg13: memref<2x32x64xbf16, #tpu.memory_space<vmem>>, %arg14: memref<2x1x64xf32, #tpu.memory_space<vmem>>, %arg15: memref<2x64x32xbf16, #tpu.memory_space<vmem>>, %arg16: memref<2x1x32xf32, #tpu.memory_space<vmem>>, %arg17: memref<2x1x32xf32, #tpu.memory_space<vmem>>, %arg18: memref<2x1x32xf32, #tpu.memory_space<vmem>>, %arg19: memref<32x32xbf16, #tpu.memory_space<vmem>>, %arg20: memref<1x32xf32, #tpu.memory_space<vmem>>, %arg21: memref<32x128xbf16, #tpu.memory_space<vmem>>, %arg22: memref<1x128xf32, #tpu.memory_space<vmem>>, %arg23: memref<2x128xf32, #tpu.memory_space<vmem>>, %arg24: memref<16x32xf32, #tpu.memory_space<vmem>>, %arg25: memref<16x32xf32, #tpu.memory_space<vmem>>) attributes {dimension_semantics = [], scalar_prefetch = 0 : i64, scratch_operands = 2 : i64, tpu.core_type = #tpu.core_type<tc>} {
    %c0 = arith.constant 0 : index
    %c0_0 = arith.constant 0 : index
    %0 = vector.load %arg0[%c0, %c0_0] : memref<16x1xi32, #tpu.memory_space<vmem>>, vector<16x1xi32>
    %1 = tpu.iota {dimensions = array<i32: 1>} : vector<16x128xi32>
    %2 = vector.broadcast %0 : vector<16x1xi32> to vector<16x128xi32>
    %3 = arith.cmpi eq, %2, %1 : vector<16x128xi32>
    %4 = arith.extui %3 : vector<16x128xi1> to vector<16x128xi32>
    %5 = arith.sitofp %4 : vector<16x128xi32> to vector<16x128xf32>
    %c0_1 = arith.constant 0 : index
    %c0_2 = arith.constant 0 : index
    %6 = vector.load %arg2[%c0_1, %c0_2] : memref<128x32xf32, #tpu.memory_space<vmem>>, vector<128x32xf32>
    %cst = arith.constant dense<0.000000e+00> : vector<16x32xf32>
    %7 = tpu.matmul %5, %6, %cst {dimension_numbers = #tpu.dot_dimension_numbers<[1], [0], [0], [1], [0, 0, 1, 1], [], []>} : vector<16x128xf32>, vector<128x32xf32>, vector<16x32xf32> -> vector<16x32xf32>
    %8 = tpu.iota {dimensions = array<i32: 0>} : vector<16x8xi32>
    %9 = tpu.iota {dimensions = array<i32: 1>} : vector<16x8xi32>
    %10 = arith.cmpi eq, %8, %9 : vector<16x8xi32>
    %c8_i32 = arith.constant 8 : i32
    %11 = vector.broadcast %c8_i32 : i32 to vector<16x8xi32>
    %12 = arith.addi %9, %11 : vector<16x8xi32>
    %13 = arith.cmpi eq, %8, %12 : vector<16x8xi32>
    %14 = arith.ori %10, %13 : vector<16x8xi1>
    %15 = arith.extui %14 : vector<16x8xi1> to vector<16x8xi32>
    %16 = arith.sitofp %15 : vector<16x8xi32> to vector<16x8xf32>
    %c0_3 = arith.constant 0 : index
    %c0_4 = arith.constant 0 : index
    %17 = vector.load %arg3[%c0_3, %c0_4] : memref<16x32xf32, #tpu.memory_space<vmem>>, vector<8x32xf32>
    %cst_5 = arith.constant dense<0.000000e+00> : vector<16x32xf32>
    %18 = tpu.matmul %16, %17, %cst_5 {dimension_numbers = #tpu.dot_dimension_numbers<[1], [0], [0], [1], [0, 0, 1, 1], [], []>} : vector<16x8xf32>, vector<8x32xf32>, vector<16x32xf32> -> vector<16x32xf32>
    %19 = arith.addf %7, %18 : vector<16x32xf32>
    %c0_6 = arith.constant 0 : index
    %c0_7 = arith.constant 0 : index
    %20 = vector.load %arg4[%c0_6, %c0_7] : memref<2x32xf32, #tpu.memory_space<vmem>>, vector<1x32xf32>
    %21 = vector.broadcast %20 : vector<1x32xf32> to vector<16x32xf32>
    %22 = arith.addf %19, %21 : vector<16x32xf32>
    %c0_8 = arith.constant 0 : index
    %c0_9 = arith.constant 0 : index
    %23 = vector.load %arg5[%c0_8, %c0_9] : memref<1x32xf32, #tpu.memory_space<vmem>>, vector<1x32xf32>
    %c0_10 = arith.constant 0 : index
    %c0_11 = arith.constant 0 : index
    %24 = vector.load %arg6[%c0_10, %c0_11] : memref<1x32xf32, #tpu.memory_space<vmem>>, vector<1x32xf32>
    %cst_12 = arith.constant dense<0.000000e+00> : vector<16xf32>
    %25 = vector.multi_reduction <add>, %22, %cst_12 [1] : vector<16x32xf32> to vector<16xf32>
    %26 = vector.shape_cast %25 : vector<16xf32> to vector<16x1xf32>
    %cst_13 = arith.constant 3.200000e+01 : f32
    %27 = vector.broadcast %cst_13 : f32 to vector<16x1xf32>
    %28 = arith.divf %26, %27 : vector<16x1xf32>
    %29 = vector.broadcast %28 : vector<16x1xf32> to vector<16x32xf32>
    %30 = arith.subf %22, %29 : vector<16x32xf32>
    %31 = arith.mulf %30, %30 : vector<16x32xf32>
    %cst_14 = arith.constant dense<0.000000e+00> : vector<16xf32>
    %32 = vector.multi_reduction <add>, %31, %cst_14 [1] : vector<16x32xf32> to vector<16xf32>
    %33 = vector.shape_cast %32 : vector<16xf32> to vector<16x1xf32>
    %cst_15 = arith.constant 3.200000e+01 : f32
    %34 = vector.broadcast %cst_15 : f32 to vector<16x1xf32>
    %35 = arith.divf %33, %34 : vector<16x1xf32>
    %36 = vector.broadcast %28 : vector<16x1xf32> to vector<16x32xf32>
    %37 = arith.subf %22, %36 : vector<16x32xf32>
    %cst_16 = arith.constant 9.99999996E-13 : f32
    %38 = vector.broadcast %cst_16 : f32 to vector<16x1xf32>
    %39 = arith.addf %35, %38 : vector<16x1xf32>
    %40 = math.rsqrt %39 : vector<16x1xf32>
    %41 = vector.broadcast %40 : vector<16x1xf32> to vector<16x32xf32>
    %42 = arith.mulf %37, %41 : vector<16x32xf32>
    %43 = vector.broadcast %23 : vector<1x32xf32> to vector<16x32xf32>
    %44 = arith.mulf %42, %43 : vector<16x32xf32>
    %45 = vector.broadcast %24 : vector<1x32xf32> to vector<16x32xf32>
    %46 = arith.addf %44, %45 : vector<16x32xf32>
    %47 = tpu.iota {dimensions = array<i32: 0>} : vector<16x16xi32>
    %48 = tpu.iota {dimensions = array<i32: 1>} : vector<16x16xi32>
    %c0_i32 = arith.constant 0 : i32
    %49 = vector.broadcast %c0_i32 : i32 to vector<16x16xi32>
    %50 = arith.cmpi sge, %47, %49 : vector<16x16xi32>
    %c8_i32_17 = arith.constant 8 : i32
    %51 = vector.broadcast %c8_i32_17 : i32 to vector<16x16xi32>
    %52 = arith.cmpi slt, %47, %51 : vector<16x16xi32>
    %53 = arith.andi %50, %52 : vector<16x16xi1>
    %c0_i32_18 = arith.constant 0 : i32
    %54 = vector.broadcast %c0_i32_18 : i32 to vector<16x16xi32>
    %55 = arith.cmpi sge, %48, %54 : vector<16x16xi32>
    %c8_i32_19 = arith.constant 8 : i32
    %56 = vector.broadcast %c8_i32_19 : i32 to vector<16x16xi32>
    %57 = arith.cmpi slt, %48, %56 : vector<16x16xi32>
    %58 = arith.andi %55, %57 : vector<16x16xi1>
    %59 = arith.andi %53, %58 : vector<16x16xi1>
    %c8_i32_20 = arith.constant 8 : i32
    %60 = vector.broadcast %c8_i32_20 : i32 to vector<16x16xi32>
    %61 = arith.cmpi sge, %47, %60 : vector<16x16xi32>
    %c16_i32 = arith.constant 16 : i32
    %62 = vector.broadcast %c16_i32 : i32 to vector<16x16xi32>
    %63 = arith.cmpi slt, %47, %62 : vector<16x16xi32>
    %64 = arith.andi %61, %63 : vector<16x16xi1>
    %c8_i32_21 = arith.constant 8 : i32
    %65 = vector.broadcast %c8_i32_21 : i32 to vector<16x16xi32>
    %66 = arith.cmpi sge, %48, %65 : vector<16x16xi32>
    %c16_i32_22 = arith.constant 16 : i32
    %67 = vector.broadcast %c16_i32_22 : i32 to vector<16x16xi32>
    %68 = arith.cmpi slt, %48, %67 : vector<16x16xi32>
    %69 = arith.andi %66, %68 : vector<16x16xi1>
    %70 = arith.andi %64, %69 : vector<16x16xi1>
    %71 = arith.ori %59, %70 : vector<16x16xi1>
    %cst_23 = arith.constant 0.000000e+00 : f32
    %cst_24 = arith.constant -1.000000e+09 : f32
    %72 = vector.broadcast %cst_23 : f32 to vector<16x16xf32>
    %73 = vector.broadcast %cst_24 : f32 to vector<16x16xf32>
    %74 = arith.select %71, %72, %73 : vector<16x16xi1>, vector<16x16xf32>
    %c0_25 = arith.constant 0 : index
    %c0_26 = arith.constant 0 : index
    %75 = vector.load %arg1[%c0_25, %c0_26] : memref<1x16xf32, #tpu.memory_space<vmem>>, vector<1x16xf32>
    %cst_27 = arith.constant 1.000000e+00 : f32
    %76 = vector.broadcast %cst_27 : f32 to vector<1x16xf32>
    %77 = arith.subf %75, %76 : vector<1x16xf32>
    %cst_28 = arith.constant 1.000000e+09 : f32
    %78 = vector.broadcast %cst_28 : f32 to vector<1x16xf32>
    %79 = arith.mulf %77, %78 : vector<1x16xf32>
    %80 = vector.broadcast %79 : vector<1x16xf32> to vector<16x16xf32>
    %81 = arith.addf %74, %80 : vector<16x16xf32>
    %82 = arith.truncf %46 : vector<16x32xf32> to vector<16x32xbf16>
    %c0_29 = arith.constant 0 : index
    %c0_30 = arith.constant 0 : index
    %c0_31 = arith.constant 0 : index
    %83 = vector.load %arg7[%c0_29, %c0_30, %c0_31] : memref<2x32x96xbf16, #tpu.memory_space<vmem>>, vector<1x32x96xbf16>
    %84 = vector.shape_cast %83 : vector<1x32x96xbf16> to vector<32x96xbf16>
    %cst_32 = arith.constant dense<0.000000e+00> : vector<16x96xf32>
    %85 = tpu.matmul %82, %84, %cst_32 {dimension_numbers = #tpu.dot_dimension_numbers<[1], [0], [0], [1], [0, 0, 1, 1], [], []>} : vector<16x32xbf16>, vector<32x96xbf16>, vector<16x96xf32> -> vector<16x96xf32>
    %c0_33 = arith.constant 0 : index
    %c0_34 = arith.constant 0 : index
    %c0_35 = arith.constant 0 : index
    %86 = vector.load %arg8[%c0_33, %c0_34, %c0_35] : memref<2x1x96xf32, #tpu.memory_space<vmem>>, vector<1x1x96xf32>
    %87 = vector.shape_cast %86 : vector<1x1x96xf32> to vector<1x96xf32>
    %88 = vector.broadcast %87 : vector<1x96xf32> to vector<16x96xf32>
    %89 = arith.addf %85, %88 : vector<16x96xf32>
    %90 = vector.extract_strided_slice %89 {offsets = [0, 0], sizes = [16, 8], strides = [1, 1]} : vector<16x96xf32> to vector<16x8xf32>
    %91 = arith.truncf %90 : vector<16x8xf32> to vector<16x8xbf16>
    %92 = vector.extract_strided_slice %89 {offsets = [0, 32], sizes = [16, 8], strides = [1, 1]} : vector<16x96xf32> to vector<16x8xf32>
    %93 = arith.truncf %92 : vector<16x8xf32> to vector<16x8xbf16>
    %94 = vector.extract_strided_slice %89 {offsets = [0, 64], sizes = [16, 8], strides = [1, 1]} : vector<16x96xf32> to vector<16x8xf32>
    %95 = arith.truncf %94 : vector<16x8xf32> to vector<16x8xbf16>
    %cst_36 = arith.constant dense<0.000000e+00> : vector<16x16xf32>
    %96 = tpu.matmul %91, %93, %cst_36 {dimension_numbers = #tpu.dot_dimension_numbers<[1], [1], [0], [0], [0, 0, 1, 0], [], []>} : vector<16x8xbf16>, vector<16x8xbf16>, vector<16x16xf32> -> vector<16x16xf32>
    %97 = arith.addf %96, %81 : vector<16x16xf32>
    %cst_37 = arith.constant dense<0xFF800000> : vector<16xf32>
    %98 = vector.multi_reduction <maximumf>, %97, %cst_37 [1] : vector<16x16xf32> to vector<16xf32>
    %99 = vector.shape_cast %98 : vector<16xf32> to vector<16x1xf32>
    %100 = vector.broadcast %99 : vector<16x1xf32> to vector<16x16xf32>
    %101 = arith.subf %97, %100 : vector<16x16xf32>
    %102 = math.exp %101 : vector<16x16xf32>
    %cst_38 = arith.constant dense<0.000000e+00> : vector<16xf32>
    %103 = vector.multi_reduction <add>, %102, %cst_38 [1] : vector<16x16xf32> to vector<16xf32>
    %104 = vector.shape_cast %103 : vector<16xf32> to vector<16x1xf32>
    %105 = vector.broadcast %104 : vector<16x1xf32> to vector<16x16xf32>
    %106 = arith.divf %102, %105 : vector<16x16xf32>
    %107 = arith.truncf %106 : vector<16x16xf32> to vector<16x16xbf16>
    %cst_39 = arith.constant dense<0.000000e+00> : vector<16x8xf32>
    %108 = tpu.matmul %107, %95, %cst_39 {dimension_numbers = #tpu.dot_dimension_numbers<[1], [0], [0], [1], [0, 0, 1, 1], [], []>} : vector<16x16xbf16>, vector<16x8xbf16>, vector<16x8xf32> -> vector<16x8xf32>
    %c0_40 = arith.constant 0 : index
    %c0_41 = arith.constant 0 : index
    %109 = vector.load %arg24[%c0_40, %c0_41] : memref<16x32xf32, #tpu.memory_space<vmem>>, vector<16x8xf32>
    tpu.vector_store %arg24[%c0_40, %c0_41], %108 {strides = array<i32>} : memref<16x32xf32, #tpu.memory_space<vmem>>, vector<16x8xf32>,
    %110 = vector.extract_strided_slice %89 {offsets = [0, 8], sizes = [16, 8], strides = [1, 1]} : vector<16x96xf32> to vector<16x8xf32>
    %111 = arith.truncf %110 : vector<16x8xf32> to vector<16x8xbf16>
    %112 = vector.extract_strided_slice %89 {offsets = [0, 40], sizes = [16, 8], strides = [1, 1]} : vector<16x96xf32> to vector<16x8xf32>
    %113 = arith.truncf %112 : vector<16x8xf32> to vector<16x8xbf16>
    %114 = vector.extract_strided_slice %89 {offsets = [0, 72], sizes = [16, 8], strides = [1, 1]} : vector<16x96xf32> to vector<16x8xf32>
    %115 = arith.truncf %114 : vector<16x8xf32> to vector<16x8xbf16>
    %cst_42 = arith.constant dense<0.000000e+00> : vector<16x16xf32>
    %116 = tpu.matmul %111, %113, %cst_42 {dimension_numbers = #tpu.dot_dimension_numbers<[1], [1], [0], [0], [0, 0, 1, 0], [], []>} : vector<16x8xbf16>, vector<16x8xbf16>, vector<16x16xf32> -> vector<16x16xf32>
    %117 = arith.addf %116, %81 : vector<16x16xf32>
    %cst_43 = arith.constant dense<0xFF800000> : vector<16xf32>
    %118 = vector.multi_reduction <maximumf>, %117, %cst_43 [1] : vector<16x16xf32> to vector<16xf32>
    %119 = vector.shape_cast %118 : vector<16xf32> to vector<16x1xf32>
    %120 = vector.broadcast %119 : vector<16x1xf32> to vector<16x16xf32>
    %121 = arith.subf %117, %120 : vector<16x16xf32>
    %122 = math.exp %121 : vector<16x16xf32>
    %cst_44 = arith.constant dense<0.000000e+00> : vector<16xf32>
    %123 = vector.multi_reduction <add>, %122, %cst_44 [1] : vector<16x16xf32> to vector<16xf32>
    %124 = vector.shape_cast %123 : vector<16xf32> to vector<16x1xf32>
    %125 = vector.broadcast %124 : vector<16x1xf32> to vector<16x16xf32>
    %126 = arith.divf %122, %125 : vector<16x16xf32>
    %127 = arith.truncf %126 : vector<16x16xf32> to vector<16x16xbf16>
    %cst_45 = arith.constant dense<0.000000e+00> : vector<16x8xf32>
    %128 = tpu.matmul %127, %115, %cst_45 {dimension_numbers = #tpu.dot_dimension_numbers<[1], [0], [0], [1], [0, 0, 1, 1], [], []>} : vector<16x16xbf16>, vector<16x8xbf16>, vector<16x8xf32> -> vector<16x8xf32>
    %c0_46 = arith.constant 0 : index
    %c8 = arith.constant 8 : index
    %129 = vector.load %arg24[%c0_46, %c8] : memref<16x32xf32, #tpu.memory_space<vmem>>, vector<16x8xf32>
    tpu.vector_store %arg24[%c0_46, %c8], %128 {strides = array<i32>} : memref<16x32xf32, #tpu.memory_space<vmem>>, vector<16x8xf32>,
    %130 = vector.extract_strided_slice %89 {offsets = [0, 16], sizes = [16, 8], strides = [1, 1]} : vector<16x96xf32> to vector<16x8xf32>
    %131 = arith.truncf %130 : vector<16x8xf32> to vector<16x8xbf16>
    %132 = vector.extract_strided_slice %89 {offsets = [0, 48], sizes = [16, 8], strides = [1, 1]} : vector<16x96xf32> to vector<16x8xf32>
    %133 = arith.truncf %132 : vector<16x8xf32> to vector<16x8xbf16>
    %134 = vector.extract_strided_slice %89 {offsets = [0, 80], sizes = [16, 8], strides = [1, 1]} : vector<16x96xf32> to vector<16x8xf32>
    %135 = arith.truncf %134 : vector<16x8xf32> to vector<16x8xbf16>
    %cst_47 = arith.constant dense<0.000000e+00> : vector<16x16xf32>
    %136 = tpu.matmul %131, %133, %cst_47 {dimension_numbers = #tpu.dot_dimension_numbers<[1], [1], [0], [0], [0, 0, 1, 0], [], []>} : vector<16x8xbf16>, vector<16x8xbf16>, vector<16x16xf32> -> vector<16x16xf32>
    %137 = arith.addf %136, %81 : vector<16x16xf32>
    %cst_48 = arith.constant dense<0xFF800000> : vector<16xf32>
    %138 = vector.multi_reduction <maximumf>, %137, %cst_48 [1] : vector<16x16xf32> to vector<16xf32>
    %139 = vector.shape_cast %138 : vector<16xf32> to vector<16x1xf32>
    %140 = vector.broadcast %139 : vector<16x1xf32> to vector<16x16xf32>
    %141 = arith.subf %137, %140 : vector<16x16xf32>
    %142 = math.exp %141 : vector<16x16xf32>
    %cst_49 = arith.constant dense<0.000000e+00> : vector<16xf32>
    %143 = vector.multi_reduction <add>, %142, %cst_49 [1] : vector<16x16xf32> to vector<16xf32>
    %144 = vector.shape_cast %143 : vector<16xf32> to vector<16x1xf32>
    %145 = vector.broadcast %144 : vector<16x1xf32> to vector<16x16xf32>
    %146 = arith.divf %142, %145 : vector<16x16xf32>
    %147 = arith.truncf %146 : vector<16x16xf32> to vector<16x16xbf16>
    %cst_50 = arith.constant dense<0.000000e+00> : vector<16x8xf32>
    %148 = tpu.matmul %147, %135, %cst_50 {dimension_numbers = #tpu.dot_dimension_numbers<[1], [0], [0], [1], [0, 0, 1, 1], [], []>} : vector<16x16xbf16>, vector<16x8xbf16>, vector<16x8xf32> -> vector<16x8xf32>
    %c0_51 = arith.constant 0 : index
    %c16 = arith.constant 16 : index
    %149 = vector.load %arg24[%c0_51, %c16] : memref<16x32xf32, #tpu.memory_space<vmem>>, vector<16x8xf32>
    tpu.vector_store %arg24[%c0_51, %c16], %148 {strides = array<i32>} : memref<16x32xf32, #tpu.memory_space<vmem>>, vector<16x8xf32>,
    %150 = vector.extract_strided_slice %89 {offsets = [0, 24], sizes = [16, 8], strides = [1, 1]} : vector<16x96xf32> to vector<16x8xf32>
    %151 = arith.truncf %150 : vector<16x8xf32> to vector<16x8xbf16>
    %152 = vector.extract_strided_slice %89 {offsets = [0, 56], sizes = [16, 8], strides = [1, 1]} : vector<16x96xf32> to vector<16x8xf32>
    %153 = arith.truncf %152 : vector<16x8xf32> to vector<16x8xbf16>
    %154 = vector.extract_strided_slice %89 {offsets = [0, 88], sizes = [16, 8], strides = [1, 1]} : vector<16x96xf32> to vector<16x8xf32>
    %155 = arith.truncf %154 : vector<16x8xf32> to vector<16x8xbf16>
    %cst_52 = arith.constant dense<0.000000e+00> : vector<16x16xf32>
    %156 = tpu.matmul %151, %153, %cst_52 {dimension_numbers = #tpu.dot_dimension_numbers<[1], [1], [0], [0], [0, 0, 1, 0], [], []>} : vector<16x8xbf16>, vector<16x8xbf16>, vector<16x16xf32> -> vector<16x16xf32>
    %157 = arith.addf %156, %81 : vector<16x16xf32>
    %cst_53 = arith.constant dense<0xFF800000> : vector<16xf32>
    %158 = vector.multi_reduction <maximumf>, %157, %cst_53 [1] : vector<16x16xf32> to vector<16xf32>
    %159 = vector.shape_cast %158 : vector<16xf32> to vector<16x1xf32>
    %160 = vector.broadcast %159 : vector<16x1xf32> to vector<16x16xf32>
    %161 = arith.subf %157, %160 : vector<16x16xf32>
    %162 = math.exp %161 : vector<16x16xf32>
    %cst_54 = arith.constant dense<0.000000e+00> : vector<16xf32>
    %163 = vector.multi_reduction <add>, %162, %cst_54 [1] : vector<16x16xf32> to vector<16xf32>
    %164 = vector.shape_cast %163 : vector<16xf32> to vector<16x1xf32>
    %165 = vector.broadcast %164 : vector<16x1xf32> to vector<16x16xf32>
    %166 = arith.divf %162, %165 : vector<16x16xf32>
    %167 = arith.truncf %166 : vector<16x16xf32> to vector<16x16xbf16>
    %cst_55 = arith.constant dense<0.000000e+00> : vector<16x8xf32>
    %168 = tpu.matmul %167, %155, %cst_55 {dimension_numbers = #tpu.dot_dimension_numbers<[1], [0], [0], [1], [0, 0, 1, 1], [], []>} : vector<16x16xbf16>, vector<16x8xbf16>, vector<16x8xf32> -> vector<16x8xf32>
    %c0_56 = arith.constant 0 : index
    %c24 = arith.constant 24 : index
    %169 = vector.load %arg24[%c0_56, %c24] : memref<16x32xf32, #tpu.memory_space<vmem>>, vector<16x8xf32>
    tpu.vector_store %arg24[%c0_56, %c24], %168 {strides = array<i32>} : memref<16x32xf32, #tpu.memory_space<vmem>>, vector<16x8xf32>,
    %c0_57 = arith.constant 0 : index
    %c0_58 = arith.constant 0 : index
    %170 = vector.load %arg24[%c0_57, %c0_58] : memref<16x32xf32, #tpu.memory_space<vmem>>, vector<16x32xf32>
    %171 = arith.truncf %170 : vector<16x32xf32> to vector<16x32xbf16>
    %c0_59 = arith.constant 0 : index
    %c0_60 = arith.constant 0 : index
    %c0_61 = arith.constant 0 : index
    %172 = vector.load %arg9[%c0_59, %c0_60, %c0_61] : memref<2x32x32xbf16, #tpu.memory_space<vmem>>, vector<1x32x32xbf16>
    %173 = vector.shape_cast %172 : vector<1x32x32xbf16> to vector<32x32xbf16>
    %cst_62 = arith.constant dense<0.000000e+00> : vector<16x32xf32>
    %174 = tpu.matmul %171, %173, %cst_62 {dimension_numbers = #tpu.dot_dimension_numbers<[1], [0], [0], [1], [0, 0, 1, 1], [], []>} : vector<16x32xbf16>, vector<32x32xbf16>, vector<16x32xf32> -> vector<16x32xf32>
    %c0_63 = arith.constant 0 : index
    %c0_64 = arith.constant 0 : index
    %c0_65 = arith.constant 0 : index
    %175 = vector.load %arg10[%c0_63, %c0_64, %c0_65] : memref<2x1x32xf32, #tpu.memory_space<vmem>>, vector<1x1x32xf32>
    %176 = vector.shape_cast %175 : vector<1x1x32xf32> to vector<1x32xf32>
    %177 = vector.broadcast %176 : vector<1x32xf32> to vector<16x32xf32>
    %178 = arith.addf %174, %177 : vector<16x32xf32>
    %179 = arith.addf %178, %46 : vector<16x32xf32>
    %c0_66 = arith.constant 0 : index
    %c0_67 = arith.constant 0 : index
    %c0_68 = arith.constant 0 : index
    %180 = vector.load %arg11[%c0_66, %c0_67, %c0_68] : memref<2x1x32xf32, #tpu.memory_space<vmem>>, vector<1x1x32xf32>
    %181 = vector.shape_cast %180 : vector<1x1x32xf32> to vector<1x32xf32>
    %c0_69 = arith.constant 0 : index
    %c0_70 = arith.constant 0 : index
    %c0_71 = arith.constant 0 : index
    %182 = vector.load %arg12[%c0_69, %c0_70, %c0_71] : memref<2x1x32xf32, #tpu.memory_space<vmem>>, vector<1x1x32xf32>
    %183 = vector.shape_cast %182 : vector<1x1x32xf32> to vector<1x32xf32>
    %cst_72 = arith.constant dense<0.000000e+00> : vector<16xf32>
    %184 = vector.multi_reduction <add>, %179, %cst_72 [1] : vector<16x32xf32> to vector<16xf32>
    %185 = vector.shape_cast %184 : vector<16xf32> to vector<16x1xf32>
    %cst_73 = arith.constant 3.200000e+01 : f32
    %186 = vector.broadcast %cst_73 : f32 to vector<16x1xf32>
    %187 = arith.divf %185, %186 : vector<16x1xf32>
    %188 = vector.broadcast %187 : vector<16x1xf32> to vector<16x32xf32>
    %189 = arith.subf %179, %188 : vector<16x32xf32>
    %190 = arith.mulf %189, %189 : vector<16x32xf32>
    %cst_74 = arith.constant dense<0.000000e+00> : vector<16xf32>
    %191 = vector.multi_reduction <add>, %190, %cst_74 [1] : vector<16x32xf32> to vector<16xf32>
    %192 = vector.shape_cast %191 : vector<16xf32> to vector<16x1xf32>
    %cst_75 = arith.constant 3.200000e+01 : f32
    %193 = vector.broadcast %cst_75 : f32 to vector<16x1xf32>
    %194 = arith.divf %192, %193 : vector<16x1xf32>
    %195 = vector.broadcast %187 : vector<16x1xf32> to vector<16x32xf32>
    %196 = arith.subf %179, %195 : vector<16x32xf32>
    %cst_76 = arith.constant 9.99999996E-13 : f32
    %197 = vector.broadcast %cst_76 : f32 to vector<16x1xf32>
    %198 = arith.addf %194, %197 : vector<16x1xf32>
    %199 = math.rsqrt %198 : vector<16x1xf32>
    %200 = vector.broadcast %199 : vector<16x1xf32> to vector<16x32xf32>
    %201 = arith.mulf %196, %200 : vector<16x32xf32>
    %202 = vector.broadcast %181 : vector<1x32xf32> to vector<16x32xf32>
    %203 = arith.mulf %201, %202 : vector<16x32xf32>
    %204 = vector.broadcast %183 : vector<1x32xf32> to vector<16x32xf32>
    %205 = arith.addf %203, %204 : vector<16x32xf32>
    %206 = arith.truncf %205 : vector<16x32xf32> to vector<16x32xbf16>
    %c0_77 = arith.constant 0 : index
    %c0_78 = arith.constant 0 : index
    %c0_79 = arith.constant 0 : index
    %207 = vector.load %arg13[%c0_77, %c0_78, %c0_79] : memref<2x32x64xbf16, #tpu.memory_space<vmem>>, vector<1x32x64xbf16>
    %208 = vector.shape_cast %207 : vector<1x32x64xbf16> to vector<32x64xbf16>
    %cst_80 = arith.constant dense<0.000000e+00> : vector<16x64xf32>
    %209 = tpu.matmul %206, %208, %cst_80 {dimension_numbers = #tpu.dot_dimension_numbers<[1], [0], [0], [1], [0, 0, 1, 1], [], []>} : vector<16x32xbf16>, vector<32x64xbf16>, vector<16x64xf32> -> vector<16x64xf32>
    %c0_81 = arith.constant 0 : index
    %c0_82 = arith.constant 0 : index
    %c0_83 = arith.constant 0 : index
    %210 = vector.load %arg14[%c0_81, %c0_82, %c0_83] : memref<2x1x64xf32, #tpu.memory_space<vmem>>, vector<1x1x64xf32>
    %211 = vector.shape_cast %210 : vector<1x1x64xf32> to vector<1x64xf32>
    %212 = vector.broadcast %211 : vector<1x64xf32> to vector<16x64xf32>
    %213 = arith.addf %209, %212 : vector<16x64xf32>
    %cst_84 = arith.constant 5.000000e-01 : f32
    %214 = vector.broadcast %cst_84 : f32 to vector<16x64xf32>
    %215 = arith.mulf %214, %213 : vector<16x64xf32>
    %cst_85 = arith.constant 4.471500e-02 : f32
    %216 = vector.broadcast %cst_85 : f32 to vector<16x64xf32>
    %217 = arith.mulf %216, %213 : vector<16x64xf32>
    %218 = arith.mulf %217, %213 : vector<16x64xf32>
    %219 = arith.mulf %218, %213 : vector<16x64xf32>
    %220 = arith.addf %213, %219 : vector<16x64xf32>
    %cst_86 = arith.constant 0.797884583 : f32
    %221 = vector.broadcast %cst_86 : f32 to vector<16x64xf32>
    %222 = arith.mulf %221, %220 : vector<16x64xf32>
    %223 = math.tanh %222 : vector<16x64xf32>
    %cst_87 = arith.constant 1.000000e+00 : f32
    %224 = vector.broadcast %cst_87 : f32 to vector<16x64xf32>
    %225 = arith.addf %224, %223 : vector<16x64xf32>
    %226 = arith.mulf %215, %225 : vector<16x64xf32>
    %227 = arith.truncf %226 : vector<16x64xf32> to vector<16x64xbf16>
    %c0_88 = arith.constant 0 : index
    %c0_89 = arith.constant 0 : index
    %c0_90 = arith.constant 0 : index
    %228 = vector.load %arg15[%c0_88, %c0_89, %c0_90] : memref<2x64x32xbf16, #tpu.memory_space<vmem>>, vector<1x64x32xbf16>
    %229 = vector.shape_cast %228 : vector<1x64x32xbf16> to vector<64x32xbf16>
    %cst_91 = arith.constant dense<0.000000e+00> : vector<16x32xf32>
    %230 = tpu.matmul %227, %229, %cst_91 {dimension_numbers = #tpu.dot_dimension_numbers<[1], [0], [0], [1], [0, 0, 1, 1], [], []>} : vector<16x64xbf16>, vector<64x32xbf16>, vector<16x32xf32> -> vector<16x32xf32>
    %c0_92 = arith.constant 0 : index
    %c0_93 = arith.constant 0 : index
    %c0_94 = arith.constant 0 : index
    %231 = vector.load %arg16[%c0_92, %c0_93, %c0_94] : memref<2x1x32xf32, #tpu.memory_space<vmem>>, vector<1x1x32xf32>
    %232 = vector.shape_cast %231 : vector<1x1x32xf32> to vector<1x32xf32>
    %233 = vector.broadcast %232 : vector<1x32xf32> to vector<16x32xf32>
    %234 = arith.addf %230, %233 : vector<16x32xf32>
    %235 = arith.addf %234, %205 : vector<16x32xf32>
    %c0_95 = arith.constant 0 : index
    %c0_96 = arith.constant 0 : index
    %c0_97 = arith.constant 0 : index
    %236 = vector.load %arg17[%c0_95, %c0_96, %c0_97] : memref<2x1x32xf32, #tpu.memory_space<vmem>>, vector<1x1x32xf32>
    %237 = vector.shape_cast %236 : vector<1x1x32xf32> to vector<1x32xf32>
    %c0_98 = arith.constant 0 : index
    %c0_99 = arith.constant 0 : index
    %c0_100 = arith.constant 0 : index
    %238 = vector.load %arg18[%c0_98, %c0_99, %c0_100] : memref<2x1x32xf32, #tpu.memory_space<vmem>>, vector<1x1x32xf32>
    %239 = vector.shape_cast %238 : vector<1x1x32xf32> to vector<1x32xf32>
    %cst_101 = arith.constant dense<0.000000e+00> : vector<16xf32>
    %240 = vector.multi_reduction <add>, %235, %cst_101 [1] : vector<16x32xf32> to vector<16xf32>
    %241 = vector.shape_cast %240 : vector<16xf32> to vector<16x1xf32>
    %cst_102 = arith.constant 3.200000e+01 : f32
    %242 = vector.broadcast %cst_102 : f32 to vector<16x1xf32>
    %243 = arith.divf %241, %242 : vector<16x1xf32>
    %244 = vector.broadcast %243 : vector<16x1xf32> to vector<16x32xf32>
    %245 = arith.subf %235, %244 : vector<16x32xf32>
    %246 = arith.mulf %245, %245 : vector<16x32xf32>
    %cst_103 = arith.constant dense<0.000000e+00> : vector<16xf32>
    %247 = vector.multi_reduction <add>, %246, %cst_103 [1] : vector<16x32xf32> to vector<16xf32>
    %248 = vector.shape_cast %247 : vector<16xf32> to vector<16x1xf32>
    %cst_104 = arith.constant 3.200000e+01 : f32
    %249 = vector.broadcast %cst_104 : f32 to vector<16x1xf32>
    %250 = arith.divf %248, %249 : vector<16x1xf32>
    %251 = vector.broadcast %243 : vector<16x1xf32> to vector<16x32xf32>
    %252 = arith.subf %235, %251 : vector<16x32xf32>
    %cst_105 = arith.constant 9.99999996E-13 : f32
    %253 = vector.broadcast %cst_105 : f32 to vector<16x1xf32>
    %254 = arith.addf %250, %253 : vector<16x1xf32>
    %255 = math.rsqrt %254 : vector<16x1xf32>
    %256 = vector.broadcast %255 : vector<16x1xf32> to vector<16x32xf32>
    %257 = arith.mulf %252, %256 : vector<16x32xf32>
    %258 = vector.broadcast %237 : vector<1x32xf32> to vector<16x32xf32>
    %259 = arith.mulf %257, %258 : vector<16x32xf32>
    %260 = vector.broadcast %239 : vector<1x32xf32> to vector<16x32xf32>
    %261 = arith.addf %259, %260 : vector<16x32xf32>
    %262 = arith.truncf %261 : vector<16x32xf32> to vector<16x32xbf16>
    %c1 = arith.constant 1 : index
    %c0_106 = arith.constant 0 : index
    %c0_107 = arith.constant 0 : index
    %263 = vector.load %arg7[%c1, %c0_106, %c0_107] : memref<2x32x96xbf16, #tpu.memory_space<vmem>>, vector<1x32x96xbf16>
    %264 = vector.shape_cast %263 : vector<1x32x96xbf16> to vector<32x96xbf16>
    %cst_108 = arith.constant dense<0.000000e+00> : vector<16x96xf32>
    %265 = tpu.matmul %262, %264, %cst_108 {dimension_numbers = #tpu.dot_dimension_numbers<[1], [0], [0], [1], [0, 0, 1, 1], [], []>} : vector<16x32xbf16>, vector<32x96xbf16>, vector<16x96xf32> -> vector<16x96xf32>
    %c1_109 = arith.constant 1 : index
    %c0_110 = arith.constant 0 : index
    %c0_111 = arith.constant 0 : index
    %266 = vector.load %arg8[%c1_109, %c0_110, %c0_111] : memref<2x1x96xf32, #tpu.memory_space<vmem>>, vector<1x1x96xf32>
    %267 = vector.shape_cast %266 : vector<1x1x96xf32> to vector<1x96xf32>
    %268 = vector.broadcast %267 : vector<1x96xf32> to vector<16x96xf32>
    %269 = arith.addf %265, %268 : vector<16x96xf32>
    %270 = vector.extract_strided_slice %269 {offsets = [0, 0], sizes = [16, 8], strides = [1, 1]} : vector<16x96xf32> to vector<16x8xf32>
    %271 = arith.truncf %270 : vector<16x8xf32> to vector<16x8xbf16>
    %272 = vector.extract_strided_slice %269 {offsets = [0, 32], sizes = [16, 8], strides = [1, 1]} : vector<16x96xf32> to vector<16x8xf32>
    %273 = arith.truncf %272 : vector<16x8xf32> to vector<16x8xbf16>
    %274 = vector.extract_strided_slice %269 {offsets = [0, 64], sizes = [16, 8], strides = [1, 1]} : vector<16x96xf32> to vector<16x8xf32>
    %275 = arith.truncf %274 : vector<16x8xf32> to vector<16x8xbf16>
    %cst_112 = arith.constant dense<0.000000e+00> : vector<16x16xf32>
    %276 = tpu.matmul %271, %273, %cst_112 {dimension_numbers = #tpu.dot_dimension_numbers<[1], [1], [0], [0], [0, 0, 1, 0], [], []>} : vector<16x8xbf16>, vector<16x8xbf16>, vector<16x16xf32> -> vector<16x16xf32>
    %277 = arith.addf %276, %81 : vector<16x16xf32>
    %cst_113 = arith.constant dense<0xFF800000> : vector<16xf32>
    %278 = vector.multi_reduction <maximumf>, %277, %cst_113 [1] : vector<16x16xf32> to vector<16xf32>
    %279 = vector.shape_cast %278 : vector<16xf32> to vector<16x1xf32>
    %280 = vector.broadcast %279 : vector<16x1xf32> to vector<16x16xf32>
    %281 = arith.subf %277, %280 : vector<16x16xf32>
    %282 = math.exp %281 : vector<16x16xf32>
    %cst_114 = arith.constant dense<0.000000e+00> : vector<16xf32>
    %283 = vector.multi_reduction <add>, %282, %cst_114 [1] : vector<16x16xf32> to vector<16xf32>
    %284 = vector.shape_cast %283 : vector<16xf32> to vector<16x1xf32>
    %285 = vector.broadcast %284 : vector<16x1xf32> to vector<16x16xf32>
    %286 = arith.divf %282, %285 : vector<16x16xf32>
    %287 = arith.truncf %286 : vector<16x16xf32> to vector<16x16xbf16>
    %cst_115 = arith.constant dense<0.000000e+00> : vector<16x8xf32>
    %288 = tpu.matmul %287, %275, %cst_115 {dimension_numbers = #tpu.dot_dimension_numbers<[1], [0], [0], [1], [0, 0, 1, 1], [], []>} : vector<16x16xbf16>, vector<16x8xbf16>, vector<16x8xf32> -> vector<16x8xf32>
    %c0_116 = arith.constant 0 : index
    %c0_117 = arith.constant 0 : index
    %289 = vector.load %arg24[%c0_116, %c0_117] : memref<16x32xf32, #tpu.memory_space<vmem>>, vector<16x8xf32>
    tpu.vector_store %arg24[%c0_116, %c0_117], %288 {strides = array<i32>} : memref<16x32xf32, #tpu.memory_space<vmem>>, vector<16x8xf32>,
    %290 = vector.extract_strided_slice %269 {offsets = [0, 8], sizes = [16, 8], strides = [1, 1]} : vector<16x96xf32> to vector<16x8xf32>
    %291 = arith.truncf %290 : vector<16x8xf32> to vector<16x8xbf16>
    %292 = vector.extract_strided_slice %269 {offsets = [0, 40], sizes = [16, 8], strides = [1, 1]} : vector<16x96xf32> to vector<16x8xf32>
    %293 = arith.truncf %292 : vector<16x8xf32> to vector<16x8xbf16>
    %294 = vector.extract_strided_slice %269 {offsets = [0, 72], sizes = [16, 8], strides = [1, 1]} : vector<16x96xf32> to vector<16x8xf32>
    %295 = arith.truncf %294 : vector<16x8xf32> to vector<16x8xbf16>
    %cst_118 = arith.constant dense<0.000000e+00> : vector<16x16xf32>
    %296 = tpu.matmul %291, %293, %cst_118 {dimension_numbers = #tpu.dot_dimension_numbers<[1], [1], [0], [0], [0, 0, 1, 0], [], []>} : vector<16x8xbf16>, vector<16x8xbf16>, vector<16x16xf32> -> vector<16x16xf32>
    %297 = arith.addf %296, %81 : vector<16x16xf32>
    %cst_119 = arith.constant dense<0xFF800000> : vector<16xf32>
    %298 = vector.multi_reduction <maximumf>, %297, %cst_119 [1] : vector<16x16xf32> to vector<16xf32>
    %299 = vector.shape_cast %298 : vector<16xf32> to vector<16x1xf32>
    %300 = vector.broadcast %299 : vector<16x1xf32> to vector<16x16xf32>
    %301 = arith.subf %297, %300 : vector<16x16xf32>
    %302 = math.exp %301 : vector<16x16xf32>
    %cst_120 = arith.constant dense<0.000000e+00> : vector<16xf32>
    %303 = vector.multi_reduction <add>, %302, %cst_120 [1] : vector<16x16xf32> to vector<16xf32>
    %304 = vector.shape_cast %303 : vector<16xf32> to vector<16x1xf32>
    %305 = vector.broadcast %304 : vector<16x1xf32> to vector<16x16xf32>
    %306 = arith.divf %302, %305 : vector<16x16xf32>
    %307 = arith.truncf %306 : vector<16x16xf32> to vector<16x16xbf16>
    %cst_121 = arith.constant dense<0.000000e+00> : vector<16x8xf32>
    %308 = tpu.matmul %307, %295, %cst_121 {dimension_numbers = #tpu.dot_dimension_numbers<[1], [0], [0], [1], [0, 0, 1, 1], [], []>} : vector<16x16xbf16>, vector<16x8xbf16>, vector<16x8xf32> -> vector<16x8xf32>
    %c0_122 = arith.constant 0 : index
    %c8_123 = arith.constant 8 : index
    %309 = vector.load %arg24[%c0_122, %c8_123] : memref<16x32xf32, #tpu.memory_space<vmem>>, vector<16x8xf32>
    tpu.vector_store %arg24[%c0_122, %c8_123], %308 {strides = array<i32>} : memref<16x32xf32, #tpu.memory_space<vmem>>, vector<16x8xf32>,
    %310 = vector.extract_strided_slice %269 {offsets = [0, 16], sizes = [16, 8], strides = [1, 1]} : vector<16x96xf32> to vector<16x8xf32>
    %311 = arith.truncf %310 : vector<16x8xf32> to vector<16x8xbf16>
    %312 = vector.extract_strided_slice %269 {offsets = [0, 48], sizes = [16, 8], strides = [1, 1]} : vector<16x96xf32> to vector<16x8xf32>
    %313 = arith.truncf %312 : vector<16x8xf32> to vector<16x8xbf16>
    %314 = vector.extract_strided_slice %269 {offsets = [0, 80], sizes = [16, 8], strides = [1, 1]} : vector<16x96xf32> to vector<16x8xf32>
    %315 = arith.truncf %314 : vector<16x8xf32> to vector<16x8xbf16>
    %cst_124 = arith.constant dense<0.000000e+00> : vector<16x16xf32>
    %316 = tpu.matmul %311, %313, %cst_124 {dimension_numbers = #tpu.dot_dimension_numbers<[1], [1], [0], [0], [0, 0, 1, 0], [], []>} : vector<16x8xbf16>, vector<16x8xbf16>, vector<16x16xf32> -> vector<16x16xf32>
    %317 = arith.addf %316, %81 : vector<16x16xf32>
    %cst_125 = arith.constant dense<0xFF800000> : vector<16xf32>
    %318 = vector.multi_reduction <maximumf>, %317, %cst_125 [1] : vector<16x16xf32> to vector<16xf32>
    %319 = vector.shape_cast %318 : vector<16xf32> to vector<16x1xf32>
    %320 = vector.broadcast %319 : vector<16x1xf32> to vector<16x16xf32>
    %321 = arith.subf %317, %320 : vector<16x16xf32>
    %322 = math.exp %321 : vector<16x16xf32>
    %cst_126 = arith.constant dense<0.000000e+00> : vector<16xf32>
    %323 = vector.multi_reduction <add>, %322, %cst_126 [1] : vector<16x16xf32> to vector<16xf32>
    %324 = vector.shape_cast %323 : vector<16xf32> to vector<16x1xf32>
    %325 = vector.broadcast %324 : vector<16x1xf32> to vector<16x16xf32>
    %326 = arith.divf %322, %325 : vector<16x16xf32>
    %327 = arith.truncf %326 : vector<16x16xf32> to vector<16x16xbf16>
    %cst_127 = arith.constant dense<0.000000e+00> : vector<16x8xf32>
    %328 = tpu.matmul %327, %315, %cst_127 {dimension_numbers = #tpu.dot_dimension_numbers<[1], [0], [0], [1], [0, 0, 1, 1], [], []>} : vector<16x16xbf16>, vector<16x8xbf16>, vector<16x8xf32> -> vector<16x8xf32>
    %c0_128 = arith.constant 0 : index
    %c16_129 = arith.constant 16 : index
    %329 = vector.load %arg24[%c0_128, %c16_129] : memref<16x32xf32, #tpu.memory_space<vmem>>, vector<16x8xf32>
    tpu.vector_store %arg24[%c0_128, %c16_129], %328 {strides = array<i32>} : memref<16x32xf32, #tpu.memory_space<vmem>>, vector<16x8xf32>,
    %330 = vector.extract_strided_slice %269 {offsets = [0, 24], sizes = [16, 8], strides = [1, 1]} : vector<16x96xf32> to vector<16x8xf32>
    %331 = arith.truncf %330 : vector<16x8xf32> to vector<16x8xbf16>
    %332 = vector.extract_strided_slice %269 {offsets = [0, 56], sizes = [16, 8], strides = [1, 1]} : vector<16x96xf32> to vector<16x8xf32>
    %333 = arith.truncf %332 : vector<16x8xf32> to vector<16x8xbf16>
    %334 = vector.extract_strided_slice %269 {offsets = [0, 88], sizes = [16, 8], strides = [1, 1]} : vector<16x96xf32> to vector<16x8xf32>
    %335 = arith.truncf %334 : vector<16x8xf32> to vector<16x8xbf16>
    %cst_130 = arith.constant dense<0.000000e+00> : vector<16x16xf32>
    %336 = tpu.matmul %331, %333, %cst_130 {dimension_numbers = #tpu.dot_dimension_numbers<[1], [1], [0], [0], [0, 0, 1, 0], [], []>} : vector<16x8xbf16>, vector<16x8xbf16>, vector<16x16xf32> -> vector<16x16xf32>
    %337 = arith.addf %336, %81 : vector<16x16xf32>
    %cst_131 = arith.constant dense<0xFF800000> : vector<16xf32>
    %338 = vector.multi_reduction <maximumf>, %337, %cst_131 [1] : vector<16x16xf32> to vector<16xf32>
    %339 = vector.shape_cast %338 : vector<16xf32> to vector<16x1xf32>
    %340 = vector.broadcast %339 : vector<16x1xf32> to vector<16x16xf32>
    %341 = arith.subf %337, %340 : vector<16x16xf32>
    %342 = math.exp %341 : vector<16x16xf32>
    %cst_132 = arith.constant dense<0.000000e+00> : vector<16xf32>
    %343 = vector.multi_reduction <add>, %342, %cst_132 [1] : vector<16x16xf32> to vector<16xf32>
    %344 = vector.shape_cast %343 : vector<16xf32> to vector<16x1xf32>
    %345 = vector.broadcast %344 : vector<16x1xf32> to vector<16x16xf32>
    %346 = arith.divf %342, %345 : vector<16x16xf32>
    %347 = arith.truncf %346 : vector<16x16xf32> to vector<16x16xbf16>
    %cst_133 = arith.constant dense<0.000000e+00> : vector<16x8xf32>
    %348 = tpu.matmul %347, %335, %cst_133 {dimension_numbers = #tpu.dot_dimension_numbers<[1], [0], [0], [1], [0, 0, 1, 1], [], []>} : vector<16x16xbf16>, vector<16x8xbf16>, vector<16x8xf32> -> vector<16x8xf32>
    %c0_134 = arith.constant 0 : index
    %c24_135 = arith.constant 24 : index
    %349 = vector.load %arg24[%c0_134, %c24_135] : memref<16x32xf32, #tpu.memory_space<vmem>>, vector<16x8xf32>
    tpu.vector_store %arg24[%c0_134, %c24_135], %348 {strides = array<i32>} : memref<16x32xf32, #tpu.memory_space<vmem>>, vector<16x8xf32>,
    %c0_136 = arith.constant 0 : index
    %c0_137 = arith.constant 0 : index
    %350 = vector.load %arg24[%c0_136, %c0_137] : memref<16x32xf32, #tpu.memory_space<vmem>>, vector<16x32xf32>
    %351 = arith.truncf %350 : vector<16x32xf32> to vector<16x32xbf16>
    %c1_138 = arith.constant 1 : index
    %c0_139 = arith.constant 0 : index
    %c0_140 = arith.constant 0 : index
    %352 = vector.load %arg9[%c1_138, %c0_139, %c0_140] : memref<2x32x32xbf16, #tpu.memory_space<vmem>>, vector<1x32x32xbf16>
    %353 = vector.shape_cast %352 : vector<1x32x32xbf16> to vector<32x32xbf16>
    %cst_141 = arith.constant dense<0.000000e+00> : vector<16x32xf32>
    %354 = tpu.matmul %351, %353, %cst_141 {dimension_numbers = #tpu.dot_dimension_numbers<[1], [0], [0], [1], [0, 0, 1, 1], [], []>} : vector<16x32xbf16>, vector<32x32xbf16>, vector<16x32xf32> -> vector<16x32xf32>
    %c1_142 = arith.constant 1 : index
    %c0_143 = arith.constant 0 : index
    %c0_144 = arith.constant 0 : index
    %355 = vector.load %arg10[%c1_142, %c0_143, %c0_144] : memref<2x1x32xf32, #tpu.memory_space<vmem>>, vector<1x1x32xf32>
    %356 = vector.shape_cast %355 : vector<1x1x32xf32> to vector<1x32xf32>
    %357 = vector.broadcast %356 : vector<1x32xf32> to vector<16x32xf32>
    %358 = arith.addf %354, %357 : vector<16x32xf32>
    %359 = arith.addf %358, %261 : vector<16x32xf32>
    %c1_145 = arith.constant 1 : index
    %c0_146 = arith.constant 0 : index
    %c0_147 = arith.constant 0 : index
    %360 = vector.load %arg11[%c1_145, %c0_146, %c0_147] : memref<2x1x32xf32, #tpu.memory_space<vmem>>, vector<1x1x32xf32>
    %361 = vector.shape_cast %360 : vector<1x1x32xf32> to vector<1x32xf32>
    %c1_148 = arith.constant 1 : index
    %c0_149 = arith.constant 0 : index
    %c0_150 = arith.constant 0 : index
    %362 = vector.load %arg12[%c1_148, %c0_149, %c0_150] : memref<2x1x32xf32, #tpu.memory_space<vmem>>, vector<1x1x32xf32>
    %363 = vector.shape_cast %362 : vector<1x1x32xf32> to vector<1x32xf32>
    %cst_151 = arith.constant dense<0.000000e+00> : vector<16xf32>
    %364 = vector.multi_reduction <add>, %359, %cst_151 [1] : vector<16x32xf32> to vector<16xf32>
    %365 = vector.shape_cast %364 : vector<16xf32> to vector<16x1xf32>
    %cst_152 = arith.constant 3.200000e+01 : f32
    %366 = vector.broadcast %cst_152 : f32 to vector<16x1xf32>
    %367 = arith.divf %365, %366 : vector<16x1xf32>
    %368 = vector.broadcast %367 : vector<16x1xf32> to vector<16x32xf32>
    %369 = arith.subf %359, %368 : vector<16x32xf32>
    %370 = arith.mulf %369, %369 : vector<16x32xf32>
    %cst_153 = arith.constant dense<0.000000e+00> : vector<16xf32>
    %371 = vector.multi_reduction <add>, %370, %cst_153 [1] : vector<16x32xf32> to vector<16xf32>
    %372 = vector.shape_cast %371 : vector<16xf32> to vector<16x1xf32>
    %cst_154 = arith.constant 3.200000e+01 : f32
    %373 = vector.broadcast %cst_154 : f32 to vector<16x1xf32>
    %374 = arith.divf %372, %373 : vector<16x1xf32>
    %375 = vector.broadcast %367 : vector<16x1xf32> to vector<16x32xf32>
    %376 = arith.subf %359, %375 : vector<16x32xf32>
    %cst_155 = arith.constant 9.99999996E-13 : f32
    %377 = vector.broadcast %cst_155 : f32 to vector<16x1xf32>
    %378 = arith.addf %374, %377 : vector<16x1xf32>
    %379 = math.rsqrt %378 : vector<16x1xf32>
    %380 = vector.broadcast %379 : vector<16x1xf32> to vector<16x32xf32>
    %381 = arith.mulf %376, %380 : vector<16x32xf32>
    %382 = vector.broadcast %361 : vector<1x32xf32> to vector<16x32xf32>
    %383 = arith.mulf %381, %382 : vector<16x32xf32>
    %384 = vector.broadcast %363 : vector<1x32xf32> to vector<16x32xf32>
    %385 = arith.addf %383, %384 : vector<16x32xf32>
    %386 = arith.truncf %385 : vector<16x32xf32> to vector<16x32xbf16>
    %c1_156 = arith.constant 1 : index
    %c0_157 = arith.constant 0 : index
    %c0_158 = arith.constant 0 : index
    %387 = vector.load %arg13[%c1_156, %c0_157, %c0_158] : memref<2x32x64xbf16, #tpu.memory_space<vmem>>, vector<1x32x64xbf16>
    %388 = vector.shape_cast %387 : vector<1x32x64xbf16> to vector<32x64xbf16>
    %cst_159 = arith.constant dense<0.000000e+00> : vector<16x64xf32>
    %389 = tpu.matmul %386, %388, %cst_159 {dimension_numbers = #tpu.dot_dimension_numbers<[1], [0], [0], [1], [0, 0, 1, 1], [], []>} : vector<16x32xbf16>, vector<32x64xbf16>, vector<16x64xf32> -> vector<16x64xf32>
    %c1_160 = arith.constant 1 : index
    %c0_161 = arith.constant 0 : index
    %c0_162 = arith.constant 0 : index
    %390 = vector.load %arg14[%c1_160, %c0_161, %c0_162] : memref<2x1x64xf32, #tpu.memory_space<vmem>>, vector<1x1x64xf32>
    %391 = vector.shape_cast %390 : vector<1x1x64xf32> to vector<1x64xf32>
    %392 = vector.broadcast %391 : vector<1x64xf32> to vector<16x64xf32>
    %393 = arith.addf %389, %392 : vector<16x64xf32>
    %cst_163 = arith.constant 5.000000e-01 : f32
    %394 = vector.broadcast %cst_163 : f32 to vector<16x64xf32>
    %395 = arith.mulf %394, %393 : vector<16x64xf32>
    %cst_164 = arith.constant 4.471500e-02 : f32
    %396 = vector.broadcast %cst_164 : f32 to vector<16x64xf32>
    %397 = arith.mulf %396, %393 : vector<16x64xf32>
    %398 = arith.mulf %397, %393 : vector<16x64xf32>
    %399 = arith.mulf %398, %393 : vector<16x64xf32>
    %400 = arith.addf %393, %399 : vector<16x64xf32>
    %cst_165 = arith.constant 0.797884583 : f32
    %401 = vector.broadcast %cst_165 : f32 to vector<16x64xf32>
    %402 = arith.mulf %401, %400 : vector<16x64xf32>
    %403 = math.tanh %402 : vector<16x64xf32>
    %cst_166 = arith.constant 1.000000e+00 : f32
    %404 = vector.broadcast %cst_166 : f32 to vector<16x64xf32>
    %405 = arith.addf %404, %403 : vector<16x64xf32>
    %406 = arith.mulf %395, %405 : vector<16x64xf32>
    %407 = arith.truncf %406 : vector<16x64xf32> to vector<16x64xbf16>
    %c1_167 = arith.constant 1 : index
    %c0_168 = arith.constant 0 : index
    %c0_169 = arith.constant 0 : index
    %408 = vector.load %arg15[%c1_167, %c0_168, %c0_169] : memref<2x64x32xbf16, #tpu.memory_space<vmem>>, vector<1x64x32xbf16>
    %409 = vector.shape_cast %408 : vector<1x64x32xbf16> to vector<64x32xbf16>
    %cst_170 = arith.constant dense<0.000000e+00> : vector<16x32xf32>
    %410 = tpu.matmul %407, %409, %cst_170 {dimension_numbers = #tpu.dot_dimension_numbers<[1], [0], [0], [1], [0, 0, 1, 1], [], []>} : vector<16x64xbf16>, vector<64x32xbf16>, vector<16x32xf32> -> vector<16x32xf32>
    %c1_171 = arith.constant 1 : index
    %c0_172 = arith.constant 0 : index
    %c0_173 = arith.constant 0 : index
    %411 = vector.load %arg16[%c1_171, %c0_172, %c0_173] : memref<2x1x32xf32, #tpu.memory_space<vmem>>, vector<1x1x32xf32>
    %412 = vector.shape_cast %411 : vector<1x1x32xf32> to vector<1x32xf32>
    %413 = vector.broadcast %412 : vector<1x32xf32> to vector<16x32xf32>
    %414 = arith.addf %410, %413 : vector<16x32xf32>
    %415 = arith.addf %414, %385 : vector<16x32xf32>
    %c1_174 = arith.constant 1 : index
    %c0_175 = arith.constant 0 : index
    %c0_176 = arith.constant 0 : index
    %416 = vector.load %arg17[%c1_174, %c0_175, %c0_176] : memref<2x1x32xf32, #tpu.memory_space<vmem>>, vector<1x1x32xf32>
    %417 = vector.shape_cast %416 : vector<1x1x32xf32> to vector<1x32xf32>
    %c1_177 = arith.constant 1 : index
    %c0_178 = arith.constant 0 : index
    %c0_179 = arith.constant 0 : index
    %418 = vector.load %arg18[%c1_177, %c0_178, %c0_179] : memref<2x1x32xf32, #tpu.memory_space<vmem>>, vector<1x1x32xf32>
    %419 = vector.shape_cast %418 : vector<1x1x32xf32> to vector<1x32xf32>
    %cst_180 = arith.constant dense<0.000000e+00> : vector<16xf32>
    %420 = vector.multi_reduction <add>, %415, %cst_180 [1] : vector<16x32xf32> to vector<16xf32>
    %421 = vector.shape_cast %420 : vector<16xf32> to vector<16x1xf32>
    %cst_181 = arith.constant 3.200000e+01 : f32
    %422 = vector.broadcast %cst_181 : f32 to vector<16x1xf32>
    %423 = arith.divf %421, %422 : vector<16x1xf32>
    %424 = vector.broadcast %423 : vector<16x1xf32> to vector<16x32xf32>
    %425 = arith.subf %415, %424 : vector<16x32xf32>
    %426 = arith.mulf %425, %425 : vector<16x32xf32>
    %cst_182 = arith.constant dense<0.000000e+00> : vector<16xf32>
    %427 = vector.multi_reduction <add>, %426, %cst_182 [1] : vector<16x32xf32> to vector<16xf32>
    %428 = vector.shape_cast %427 : vector<16xf32> to vector<16x1xf32>
    %cst_183 = arith.constant 3.200000e+01 : f32
    %429 = vector.broadcast %cst_183 : f32 to vector<16x1xf32>
    %430 = arith.divf %428, %429 : vector<16x1xf32>
    %431 = vector.broadcast %423 : vector<16x1xf32> to vector<16x32xf32>
    %432 = arith.subf %415, %431 : vector<16x32xf32>
    %cst_184 = arith.constant 9.99999996E-13 : f32
    %433 = vector.broadcast %cst_184 : f32 to vector<16x1xf32>
    %434 = arith.addf %430, %433 : vector<16x1xf32>
    %435 = math.rsqrt %434 : vector<16x1xf32>
    %436 = vector.broadcast %435 : vector<16x1xf32> to vector<16x32xf32>
    %437 = arith.mulf %432, %436 : vector<16x32xf32>
    %438 = vector.broadcast %417 : vector<1x32xf32> to vector<16x32xf32>
    %439 = arith.mulf %437, %438 : vector<16x32xf32>
    %440 = vector.broadcast %419 : vector<1x32xf32> to vector<16x32xf32>
    %441 = arith.addf %439, %440 : vector<16x32xf32>
    %c0_185 = arith.constant 0 : index
    %c0_186 = arith.constant 0 : index
    %442 = vector.load %arg25[%c0_185, %c0_186] : memref<16x32xf32, #tpu.memory_space<vmem>>, vector<16x32xf32>
    tpu.vector_store %arg25[%c0_185, %c0_186], %441 {strides = array<i32>} : memref<16x32xf32, #tpu.memory_space<vmem>>, vector<16x32xf32>,
    %c0_187 = arith.constant 0 : index
    %c0_188 = arith.constant 0 : index
    %443 = tpu.strided_load %arg25[%c0_187, %c0_188] {strides = array<i32: 8, 1>} : memref<16x32xf32, #tpu.memory_space<vmem>>, vector<2x32xf32>
    %444 = arith.truncf %443 : vector<2x32xf32> to vector<2x32xbf16>
    %c0_189 = arith.constant 0 : index
    %c0_190 = arith.constant 0 : index
    %445 = vector.load %arg19[%c0_189, %c0_190] : memref<32x32xbf16, #tpu.memory_space<vmem>>, vector<32x32xbf16>
    %cst_191 = arith.constant dense<0.000000e+00> : vector<2x32xf32>
    %446 = tpu.matmul %444, %445, %cst_191 {dimension_numbers = #tpu.dot_dimension_numbers<[1], [0], [0], [1], [0, 0, 1, 1], [], []>} : vector<2x32xbf16>, vector<32x32xbf16>, vector<2x32xf32> -> vector<2x32xf32>
    %c0_192 = arith.constant 0 : index
    %c0_193 = arith.constant 0 : index
    %447 = vector.load %arg20[%c0_192, %c0_193] : memref<1x32xf32, #tpu.memory_space<vmem>>, vector<1x32xf32>
    %448 = vector.broadcast %447 : vector<1x32xf32> to vector<2x32xf32>
    %449 = arith.addf %446, %448 : vector<2x32xf32>
    %450 = math.tanh %449 : vector<2x32xf32>
    %451 = arith.truncf %450 : vector<2x32xf32> to vector<2x32xbf16>
    %c0_194 = arith.constant 0 : index
    %c0_195 = arith.constant 0 : index
    %452 = vector.load %arg21[%c0_194, %c0_195] : memref<32x128xbf16, #tpu.memory_space<vmem>>, vector<32x128xbf16>
    %cst_196 = arith.constant dense<0.000000e+00> : vector<2x128xf32>
    %453 = tpu.matmul %451, %452, %cst_196 {dimension_numbers = #tpu.dot_dimension_numbers<[1], [0], [0], [1], [0, 0, 1, 1], [], []>} : vector<2x32xbf16>, vector<32x128xbf16>, vector<2x128xf32> -> vector<2x128xf32>
    %c0_197 = arith.constant 0 : index
    %c0_198 = arith.constant 0 : index
    %454 = vector.load %arg22[%c0_197, %c0_198] : memref<1x128xf32, #tpu.memory_space<vmem>>, vector<1x128xf32>
    %455 = vector.broadcast %454 : vector<1x128xf32> to vector<2x128xf32>
    %456 = arith.addf %453, %455 : vector<2x128xf32>
    %c0_199 = arith.constant 0 : index
    %c0_200 = arith.constant 0 : index
    %457 = vector.load %arg23[%c0_199, %c0_200] : memref<2x128xf32, #tpu.memory_space<vmem>>, vector<2x128xf32>
    tpu.vector_store %arg23[%c0_199, %c0_200], %456 {strides = array<i32>} : memref<2x128xf32, #tpu.memory_space<vmem>>, vector<2x128xf32>,
    return
  }
}

</mosaic_0001>

<llo_original>
// kernel: _lambda_.1
$region0: #{_lambda_.1}
  #allocation0 [shape = 'u32[]', space=smem, size = 0x4, offset = 0x4, fixed_abs, tag = 'smem constant byte address 0x4 - core index']
  #allocation1 [shape = 'u32[144,128]{1,0:T(1,128)}', space=vmem, size = 0x12000, scoped, tag = 'internal scratch']
  #allocation2 [shape = 'f32[16,32]{1,0:T(8,128)}', space=vmem, size = 0x2000, scoped, tag = 'scratch operand']
  #allocation3 [shape = 'f32[16,32]{1,0:T(8,128)}', space=vmem, size = 0x2000, scoped, tag = 'scratch operand']
  %s0 = inlined_call_operand.vmem [shape: s32[16,1], index: 0, kind: input, shape index: {}]
  %s1 = inlined_call_operand.vmem [shape: f32[1,16], index: 1, kind: input, shape index: {}]
  %s2 = inlined_call_operand.vmem [shape: f32[128,32], index: 2, kind: input, shape index: {}]
  %s3 = inlined_call_operand.vmem [shape: f32[16,32], index: 3, kind: input, shape index: {}]
  %s4 = inlined_call_operand.vmem [shape: f32[2,32], index: 4, kind: input, shape index: {}]
  %s5 = inlined_call_operand.vmem [shape: f32[1,32], index: 5, kind: input, shape index: {}]
  %s6 = inlined_call_operand.vmem [shape: f32[1,32], index: 6, kind: input, shape index: {}]
  %s7 = inlined_call_operand.vmem [shape: bf16[2,32,96], index: 7, kind: input, shape index: {}]
  %s8 = inlined_call_operand.vmem [shape: f32[2,1,96], index: 8, kind: input, shape index: {}]
  %s9 = inlined_call_operand.vmem [shape: bf16[2,32,32], index: 9, kind: input, shape index: {}]
  %s10 = inlined_call_operand.vmem [shape: f32[2,1,32], index: 10, kind: input, shape index: {}]
  %s11 = inlined_call_operand.vmem [shape: f32[2,1,32], index: 11, kind: input, shape index: {}]
  %s12 = inlined_call_operand.vmem [shape: f32[2,1,32], index: 12, kind: input, shape index: {}]
  %s13 = inlined_call_operand.vmem [shape: bf16[2,32,64], index: 13, kind: input, shape index: {}]
  %s14 = inlined_call_operand.vmem [shape: f32[2,1,64], index: 14, kind: input, shape index: {}]
  %s15 = inlined_call_operand.vmem [shape: bf16[2,64,32], index: 15, kind: input, shape index: {}]
  %s16 = inlined_call_operand.vmem [shape: f32[2,1,32], index: 16, kind: input, shape index: {}]
  %s17 = inlined_call_operand.vmem [shape: f32[2,1,32], index: 17, kind: input, shape index: {}]
  %s18 = inlined_call_operand.vmem [shape: f32[2,1,32], index: 18, kind: input, shape index: {}]
  %s19 = inlined_call_operand.vmem [shape: bf16[32,32], index: 19, kind: input, shape index: {}]
  %s20 = inlined_call_operand.vmem [shape: f32[1,32], index: 20, kind: input, shape index: {}]
  %s21 = inlined_call_operand.vmem [shape: bf16[32,128], index: 21, kind: input, shape index: {}]
  %s22 = inlined_call_operand.vmem [shape: f32[1,128], index: 22, kind: input, shape index: {}]
  %s23 = inlined_call_operand.hbm [shape: f32[2,128], index: 23, kind: output, shape index: {}]
  %s24 = sld [smem:[#allocation0]]
  $region102: #{_lambda_.1} parent=0
    _
  %s26 = ssub.s32 1, %s24
  %s27 = scalar_select 0, %s26, %s24
  $region1: #{_lambda_.1} parent=0
    #allocation4 [shape = 'u8[1024]{0}', space=vmem, size = 0x400, scoped, tag = 'output window, operand 0, single buffered']
    #allocation5 [shape = 's32[1]{0}', space=sflag, size = 0x4, scoped, tag = 'scoped memory for _lambda_.1']
    %28 = vsyncpa [#allocation5], 0
    // Predicated region
    $region2: #{_lambda_.1} parent=1 // pred_check
      _
    $region3: #{_lambda_.1} parent=1 // pred_check_branch
      %30 = sbr.rel (0) target = $region5
    $region4: #{_lambda_.1} parent=1 // pred_region
      _
    $region5: #{_lambda_.1} parent=1 // pred_fallthru
      _
    // Predicated region
    $region6: #{_lambda_.1} parent=1 // pred_check
      _
    $region7: #{_lambda_.1} parent=1 // pred_check_branch
      %32 = sbr.rel (0) target = $region9
    $region8: #{_lambda_.1} parent=1 // pred_region
      _
    $region9: #{_lambda_.1} parent=1 // pred_fallthru
      _
    // Predicated region
    $region10: #{_lambda_.1} parent=1 // pred_check
      _
    $region11: #{_lambda_.1} parent=1 // pred_check_branch
      %34 = sbr.rel (0) target = $region13
    $region12: #{_lambda_.1} parent=1 // pred_region
      _
    $region13: #{_lambda_.1} parent=1 // pred_fallthru
      _
    // Predicated region
    $region14: #{_lambda_.1} parent=1 // pred_check
      _
    $region15: #{_lambda_.1} parent=1 // pred_check_branch
      %36 = sbr.rel (0) target = $region17
    $region16: #{_lambda_.1} parent=1 // pred_region
      _
    $region17: #{_lambda_.1} parent=1 // pred_fallthru
      _
    // Predicated region
    $region18: #{_lambda_.1} parent=1 // pred_check
      _
    $region19: #{_lambda_.1} parent=1 // pred_check_branch
      %38 = sbr.rel (0) target = $region21
    $region20: #{_lambda_.1} parent=1 // pred_region
      _
    $region21: #{_lambda_.1} parent=1 // pred_fallthru
      _
    // Predicated region
    $region22: #{_lambda_.1} parent=1 // pred_check
      _
    $region23: #{_lambda_.1} parent=1 // pred_check_branch
      %40 = sbr.rel (0) target = $region25
    $region24: #{_lambda_.1} parent=1 // pred_region
      _
    $region25: #{_lambda_.1} parent=1 // pred_fallthru
      _
    // Predicated region
    $region26: #{_lambda_.1} parent=1 // pred_check
      _
    $region27: #{_lambda_.1} parent=1 // pred_check_branch
      %42 = sbr.rel (0) target = $region29
    $region28: #{_lambda_.1} parent=1 // pred_region
      _
    $region29: #{_lambda_.1} parent=1 // pred_fallthru
      _
    // Predicated region
    $region30: #{_lambda_.1} parent=1 // pred_check
      _
    $region31: #{_lambda_.1} parent=1 // pred_check_branch
      %44 = sbr.rel (0) target = $region33
    $region32: #{_lambda_.1} parent=1 // pred_region
      _
    $region33: #{_lambda_.1} parent=1 // pred_fallthru
      _
    // Predicated region
    $region34: #{_lambda_.1} parent=1 // pred_check
      _
    $region35: #{_lambda_.1} parent=1 // pred_check_branch
      %46 = sbr.rel (0) target = $region37
    $region36: #{_lambda_.1} parent=1 // pred_region
      _
    $region37: #{_lambda_.1} parent=1 // pred_fallthru
      _
    // Predicated region
    $region38: #{_lambda_.1} parent=1 // pred_check
      _
    $region39: #{_lambda_.1} parent=1 // pred_check_branch
      %48 = sbr.rel (0) target = $region41
    $region40: #{_lambda_.1} parent=1 // pred_region
      _
    $region41: #{_lambda_.1} parent=1 // pred_fallthru
      _
    // Predicated region
    $region42: #{_lambda_.1} parent=1 // pred_check
      _
    $region43: #{_lambda_.1} parent=1 // pred_check_branch
      %50 = sbr.rel (0) target = $region45
    $region44: #{_lambda_.1} parent=1 // pred_region
      _
    $region45: #{_lambda_.1} parent=1 // pred_fallthru
      _
    // Predicated region
    $region46: #{_lambda_.1} parent=1 // pred_check
      _
    $region47: #{_lambda_.1} parent=1 // pred_check_branch
      %52 = sbr.rel (0) target = $region49
    $region48: #{_lambda_.1} parent=1 // pred_region
      _
    $region49: #{_lambda_.1} parent=1 // pred_fallthru
      _
    // Predicated region
    $region50: #{_lambda_.1} parent=1 // pred_check
      _
    $region51: #{_lambda_.1} parent=1 // pred_check_branch
      %54 = sbr.rel (0) target = $region53
    $region52: #{_lambda_.1} parent=1 // pred_region
      _
    $region53: #{_lambda_.1} parent=1 // pred_fallthru
      _
    // Predicated region
    $region54: #{_lambda_.1} parent=1 // pred_check
      _
    $region55: #{_lambda_.1} parent=1 // pred_check_branch
      %56 = sbr.rel (0) target = $region57
    $region56: #{_lambda_.1} parent=1 // pred_region
      _
    $region57: #{_lambda_.1} parent=1 // pred_fallthru
      _
    // Predicated region
    $region58: #{_lambda_.1} parent=1 // pred_check
      _
    $region59: #{_lambda_.1} parent=1 // pred_check_branch
      %58 = sbr.rel (0) target = $region61
    $region60: #{_lambda_.1} parent=1 // pred_region
      _
    $region61: #{_lambda_.1} parent=1 // pred_fallthru
      _
    // Predicated region
    $region62: #{_lambda_.1} parent=1 // pred_check
      _
    $region63: #{_lambda_.1} parent=1 // pred_check_branch
      %60 = sbr.rel (0) target = $region65
    $region64: #{_lambda_.1} parent=1 // pred_region
      _
    $region65: #{_lambda_.1} parent=1 // pred_fallthru
      _
    // Predicated region
    $region66: #{_lambda_.1} parent=1 // pred_check
      _
    $region67: #{_lambda_.1} parent=1 // pred_check_branch
      %62 = sbr.rel (0) target = $region69
    $region68: #{_lambda_.1} parent=1 // pred_region
      _
    $region69: #{_lambda_.1} parent=1 // pred_fallthru
      _
    // Predicated region
    $region70: #{_lambda_.1} parent=1 // pred_check
      _
    $region71: #{_lambda_.1} parent=1 // pred_check_branch
      %64 = sbr.rel (0) target = $region73
    $region72: #{_lambda_.1} parent=1 // pred_region
      _
    $region73: #{_lambda_.1} parent=1 // pred_fallthru
      _
    // Predicated region
    $region74: #{_lambda_.1} parent=1 // pred_check
      _
    $region75: #{_lambda_.1} parent=1 // pred_check_branch
      %66 = sbr.rel (0) target = $region77
    $region76: #{_lambda_.1} parent=1 // pred_region
      _
    $region77: #{_lambda_.1} parent=1 // pred_fallthru
      _
    // Predicated region
    $region78: #{_lambda_.1} parent=1 // pred_check
      _
    $region79: #{_lambda_.1} parent=1 // pred_check_branch
      %68 = sbr.rel (0) target = $region81
    $region80: #{_lambda_.1} parent=1 // pred_region
      _
    $region81: #{_lambda_.1} parent=1 // pred_fallthru
      _
    // Predicated region
    $region82: #{_lambda_.1} parent=1 // pred_check
      _
    $region83: #{_lambda_.1} parent=1 // pred_check_branch
      %70 = sbr.rel (0) target = $region85
    $region84: #{_lambda_.1} parent=1 // pred_region
      _
    $region85: #{_lambda_.1} parent=1 // pred_fallthru
      _
    // Predicated region
    $region86: #{_lambda_.1} parent=1 // pred_check
      _
    $region87: #{_lambda_.1} parent=1 // pred_check_branch
      %72 = sbr.rel (0) target = $region89
    $region88: #{_lambda_.1} parent=1 // pred_region
      _
    $region89: #{_lambda_.1} parent=1 // pred_fallthru
      _
    // Predicated region
    $region90: #{_lambda_.1} parent=1 // pred_check
      _
    $region91: #{_lambda_.1} parent=1 // pred_check_branch
      %74 = sbr.rel (0) target = $region93
    $region92: #{_lambda_.1} parent=1 // pred_region
      _
    $region93: #{_lambda_.1} parent=1 // pred_fallthru
      _
    %v76 = vld [vmem:[%s0] sm:$0xff]
    %v77 = vld [vmem:[%s0 + $0x8] sm:$0xff]
    %v78 = vlaneseq
    %v79 = vand.u32 %v78, 127
    %80 = vset.pattern.permute.xlu0 0
    %81 = vperm.xlu0 %80, %v76
    %v82 = vpop.permute.xlu0 %81
    %83 = vset.pattern.permute.xlu0 0
    %84 = vperm.xlu0 %83, %v77
    %v85 = vpop.permute.xlu0 %84
    %vm86 = vcmp.eq.s32.totalorder %v82, %v79
    %vm87 = vcmp.eq.s32.totalorder %v85, %v79
    %v88 = vsel %vm86, 1, 0
    %v89 = vsel %vm87, 1, 0
    %v90 = vcvt.s32.f32 %v88
    %v91 = vcvt.s32.f32 %v89
    %v92 = vld [vmem:[%s2] sm:$0xff]
    %v93 = vld [vmem:[%s2 + $0x8] sm:$0xff]
    %v94 = vld [vmem:[%s2 + $0x10] sm:$0xff]
    %v95 = vld [vmem:[%s2 + $0x18] sm:$0xff]
    %v96 = vld [vmem:[%s2 + $0x20] sm:$0xff]
    %v97 = vld [vmem:[%s2 + $0x28] sm:$0xff]
    %v98 = vld [vmem:[%s2 + $0x30] sm:$0xff]
    %v99 = vld [vmem:[%s2 + $0x38] sm:$0xff]
    %v100 = vld [vmem:[%s2 + $0x40] sm:$0xff]
    %v101 = vld [vmem:[%s2 + $0x48] sm:$0xff]
    %v102 = vld [vmem:[%s2 + $0x50] sm:$0xff]
    %v103 = vld [vmem:[%s2 + $0x58] sm:$0xff]
    %v104 = vld [vmem:[%s2 + $0x60] sm:$0xff]
    %v105 = vld [vmem:[%s2 + $0x68] sm:$0xff]
    %v106 = vld [vmem:[%s2 + $0x70] sm:$0xff]
    %v107 = vld [vmem:[%s2 + $0x78] sm:$0xff]
    %v108 = vlaneseq
    %v109 = vshrl.u32 %v108, 7
    %v110 = vadd.s32 %v109, 8
    %vm111 = vcmp.eq.s32.totalorder %v109, %v79
    %vm112 = vcmp.eq.s32.totalorder %v110, %v79
    %v113 = vadd.s32 %v79, 8
    %vm114 = vcmp.eq.s32.totalorder %v109, %v113
    %vm115 = vcmp.eq.s32.totalorder %v110, %v113
    %vm116 = vmor %vm111, %vm114
    %vm117 = vmor %vm112, %vm115
    %v118 = vsel %vm116, 1, 0
    %v119 = vsel %vm117, 1, 0
    %v120 = vcvt.s32.f32 %v118
    %v121 = vcvt.s32.f32 %v119
    %v122 = vld [vmem:[%s3] sm:$0xff]
    %vm123 = vcmask 64512
    %v125 = vsel %vm123, %v120, 0
    %v128 = vsel %vm123, %v121, 0
    %130 = vmatprep.subr.mxu0 0.0
    %131 = vmatpush1.msra.mxu0 0.0
    %132 = vmatprep.subr.mxu0 0.0
    %133 = vmatpush1.msra.mxu0 0.0
    %134 = vmatprep.subr.mxu0 0.0
    %135 = vmatpush1.msra.mxu0 0.0
    %136 = vmatprep.subr.mxu0 0.0
    %137 = vmatpush1.msra.mxu0 0.0
    %138 = vmatprep.subr.mxu0 0.0
    %139 = vmatpush1.msra.mxu0 0.0
    %140 = vmatprep.subr.mxu0 0.0
    %141 = vmatpush1.msra.mxu0 0.0
    %142 = vmatprep.subr.mxu0 0.0
    %143 = vmatpush1.msra.mxu0 0.0
    %144 = vmatprep.subr.mxu0 0.0
    %145 = vmatpush1.msra.mxu0 0.0
    %146 = vmatprep.subr.mxu0 0.0
    %147 = vmatpush1.msra.mxu0 0.0
    %148 = vmatprep.subr.mxu0 0.0
    %149 = vmatpush1.msra.mxu0 0.0
    %150 = vmatprep.subr.mxu0 0.0
    %151 = vmatpush1.msra.mxu0 0.0
    %152 = vmatprep.subr.mxu0 0.0
    %153 = vmatpush1.msra.mxu0 0.0
    %154 = vmatprep.subr.mxu0 0.0
    %155 = vmatpush1.msra.mxu0 0.0
    %156 = vmatprep.subr.mxu0 0.0
    %157 = vmatpush1.msra.mxu0 0.0
    %158 = vmatprep.subr.mxu0 0.0
    %159 = vmatpush1.msra.mxu0 0.0
    %160 = vmatprep.subr.mxu0 0.0
    %161 = vmatpush1.msra.mxu0 %v122
    %162 = vmatprep.subr.mxu0 0.0
    %163 = vmatpush2.msra.mxu0 0.0
    %164 = vmatprep.subr.mxu0 0.0
    %165 = vmatpush2.msra.mxu0 0.0
    %166 = vmatprep.subr.mxu0 0.0
    %167 = vmatpush2.msra.mxu0 0.0
    %168 = vmatprep.subr.mxu0 0.0
    %169 = vmatpush2.msra.mxu0 0.0
    %170 = vmatprep.subr.mxu0 0.0
    %171 = vmatpush2.msra.mxu0 0.0
    %172 = vmatprep.subr.mxu0 0.0
    %173 = vmatpush2.msra.mxu0 0.0
    %174 = vmatprep.subr.mxu0 0.0
    %175 = vmatpush2.msra.mxu0 0.0
    %176 = vmatprep.subr.mxu0 0.0
    %177 = vmatpush2.msra.mxu0 0.0
    %178 = vmatprep.subr.mxu0 0.0
    %179 = vmatpush2.msra.mxu0 0.0
    %180 = vmatprep.subr.mxu0 0.0
    %181 = vmatpush2.msra.mxu0 0.0
    %182 = vmatprep.subr.mxu0 0.0
    %183 = vmatpush2.msra.mxu0 0.0
    %184 = vmatprep.subr.mxu0 0.0
    %185 = vmatpush2.msra.mxu0 0.0
    %186 = vmatprep.subr.mxu0 0.0
    %187 = vmatpush2.msra.mxu0 0.0
    %188 = vmatprep.subr.mxu0 0.0
    %189 = vmatpush2.msra.mxu0 0.0
    %190 = vmatprep.subr.mxu0 0.0
    %191 = vmatpush2.msra.mxu0 0.0
    %192 = vmatprep.subr.mxu0 0.0
    %193 = vmatpush2.msra.mxu0 0.0
    %194 = vmatprep.mubr.f32.mxu0 0.0
    %195 = vmatmul.mubr.f32.gmra.mxu0 %v125
    %v196 = vpop.f32.mrf.mxu0
    %v197 = vadd.f32 0.0, %v196
    %v198 = vpop.f32.mrf.mxu0
    %199 = vmatprep.mubr.f32.mxu0 0.0
    %200 = vmatmul.mubr.f32.gmra.mxu0 %v128
    %v201 = vpop.f32.mrf.mxu0
    %v202 = vadd.f32 0.0, %v201
    %v203 = vpop.f32.mrf.mxu0
    %204 = vdwg.mxu0
    %205 = vmatprep.subr.mxu0 0.0
    %206 = vmatpush1.msra.mxu0 %v107
    %207 = vmatprep.subr.mxu0 0.0
    %208 = vmatpush1.msra.mxu0 %v106
    %209 = vmatprep.subr.mxu0 0.0
    %210 = vmatpush1.msra.mxu0 %v105
    %211 = vmatprep.subr.mxu0 0.0
    %212 = vmatpush1.msra.mxu0 %v104
    %213 = vmatprep.subr.mxu0 0.0
    %214 = vmatpush1.msra.mxu0 %v103
    %215 = vmatprep.subr.mxu0 0.0
    %216 = vmatpush1.msra.mxu0 %v102
    %217 = vmatprep.subr.mxu0 0.0
    %218 = vmatpush1.msra.mxu0 %v101
    %219 = vmatprep.subr.mxu0 0.0
    %220 = vmatpush1.msra.mxu0 %v100
    %221 = vmatprep.subr.mxu0 0.0
    %222 = vmatpush1.msra.mxu0 %v99
    %223 = vmatprep.subr.mxu0 0.0
    %224 = vmatpush1.msra.mxu0 %v98
    %225 = vmatprep.subr.mxu0 0.0
    %226 = vmatpush1.msra.mxu0 %v97
    %227 = vmatprep.subr.mxu0 0.0
    %228 = vmatpush1.msra.mxu0 %v96
    %229 = vmatprep.subr.mxu0 0.0
    %230 = vmatpush1.msra.mxu0 %v95
    %231 = vmatprep.subr.mxu0 0.0
    %232 = vmatpush1.msra.mxu0 %v94
    %233 = vmatprep.subr.mxu0 0.0
    %234 = vmatpush1.msra.mxu0 %v93
    %235 = vmatprep.subr.mxu0 0.0
    %236 = vmatpush1.msra.mxu0 %v92
    %237 = vmatprep.subr.mxu0 0.0
    %238 = vmatpush2.msra.mxu0 0.0
    %239 = vmatprep.subr.mxu0 0.0
    %240 = vmatpush2.msra.mxu0 0.0
    %241 = vmatprep.subr.mxu0 0.0
    %242 = vmatpush2.msra.mxu0 0.0
    %243 = vmatprep.subr.mxu0 0.0
    %244 = vmatpush2.msra.mxu0 0.0
    %245 = vmatprep.subr.mxu0 0.0
    %246 = vmatpush2.msra.mxu0 0.0
    %247 = vmatprep.subr.mxu0 0.0
    %248 = vmatpush2.msra.mxu0 0.0
    %249 = vmatprep.subr.mxu0 0.0
    %250 = vmatpush2.msra.mxu0 0.0
    %251 = vmatprep.subr.mxu0 0.0
    %252 = vmatpush2.msra.mxu0 0.0
    %253 = vmatprep.subr.mxu0 0.0
    %254 = vmatpush2.msra.mxu0 0.0
    %255 = vmatprep.subr.mxu0 0.0
    %256 = vmatpush2.msra.mxu0 0.0
    %257 = vmatprep.subr.mxu0 0.0
    %258 = vmatpush2.msra.mxu0 0.0
    %259 = vmatprep.subr.mxu0 0.0
    %260 = vmatpush2.msra.mxu0 0.0
    %261 = vmatprep.subr.mxu0 0.0
    %262 = vmatpush2.msra.mxu0 0.0
    %263 = vmatprep.subr.mxu0 0.0
    %264 = vmatpush2.msra.mxu0 0.0
    %265 = vmatprep.subr.mxu0 0.0
    %266 = vmatpush2.msra.mxu0 0.0
    %267 = vmatprep.subr.mxu0 0.0
    %268 = vmatpush2.msra.mxu0 0.0
    %269 = vmatprep.mubr.f32.mxu0 0.0
    %270 = vmatmul.mubr.f32.gmra.mxu0 %v90
    %v271 = vpop.f32.mrf.mxu0
    %v272 = vadd.f32 %v197, %v271
    %v273 = vpop.f32.mrf.mxu0
    %274 = vmatprep.mubr.f32.mxu0 0.0
    %275 = vmatmul.mubr.f32.gmra.mxu0 %v91
    %v276 = vpop.f32.mrf.mxu0
    %v277 = vadd.f32 %v202, %v276
    %v278 = vpop.f32.mrf.mxu0
    %279 = vdwg.mxu0
    %v280 = vld [vmem:[%s4] sm:$0x1]
    %v281 = vlaneseq
    %v282 = vshrl.u32 %v281, 7
    %v283 = vsub.s32 0, %v282
    %v284 = vrot.slane %v280, %v283
    %v285 = vadd.f32 %v272, %v284
    %v286 = vadd.f32 %v277, %v284
    %v287 = vld [vmem:[%s5] sm:$0x1]
    %v288 = vld [vmem:[%s6] sm:$0x1]
    %vm289 = vcmask 261120
    %v290 = vsel %vm289, %v285, 0.0
    %291 = vadd.xlane.f32.xlu0 %v290
    %v292 = vpop.xlane.xlu0 %291
    %v293 = vsel %vm289, %v286, 0.0
    %294 = vadd.xlane.f32.xlu0 %v293
    %v295 = vpop.xlane.xlu0 %294
    %v296 = vrcp.pop 32.0
    %v297 = vmul.f32 %v292, %v296
    %v298 = vmul.f32 %v295, %v296
    %v299 = vsub.f32 %v285, %v297
    %v300 = vsub.f32 %v286, %v298
    %v301 = vmul.f32 %v299, %v299
    %v302 = vmul.f32 %v300, %v300
    %v303 = vsel %vm289, %v301, 0.0
    %304 = vadd.xlane.f32.xlu0 %v303
    %v305 = vpop.xlane.xlu0 %304
    %v306 = vsel %vm289, %v302, 0.0
    %307 = vadd.xlane.f32.xlu0 %v306
    %v308 = vpop.xlane.xlu0 %307
    %v309 = vmul.f32 %v305, %v296
    %v310 = vmul.f32 %v308, %v296
    %v311 = vadd.f32 %v309, 1e-12
    %v312 = vadd.f32 %v310, 1e-12
    %v313 = vrsqrt.pop %v311
    %v314 = vrsqrt.pop %v312
    %v315 = vmul.f32 %v299, %v313
    %v316 = vmul.f32 %v300, %v314
    %v318 = vlaneseq
    %v319 = vshrl.u32 %v318, 7
    %v320 = vsub.s32 0, %v319
    %v321 = vrot.slane %v287, %v320
    %v323 = vmul.f32 %v315, %v321
    %v324 = vmul.f32 %v316, %v321
    %v326 = vlaneseq
    %v327 = vshrl.u32 %v326, 7
    %v328 = vsub.s32 0, %v327
    %v329 = vrot.slane %v288, %v328
    %v331 = vadd.f32 %v323, %v329
    %v332 = vadd.f32 %v324, %v329
    %vm333 = vcmp.ge.s32.totalorder %v109, 0
    %vm334 = vcmp.ge.s32.totalorder %v110, 0
    %vm335 = vcmp.lt.s32.totalorder %v109, 8
    %vm336 = vcmp.lt.s32.totalorder %v110, 8
    %vm337 = vmand %vm333, %vm335
    %vm338 = vmand %vm334, %vm336
    %vm339 = vcmp.ge.s32.totalorder %v79, 0
    %vm340 = vcmp.lt.s32.totalorder %v79, 8
    %vm341 = vmand %vm339, %vm340
    %vm342 = vmand %vm337, %vm341
    %vm343 = vmand %vm338, %vm341
    %vm344 = vcmp.ge.s32.totalorder %v109, 8
    %vm345 = vcmp.ge.s32.totalorder %v110, 8
    %vm346 = vcmp.lt.s32.totalorder %v109, 16
    %vm347 = vcmp.lt.s32.totalorder %v110, 16
    %vm348 = vmand %vm344, %vm346
    %vm349 = vmand %vm345, %vm347
    %vm350 = vcmp.ge.s32.totalorder %v79, 8
    %vm351 = vcmp.lt.s32.totalorder %v79, 16
    %vm352 = vmand %vm350, %vm351
    %vm353 = vmand %vm348, %vm352
    %vm354 = vmand %vm349, %vm352
    %vm355 = vmor %vm342, %vm353
    %vm356 = vmor %vm343, %vm354
    %v357 = vsel %vm355, 0.0, -1e+09
    %v358 = vsel %vm356, 0.0, -1e+09
    %v359 = vld [vmem:[%s1] sm:$0x1]
    %v360 = vsub.f32 %v359, 1.0
    %v361 = vmul.f32 %v360, 1e+09
    %v363 = vlaneseq
    %v364 = vshrl.u32 %v363, 7
    %v365 = vsub.s32 0, %v364
    %v366 = vrot.slane %v361, %v365
    %v368 = vadd.f32 %v357, %v366
    %v369 = vadd.f32 %v358, %v366
    %v370 = vpack.c.bf16 %v332, %v331
    %v371 = vld [vmem:[%s7] sm:$0xf]
    %v372 = vld [vmem:[%s7 + $0x4] sm:$0xf]
    %v373 = vld [vmem:[%s7 + $0x8] sm:$0xf]
    %v374 = vld [vmem:[%s7 + $0xc] sm:$0xf]
    %v375 = vld [vmem:[%s8] sm:$0x1]
    %v377 = vlaneseq
    %v378 = vshrl.u32 %v377, 7
    %v379 = vsub.s32 0, %v378
    %v380 = vrot.slane %v375, %v379
    %v386 = vunpack.c.l.b16 %v371
    %v387 = vunpack.c.l.b16 %v372
    %v388 = vunpack.c.l.b16 %v373
    %v389 = vunpack.c.l.b16 %v374
    %v390 = vpack.c.b16 %v387, %v386
    %v391 = vpack.c.b16 %v389, %v388
    %v395 = vsel %vm289, %v370, 0
    %397 = vmatprep.subr.bf16.mxu0 0
    %398 = vmatpush1.bf16.msra.mxu0 0
    %399 = vmatprep.subr.bf16.mxu0 0
    %400 = vmatpush1.bf16.msra.mxu0 0
    %401 = vmatprep.subr.bf16.mxu0 0
    %402 = vmatpush1.bf16.msra.mxu0 0
    %403 = vmatprep.subr.bf16.mxu0 0
    %404 = vmatpush1.bf16.msra.mxu0 0
    %405 = vmatprep.subr.bf16.mxu0 0
    %406 = vmatpush1.bf16.msra.mxu0 0
    %407 = vmatprep.subr.bf16.mxu0 0
    %408 = vmatpush1.bf16.msra.mxu0 0
    %409 = vmatprep.subr.bf16.mxu0 0
    %410 = vmatpush1.bf16.msra.mxu0 %v391
    %411 = vmatprep.subr.bf16.mxu0 0
    %412 = vmatpush1.bf16.msra.mxu0 %v390
    %413 = vmatprep.subr.bf16.mxu0 0
    %414 = vmatpush2.bf16.msra.mxu0 0
    %415 = vmatprep.subr.bf16.mxu0 0
    %416 = vmatpush2.bf16.msra.mxu0 0
    %417 = vmatprep.subr.bf16.mxu0 0
    %418 = vmatpush2.bf16.msra.mxu0 0
    %419 = vmatprep.subr.bf16.mxu0 0
    %420 = vmatpush2.bf16.msra.mxu0 0
    %421 = vmatprep.subr.bf16.mxu0 0
    %422 = vmatpush2.bf16.msra.mxu0 0
    %423 = vmatprep.subr.bf16.mxu0 0
    %424 = vmatpush2.bf16.msra.mxu0 0
    %425 = vmatprep.subr.bf16.mxu0 0
    %426 = vmatpush2.bf16.msra.mxu0 0
    %427 = vmatprep.subr.bf16.mxu0 0
    %428 = vmatpush2.bf16.msra.mxu0 0
    %429 = vmatprep.mubr.bf16.mxu0 0
    %430 = vmatmul.mubr.bf16.gmra.mxu0 %v395
    %v431 = vpop.f32.mrf.mxu0
    %v432 = vadd.f32 %v380, %v431
    %v433 = vpop.f32.mrf.mxu0
    %v434 = vpop.f32.mrf.mxu0
    %v435 = vadd.f32 %v380, %v434
    %v436 = vpop.f32.mrf.mxu0
    %437 = vdwg.mxu0
    %v438 = vpack.c.bf16 %v435, %v432
    %440 = vrot.lane.b32.xlu0 %v438, 96
    %v441 = vpop.permute.xlu0 %440
    %v443 = vsel %vm123, %v438, 0
    %v446 = vsel %vm123, %v441, 0
    %448 = vmatprep.subr.bf16.mxu0 0
    %449 = vmatpush1.bf16.xpose.msra.mxu0 0
    %450 = vmatprep.subr.bf16.mxu0 0
    %451 = vmatpush1.bf16.xpose.msra.mxu0 0
    %452 = vmatprep.subr.bf16.mxu0 0
    %453 = vmatpush1.bf16.xpose.msra.mxu0 0
    %454 = vmatprep.subr.bf16.mxu0 0
    %455 = vmatpush1.bf16.xpose.msra.mxu0 0
    %456 = vmatprep.subr.bf16.mxu0 0
    %457 = vmatpush1.bf16.xpose.msra.mxu0 0
    %458 = vmatprep.subr.bf16.mxu0 0
    %459 = vmatpush1.bf16.xpose.msra.mxu0 0
    %460 = vmatprep.subr.bf16.mxu0 0
    %461 = vmatpush1.bf16.xpose.msra.mxu0 0
    %462 = vmatprep.subr.bf16.mxu0 0
    %463 = vmatpush1.bf16.xpose.msra.mxu0 %v446
    %464 = vmatprep.subr.bf16.mxu0 0
    %465 = vmatpush2.bf16.xpose.msra.mxu0 0
    %466 = vmatprep.subr.bf16.mxu0 0
    %467 = vmatpush2.bf16.xpose.msra.mxu0 0
    %468 = vmatprep.subr.bf16.mxu0 0
    %469 = vmatpush2.bf16.xpose.msra.mxu0 0
    %470 = vmatprep.subr.bf16.mxu0 0
    %471 = vmatpush2.bf16.xpose.msra.mxu0 0
    %472 = vmatprep.subr.bf16.mxu0 0
    %473 = vmatpush2.bf16.xpose.msra.mxu0 0
    %474 = vmatprep.subr.bf16.mxu0 0
    %475 = vmatpush2.bf16.xpose.msra.mxu0 0
    %476 = vmatprep.subr.bf16.mxu0 0
    %477 = vmatpush2.bf16.xpose.msra.mxu0 0
    %478 = vmatprep.subr.bf16.mxu0 0
    %479 = vmatpush2.bf16.xpose.msra.mxu0 0
    %480 = vmatprep.mubr.bf16.mxu0 0
    %481 = vmatmul.mubr.bf16.gmra.mxu0 %v443
    %v482 = vpop.f32.mrf.mxu0
    %v483 = vadd.f32 %v368, %v482
    %v484 = vpop.f32.mrf.mxu0
    %v485 = vpop.f32.mrf.mxu0
    %v486 = vadd.f32 %v369, %v485
    %v487 = vpop.f32.mrf.mxu0
    %488 = vdwg.mxu0
    %vm489 = vcmask 130048
    %v490 = vsel %vm489, %v483, -inf
    %491 = vmax.xlane.f32.xlu0 %v490
    %v492 = vpop.xlane.xlu0 %491
    %v493 = vsel %vm489, %v486, -inf
    %494 = vmax.xlane.f32.xlu0 %v493
    %v495 = vpop.xlane.xlu0 %494
    %v496 = vsub.f32 %v483, %v492
    %v497 = vsub.f32 %v486, %v495
    %v498 = vmul.f32 %v496, 1.442695
    %v499 = vpow.pop %v498
    %v500 = vmul.f32 %v497, 1.442695
    %v501 = vpow.pop %v500
    %v502 = vsel %vm489, %v499, 0.0
    %503 = vadd.xlane.f32.xlu0 %v502
    %v504 = vpop.xlane.xlu0 %503
    %v505 = vsel %vm489, %v501, 0.0
    %506 = vadd.xlane.f32.xlu0 %v505
    %v507 = vpop.xlane.xlu0 %506
    %v508 = vrcp.pop %v504
    %v509 = vmul.f32 %v499, %v508
    %v510 = vrcp.pop %v507
    %v511 = vmul.f32 %v501, %v510
    %v512 = vpack.c.bf16 %v511, %v509
    %513 = vrot.lane.b32.xlu0 %v438, 64
    %v514 = vpop.permute.xlu0 %513
    %v517 = vsel %vm489, %v512, 0
    %519 = vmatprep.subr.bf16.mxu0 0
    %520 = vmatpush1.bf16.msra.mxu0 0
    %521 = vmatprep.subr.bf16.mxu0 0
    %522 = vmatpush1.bf16.msra.mxu0 0
    %523 = vmatprep.subr.bf16.mxu0 0
    %524 = vmatpush1.bf16.msra.mxu0 0
    %525 = vmatprep.subr.bf16.mxu0 0
    %526 = vmatpush1.bf16.msra.mxu0 0
    %527 = vmatprep.subr.bf16.mxu0 0
    %528 = vmatpush1.bf16.msra.mxu0 0
    %529 = vmatprep.subr.bf16.mxu0 0
    %530 = vmatpush1.bf16.msra.mxu0 0
    %531 = vmatprep.subr.bf16.mxu0 0
    %532 = vmatpush1.bf16.msra.mxu0 0
    %533 = vmatprep.subr.bf16.mxu0 0
    %534 = vmatpush1.bf16.msra.mxu0 %v514
    %535 = vmatprep.subr.bf16.mxu0 0
    %536 = vmatpush2.bf16.msra.mxu0 0
    %537 = vmatprep.subr.bf16.mxu0 0
    %538 = vmatpush2.bf16.msra.mxu0 0
    %539 = vmatprep.subr.bf16.mxu0 0
    %540 = vmatpush2.bf16.msra.mxu0 0
    %541 = vmatprep.subr.bf16.mxu0 0
    %542 = vmatpush2.bf16.msra.mxu0 0
    %543 = vmatprep.subr.bf16.mxu0 0
    %544 = vmatpush2.bf16.msra.mxu0 0
    %545 = vmatprep.subr.bf16.mxu0 0
    %546 = vmatpush2.bf16.msra.mxu0 0
    %547 = vmatprep.subr.bf16.mxu0 0
    %548 = vmatpush2.bf16.msra.mxu0 0
    %549 = vmatprep.subr.bf16.mxu0 0
    %550 = vmatpush2.bf16.msra.mxu0 0
    %551 = vmatprep.mubr.bf16.mxu0 0
    %552 = vmatmul.mubr.bf16.gmra.mxu0 %v517
    %v553 = vpop.f32.mrf.mxu0
    %v554 = vadd.f32 0.0, %v553
    %v555 = vpop.f32.mrf.mxu0
    %v556 = vpop.f32.mrf.mxu0
    %v557 = vadd.f32 0.0, %v556
    %v558 = vpop.f32.mrf.mxu0
    %559 = vdwg.mxu0
    %560 = vst.msk [vmem:[#allocation2] sm:$0xff] %vm123, %v554
    %561 = vst.msk [vmem:[#allocation2 + $0x8] sm:$0xff] %vm123, %v557
    %562 = vrot.lane.b32.xlu0 %v438, 120
    %v563 = vpop.permute.xlu0 %562
    %564 = vrot.lane.b32.xlu0 %v438, 88
    %v565 = vpop.permute.xlu0 %564
    %v567 = vsel %vm123, %v563, 0
    %v570 = vsel %vm123, %v565, 0
    %572 = vmatprep.subr.bf16.mxu0 0
    %573 = vmatpush1.bf16.xpose.msra.mxu0 0
    %574 = vmatprep.subr.bf16.mxu0 0
    %575 = vmatpush1.bf16.xpose.msra.mxu0 0
    %576 = vmatprep.subr.bf16.mxu0 0
    %577 = vmatpush1.bf16.xpose.msra.mxu0 0
    %578 = vmatprep.subr.bf16.mxu0 0
    %579 = vmatpush1.bf16.xpose.msra.mxu0 0
    %580 = vmatprep.subr.bf16.mxu0 0
    %581 = vmatpush1.bf16.xpose.msra.mxu0 0
    %582 = vmatprep.subr.bf16.mxu0 0
    %583 = vmatpush1.bf16.xpose.msra.mxu0 0
    %584 = vmatprep.subr.bf16.mxu0 0
    %585 = vmatpush1.bf16.xpose.msra.mxu0 0
    %586 = vmatprep.subr.bf16.mxu0 0
    %587 = vmatpush1.bf16.xpose.msra.mxu0 %v570
    %588 = vmatprep.subr.bf16.mxu0 0
    %589 = vmatpush2.bf16.xpose.msra.mxu0 0
    %590 = vmatprep.subr.bf16.mxu0 0
    %591 = vmatpush2.bf16.xpose.msra.mxu0 0
    %592 = vmatprep.subr.bf16.mxu0 0
    %593 = vmatpush2.bf16.xpose.msra.mxu0 0
    %594 = vmatprep.subr.bf16.mxu0 0
    %595 = vmatpush2.bf16.xpose.msra.mxu0 0
    %596 = vmatprep.subr.bf16.mxu0 0
    %597 = vmatpush2.bf16.xpose.msra.mxu0 0
    %598 = vmatprep.subr.bf16.mxu0 0
    %599 = vmatpush2.bf16.xpose.msra.mxu0 0
    %600 = vmatprep.subr.bf16.mxu0 0
    %601 = vmatpush2.bf16.xpose.msra.mxu0 0
    %602 = vmatprep.subr.bf16.mxu0 0
    %603 = vmatpush2.bf16.xpose.msra.mxu0 0
    %604 = vmatprep.mubr.bf16.mxu0 0
    %605 = vmatmul.mubr.bf16.gmra.mxu0 %v567
    %v606 = vpop.f32.mrf.mxu0
    %v607 = vadd.f32 %v368, %v606
    %v608 = vpop.f32.mrf.mxu0
    %v609 = vpop.f32.mrf.mxu0
    %v610 = vadd.f32 %v369, %v609
    %v611 = vpop.f32.mrf.mxu0
    %612 = vdwg.mxu0
    %v613 = vsel %vm489, %v607, -inf
    %614 = vmax.xlane.f32.xlu0 %v613
    %v615 = vpop.xlane.xlu0 %614
    %v616 = vsel %vm489, %v610, -inf
    %617 = vmax.xlane.f32.xlu0 %v616
    %v618 = vpop.xlane.xlu0 %617
    %v619 = vsub.f32 %v607, %v615
    %v620 = vsub.f32 %v610, %v618
    %v621 = vmul.f32 %v619, 1.442695
    %v622 = vpow.pop %v621
    %v623 = vmul.f32 %v620, 1.442695
    %v624 = vpow.pop %v623
    %v625 = vsel %vm489, %v622, 0.0
    %626 = vadd.xlane.f32.xlu0 %v625
    %v627 = vpop.xlane.xlu0 %626
    %v628 = vsel %vm489, %v624, 0.0
    %629 = vadd.xlane.f32.xlu0 %v628
    %v630 = vpop.xlane.xlu0 %629
    %v631 = vrcp.pop %v627
    %v632 = vmul.f32 %v622, %v631
    %v633 = vrcp.pop %v630
    %v634 = vmul.f32 %v624, %v633
    %v635 = vpack.c.bf16 %v634, %v632
    %636 = vrot.lane.b32.xlu0 %v438, 56
    %v637 = vpop.permute.xlu0 %636
    %v640 = vsel %vm489, %v635, 0
    %642 = vmatprep.subr.bf16.mxu0 0
    %643 = vmatpush1.bf16.msra.mxu0 0
    %644 = vmatprep.subr.bf16.mxu0 0
    %645 = vmatpush1.bf16.msra.mxu0 0
    %646 = vmatprep.subr.bf16.mxu0 0
    %647 = vmatpush1.bf16.msra.mxu0 0
    %648 = vmatprep.subr.bf16.mxu0 0
    %649 = vmatpush1.bf16.msra.mxu0 0
    %650 = vmatprep.subr.bf16.mxu0 0
    %651 = vmatpush1.bf16.msra.mxu0 0
    %652 = vmatprep.subr.bf16.mxu0 0
    %653 = vmatpush1.bf16.msra.mxu0 0
    %654 = vmatprep.subr.bf16.mxu0 0
    %655 = vmatpush1.bf16.msra.mxu0 0
    %656 = vmatprep.subr.bf16.mxu0 0
    %657 = vmatpush1.bf16.msra.mxu0 %v637
    %658 = vmatprep.subr.bf16.mxu0 0
    %659 = vmatpush2.bf16.msra.mxu0 0
    %660 = vmatprep.subr.bf16.mxu0 0
    %661 = vmatpush2.bf16.msra.mxu0 0
    %662 = vmatprep.subr.bf16.mxu0 0
    %663 = vmatpush2.bf16.msra.mxu0 0
    %664 = vmatprep.subr.bf16.mxu0 0
    %665 = vmatpush2.bf16.msra.mxu0 0
    %666 = vmatprep.subr.bf16.mxu0 0
    %667 = vmatpush2.bf16.msra.mxu0 0
    %668 = vmatprep.subr.bf16.mxu0 0
    %669 = vmatpush2.bf16.msra.mxu0 0
    %670 = vmatprep.subr.bf16.mxu0 0
    %671 = vmatpush2.bf16.msra.mxu0 0
    %672 = vmatprep.subr.bf16.mxu0 0
    %673 = vmatpush2.bf16.msra.mxu0 0
    %674 = vmatprep.mubr.bf16.mxu0 0
    %675 = vmatmul.mubr.bf16.gmra.mxu0 %v640
    %v676 = vpop.f32.mrf.mxu0
    %v677 = vadd.f32 0.0, %v676
    %v678 = vpop.f32.mrf.mxu0
    %v679 = vpop.f32.mrf.mxu0
    %v680 = vadd.f32 0.0, %v679
    %v681 = vpop.f32.mrf.mxu0
    %682 = vdwg.mxu0
    %685 = vrot.lane.b32.xlu0 %v677, 8
    %v686 = vpop.permute.xlu0 %685
    %687 = vrot.lane.b32.xlu0 %v680, 8
    %v688 = vpop.permute.xlu0 %687
    %vm691 = vcmask 130112
    %692 = vst.msk [vmem:[#allocation2] sm:$0xff] %vm691, %v686
    %693 = vst.msk [vmem:[#allocation2 + $0x8] sm:$0xff] %vm691, %v688
    %694 = vrot.lane.b32.xlu0 %v438, 112
    %v695 = vpop.permute.xlu0 %694
    %696 = vrot.lane.b32.xlu0 %v438, 80
    %v697 = vpop.permute.xlu0 %696
    %v699 = vsel %vm123, %v695, 0
    %v702 = vsel %vm123, %v697, 0
    %704 = vmatprep.subr.bf16.mxu0 0
    %705 = vmatpush1.bf16.xpose.msra.mxu0 0
    %706 = vmatprep.subr.bf16.mxu0 0
    %707 = vmatpush1.bf16.xpose.msra.mxu0 0
    %708 = vmatprep.subr.bf16.mxu0 0
    %709 = vmatpush1.bf16.xpose.msra.mxu0 0
    %710 = vmatprep.subr.bf16.mxu0 0
    %711 = vmatpush1.bf16.xpose.msra.mxu0 0
    %712 = vmatprep.subr.bf16.mxu0 0
    %713 = vmatpush1.bf16.xpose.msra.mxu0 0
    %714 = vmatprep.subr.bf16.mxu0 0
    %715 = vmatpush1.bf16.xpose.msra.mxu0 0
    %716 = vmatprep.subr.bf16.mxu0 0
    %717 = vmatpush1.bf16.xpose.msra.mxu0 0
    %718 = vmatprep.subr.bf16.mxu0 0
    %719 = vmatpush1.bf16.xpose.msra.mxu0 %v702
    %720 = vmatprep.subr.bf16.mxu0 0
    %721 = vmatpush2.bf16.xpose.msra.mxu0 0
    %722 = vmatprep.subr.bf16.mxu0 0
    %723 = vmatpush2.bf16.xpose.msra.mxu0 0
    %724 = vmatprep.subr.bf16.mxu0 0
    %725 = vmatpush2.bf16.xpose.msra.mxu0 0
    %726 = vmatprep.subr.bf16.mxu0 0
    %727 = vmatpush2.bf16.xpose.msra.mxu0 0
    %728 = vmatprep.subr.bf16.mxu0 0
    %729 = vmatpush2.bf16.xpose.msra.mxu0 0
    %730 = vmatprep.subr.bf16.mxu0 0
    %731 = vmatpush2.bf16.xpose.msra.mxu0 0
    %732 = vmatprep.subr.bf16.mxu0 0
    %733 = vmatpush2.bf16.xpose.msra.mxu0 0
    %734 = vmatprep.subr.bf16.mxu0 0
    %735 = vmatpush2.bf16.xpose.msra.mxu0 0
    %736 = vmatprep.mubr.bf16.mxu0 0
    %737 = vmatmul.mubr.bf16.gmra.mxu0 %v699
    %v738 = vpop.f32.mrf.mxu0
    %v739 = vadd.f32 %v368, %v738
    %v740 = vpop.f32.mrf.mxu0
    %v741 = vpop.f32.mrf.mxu0
    %v742 = vadd.f32 %v369, %v741
    %v743 = vpop.f32.mrf.mxu0
    %744 = vdwg.mxu0
    %v745 = vsel %vm489, %v739, -inf
    %746 = vmax.xlane.f32.xlu0 %v745
    %v747 = vpop.xlane.xlu0 %746
    %v748 = vsel %vm489, %v742, -inf
    %749 = vmax.xlane.f32.xlu0 %v748
    %v750 = vpop.xlane.xlu0 %749
    %v751 = vsub.f32 %v739, %v747
    %v752 = vsub.f32 %v742, %v750
    %v753 = vmul.f32 %v751, 1.442695
    %v754 = vpow.pop %v753
    %v755 = vmul.f32 %v752, 1.442695
    %v756 = vpow.pop %v755
    %v757 = vsel %vm489, %v754, 0.0
    %758 = vadd.xlane.f32.xlu0 %v757
    %v759 = vpop.xlane.xlu0 %758
    %v760 = vsel %vm489, %v756, 0.0
    %761 = vadd.xlane.f32.xlu0 %v760
    %v762 = vpop.xlane.xlu0 %761
    %v763 = vrcp.pop %v759
    %v764 = vmul.f32 %v754, %v763
    %v765 = vrcp.pop %v762
    %v766 = vmul.f32 %v756, %v765
    %v767 = vpack.c.bf16 %v766, %v764
    %768 = vrot.lane.b32.xlu0 %v438, 48
    %v769 = vpop.permute.xlu0 %768
    %v772 = vsel %vm489, %v767, 0
    %774 = vmatprep.subr.bf16.mxu0 0
    %775 = vmatpush1.bf16.msra.mxu0 0
    %776 = vmatprep.subr.bf16.mxu0 0
    %777 = vmatpush1.bf16.msra.mxu0 0
    %778 = vmatprep.subr.bf16.mxu0 0
    %779 = vmatpush1.bf16.msra.mxu0 0
    %780 = vmatprep.subr.bf16.mxu0 0
    %781 = vmatpush1.bf16.msra.mxu0 0
    %782 = vmatprep.subr.bf16.mxu0 0
    %783 = vmatpush1.bf16.msra.mxu0 0
    %784 = vmatprep.subr.bf16.mxu0 0
    %785 = vmatpush1.bf16.msra.mxu0 0
    %786 = vmatprep.subr.bf16.mxu0 0
    %787 = vmatpush1.bf16.msra.mxu0 0
    %788 = vmatprep.subr.bf16.mxu0 0
    %789 = vmatpush1.bf16.msra.mxu0 %v769
    %790 = vmatprep.subr.bf16.mxu0 0
    %791 = vmatpush2.bf16.msra.mxu0 0
    %792 = vmatprep.subr.bf16.mxu0 0
    %793 = vmatpush2.bf16.msra.mxu0 0
    %794 = vmatprep.subr.bf16.mxu0 0
    %795 = vmatpush2.bf16.msra.mxu0 0
    %796 = vmatprep.subr.bf16.mxu0 0
    %797 = vmatpush2.bf16.msra.mxu0 0
    %798 = vmatprep.subr.bf16.mxu0 0
    %799 = vmatpush2.bf16.msra.mxu0 0
    %800 = vmatprep.subr.bf16.mxu0 0
    %801 = vmatpush2.bf16.msra.mxu0 0
    %802 = vmatprep.subr.bf16.mxu0 0
    %803 = vmatpush2.bf16.msra.mxu0 0
    %804 = vmatprep.subr.bf16.mxu0 0
    %805 = vmatpush2.bf16.msra.mxu0 0
    %806 = vmatprep.mubr.bf16.mxu0 0
    %807 = vmatmul.mubr.bf16.gmra.mxu0 %v772
    %v808 = vpop.f32.mrf.mxu0
    %v809 = vadd.f32 0.0, %v808
    %v810 = vpop.f32.mrf.mxu0
    %v811 = vpop.f32.mrf.mxu0
    %v812 = vadd.f32 0.0, %v811
    %v813 = vpop.f32.mrf.mxu0
    %814 = vdwg.mxu0
    %817 = vrot.lane.b32.xlu0 %v809, 16
    %v818 = vpop.permute.xlu0 %817
    %819 = vrot.lane.b32.xlu0 %v812, 16
    %v820 = vpop.permute.xlu0 %819
    %vm823 = vcmask 195712
    %824 = vst.msk [vmem:[#allocation2] sm:$0xff] %vm823, %v818
    %825 = vst.msk [vmem:[#allocation2 + $0x8] sm:$0xff] %vm823, %v820
    %826 = vrot.lane.b32.xlu0 %v438, 104
    %v827 = vpop.permute.xlu0 %826
    %828 = vrot.lane.b32.xlu0 %v438, 72
    %v829 = vpop.permute.xlu0 %828
    %v831 = vsel %vm123, %v827, 0
    %v834 = vsel %vm123, %v829, 0
    %836 = vmatprep.subr.bf16.mxu0 0
    %837 = vmatpush1.bf16.xpose.msra.mxu0 0
    %838 = vmatprep.subr.bf16.mxu0 0
    %839 = vmatpush1.bf16.xpose.msra.mxu0 0
    %840 = vmatprep.subr.bf16.mxu0 0
    %841 = vmatpush1.bf16.xpose.msra.mxu0 0
    %842 = vmatprep.subr.bf16.mxu0 0
    %843 = vmatpush1.bf16.xpose.msra.mxu0 0
    %844 = vmatprep.subr.bf16.mxu0 0
    %845 = vmatpush1.bf16.xpose.msra.mxu0 0
    %846 = vmatprep.subr.bf16.mxu0 0
    %847 = vmatpush1.bf16.xpose.msra.mxu0 0
    %848 = vmatprep.subr.bf16.mxu0 0
    %849 = vmatpush1.bf16.xpose.msra.mxu0 0
    %850 = vmatprep.subr.bf16.mxu0 0
    %851 = vmatpush1.bf16.xpose.msra.mxu0 %v834
    %852 = vmatprep.subr.bf16.mxu0 0
    %853 = vmatpush2.bf16.xpose.msra.mxu0 0
    %854 = vmatprep.subr.bf16.mxu0 0
    %855 = vmatpush2.bf16.xpose.msra.mxu0 0
    %856 = vmatprep.subr.bf16.mxu0 0
    %857 = vmatpush2.bf16.xpose.msra.mxu0 0
    %858 = vmatprep.subr.bf16.mxu0 0
    %859 = vmatpush2.bf16.xpose.msra.mxu0 0
    %860 = vmatprep.subr.bf16.mxu0 0
    %861 = vmatpush2.bf16.xpose.msra.mxu0 0
    %862 = vmatprep.subr.bf16.mxu0 0
    %863 = vmatpush2.bf16.xpose.msra.mxu0 0
    %864 = vmatprep.subr.bf16.mxu0 0
    %865 = vmatpush2.bf16.xpose.msra.mxu0 0
    %866 = vmatprep.subr.bf16.mxu0 0
    %867 = vmatpush2.bf16.xpose.msra.mxu0 0
    %868 = vmatprep.mubr.bf16.mxu0 0
    %869 = vmatmul.mubr.bf16.gmra.mxu0 %v831
    %v870 = vpop.f32.mrf.mxu0
    %v871 = vadd.f32 %v368, %v870
    %v872 = vpop.f32.mrf.mxu0
    %v873 = vpop.f32.mrf.mxu0
    %v874 = vadd.f32 %v369, %v873
    %v875 = vpop.f32.mrf.mxu0
    %876 = vdwg.mxu0
    %v877 = vsel %vm489, %v871, -inf
    %878 = vmax.xlane.f32.xlu0 %v877
    %v879 = vpop.xlane.xlu0 %878
    %v880 = vsel %vm489, %v874, -inf
    %881 = vmax.xlane.f32.xlu0 %v880
    %v882 = vpop.xlane.xlu0 %881
    %v883 = vsub.f32 %v871, %v879
    %v884 = vsub.f32 %v874, %v882
    %v885 = vmul.f32 %v883, 1.442695
    %v886 = vpow.pop %v885
    %v887 = vmul.f32 %v884, 1.442695
    %v888 = vpow.pop %v887
    %v889 = vsel %vm489, %v886, 0.0
    %890 = vadd.xlane.f32.xlu0 %v889
    %v891 = vpop.xlane.xlu0 %890
    %v892 = vsel %vm489, %v888, 0.0
    %893 = vadd.xlane.f32.xlu0 %v892
    %v894 = vpop.xlane.xlu0 %893
    %v895 = vrcp.pop %v891
    %v896 = vmul.f32 %v886, %v895
    %v897 = vrcp.pop %v894
    %v898 = vmul.f32 %v888, %v897
    %v899 = vpack.c.bf16 %v898, %v896
    %900 = vrot.lane.b32.xlu0 %v438, 40
    %v901 = vpop.permute.xlu0 %900
    %v904 = vsel %vm489, %v899, 0
    %906 = vmatprep.subr.bf16.mxu0 0
    %907 = vmatpush1.bf16.msra.mxu0 0
    %908 = vmatprep.subr.bf16.mxu0 0
    %909 = vmatpush1.bf16.msra.mxu0 0
    %910 = vmatprep.subr.bf16.mxu0 0
    %911 = vmatpush1.bf16.msra.mxu0 0
    %912 = vmatprep.subr.bf16.mxu0 0
    %913 = vmatpush1.bf16.msra.mxu0 0
    %914 = vmatprep.subr.bf16.mxu0 0
    %915 = vmatpush1.bf16.msra.mxu0 0
    %916 = vmatprep.subr.bf16.mxu0 0
    %917 = vmatpush1.bf16.msra.mxu0 0
    %918 = vmatprep.subr.bf16.mxu0 0
    %919 = vmatpush1.bf16.msra.mxu0 0
    %920 = vmatprep.subr.bf16.mxu0 0
    %921 = vmatpush1.bf16.msra.mxu0 %v901
    %922 = vmatprep.subr.bf16.mxu0 0
    %923 = vmatpush2.bf16.msra.mxu0 0
    %924 = vmatprep.subr.bf16.mxu0 0
    %925 = vmatpush2.bf16.msra.mxu0 0
    %926 = vmatprep.subr.bf16.mxu0 0
    %927 = vmatpush2.bf16.msra.mxu0 0
    %928 = vmatprep.subr.bf16.mxu0 0
    %929 = vmatpush2.bf16.msra.mxu0 0
    %930 = vmatprep.subr.bf16.mxu0 0
    %931 = vmatpush2.bf16.msra.mxu0 0
    %932 = vmatprep.subr.bf16.mxu0 0
    %933 = vmatpush2.bf16.msra.mxu0 0
    %934 = vmatprep.subr.bf16.mxu0 0
    %935 = vmatpush2.bf16.msra.mxu0 0
    %936 = vmatprep.subr.bf16.mxu0 0
    %937 = vmatpush2.bf16.msra.mxu0 0
    %938 = vmatprep.mubr.bf16.mxu0 0
    %939 = vmatmul.mubr.bf16.gmra.mxu0 %v904
    %v940 = vpop.f32.mrf.mxu0
    %v941 = vadd.f32 0.0, %v940
    %v942 = vpop.f32.mrf.mxu0
    %v943 = vpop.f32.mrf.mxu0
    %v944 = vadd.f32 0.0, %v943
    %v945 = vpop.f32.mrf.mxu0
    %946 = vdwg.mxu0
    %949 = vrot.lane.b32.xlu0 %v941, 24
    %v950 = vpop.permute.xlu0 %949
    %951 = vrot.lane.b32.xlu0 %v944, 24
    %v952 = vpop.permute.xlu0 %951
    %vm955 = vcmask 261312
    %956 = vst.msk [vmem:[#allocation2] sm:$0xff] %vm955, %v950
    %957 = vst.msk [vmem:[#allocation2 + $0x8] sm:$0xff] %vm955, %v952
    %v958 = vld [vmem:[#allocation2] sm:$0xff]
    %v959 = vld [vmem:[#allocation2 + $0x8] sm:$0xff]
    %v960 = vpack.c.bf16 %v959, %v958
    %v961 = vld [vmem:[%s9] sm:$0xf]
    %v962 = vld [vmem:[%s9 + $0x4] sm:$0xf]
    %v963 = vld [vmem:[%s9 + $0x8] sm:$0xf]
    %v964 = vld [vmem:[%s9 + $0xc] sm:$0xf]
    %v965 = vld [vmem:[%s10] sm:$0x1]
    %v967 = vlaneseq
    %v968 = vshrl.u32 %v967, 7
    %v969 = vsub.s32 0, %v968
    %v970 = vrot.slane %v965, %v969
    %v976 = vunpack.c.l.b16 %v961
    %v977 = vunpack.c.l.b16 %v962
    %v978 = vunpack.c.l.b16 %v963
    %v979 = vunpack.c.l.b16 %v964
    %v980 = vpack.c.b16 %v977, %v976
    %v981 = vpack.c.b16 %v979, %v978
    %v985 = vsel %vm289, %v960, 0
    %987 = vmatprep.subr.bf16.mxu0 0
    %988 = vmatpush1.bf16.msra.mxu0 0
    %989 = vmatprep.subr.bf16.mxu0 0
    %990 = vmatpush1.bf16.msra.mxu0 0
    %991 = vmatprep.subr.bf16.mxu0 0
    %992 = vmatpush1.bf16.msra.mxu0 0
    %993 = vmatprep.subr.bf16.mxu0 0
    %994 = vmatpush1.bf16.msra.mxu0 0
    %995 = vmatprep.subr.bf16.mxu0 0
    %996 = vmatpush1.bf16.msra.mxu0 0
    %997 = vmatprep.subr.bf16.mxu0 0
    %998 = vmatpush1.bf16.msra.mxu0 0
    %999 = vmatprep.subr.bf16.mxu0 0
    %1000 = vmatpush1.bf16.msra.mxu0 %v981
    %1001 = vmatprep.subr.bf16.mxu0 0
    %1002 = vmatpush1.bf16.msra.mxu0 %v980
    %1003 = vmatprep.subr.bf16.mxu0 0
    %1004 = vmatpush2.bf16.msra.mxu0 0
    %1005 = vmatprep.subr.bf16.mxu0 0
    %1006 = vmatpush2.bf16.msra.mxu0 0
    %1007 = vmatprep.subr.bf16.mxu0 0
    %1008 = vmatpush2.bf16.msra.mxu0 0
    %1009 = vmatprep.subr.bf16.mxu0 0
    %1010 = vmatpush2.bf16.msra.mxu0 0
    %1011 = vmatprep.subr.bf16.mxu0 0
    %1012 = vmatpush2.bf16.msra.mxu0 0
    %1013 = vmatprep.subr.bf16.mxu0 0
    %1014 = vmatpush2.bf16.msra.mxu0 0
    %1015 = vmatprep.subr.bf16.mxu0 0
    %1016 = vmatpush2.bf16.msra.mxu0 0
    %1017 = vmatprep.subr.bf16.mxu0 0
    %1018 = vmatpush2.bf16.msra.mxu0 0
    %1019 = vmatprep.mubr.bf16.mxu0 0
    %1020 = vmatmul.mubr.bf16.gmra.mxu0 %v985
    %v1021 = vpop.f32.mrf.mxu0
    %v1022 = vadd.f32 %v970, %v1021
    %v1023 = vpop.f32.mrf.mxu0
    %v1024 = vpop.f32.mrf.mxu0
    %v1025 = vadd.f32 %v970, %v1024
    %v1026 = vpop.f32.mrf.mxu0
    %1027 = vdwg.mxu0
    %v1028 = vadd.f32 %v1022, %v331
    %v1029 = vadd.f32 %v1025, %v332
    %v1030 = vld [vmem:[%s11] sm:$0x1]
    %v1031 = vld [vmem:[%s12] sm:$0x1]
    %v1032 = vsel %vm289, %v1028, 0.0
    %1033 = vadd.xlane.f32.xlu0 %v1032
    %v1034 = vpop.xlane.xlu0 %1033
    %v1035 = vsel %vm289, %v1029, 0.0
    %1036 = vadd.xlane.f32.xlu0 %v1035
    %v1037 = vpop.xlane.xlu0 %1036
    %v1038 = vmul.f32 %v1034, %v296
    %v1039 = vmul.f32 %v1037, %v296
    %v1040 = vsub.f32 %v1028, %v1038
    %v1041 = vsub.f32 %v1029, %v1039
    %v1042 = vmul.f32 %v1040, %v1040
    %v1043 = vmul.f32 %v1041, %v1041
    %v1044 = vsel %vm289, %v1042, 0.0
    %1045 = vadd.xlane.f32.xlu0 %v1044
    %v1046 = vpop.xlane.xlu0 %1045
    %v1047 = vsel %vm289, %v1043, 0.0
    %1048 = vadd.xlane.f32.xlu0 %v1047
    %v1049 = vpop.xlane.xlu0 %1048
    %v1050 = vmul.f32 %v1046, %v296
    %v1051 = vmul.f32 %v1049, %v296
    %v1052 = vadd.f32 %v1050, 1e-12
    %v1053 = vadd.f32 %v1051, 1e-12
    %v1054 = vrsqrt.pop %v1052
    %v1055 = vrsqrt.pop %v1053
    %v1056 = vmul.f32 %v1040, %v1054
    %v1057 = vmul.f32 %v1041, %v1055
    %v1059 = vlaneseq
    %v1060 = vshrl.u32 %v1059, 7
    %v1061 = vsub.s32 0, %v1060
    %v1062 = vrot.slane %v1030, %v1061
    %v1064 = vmul.f32 %v1056, %v1062
    %v1065 = vmul.f32 %v1057, %v1062
    %v1067 = vlaneseq
    %v1068 = vshrl.u32 %v1067, 7
    %v1069 = vsub.s32 0, %v1068
    %v1070 = vrot.slane %v1031, %v1069
    %v1072 = vadd.f32 %v1064, %v1070
    %v1073 = vadd.f32 %v1065, %v1070
    %v1074 = vpack.c.bf16 %v1073, %v1072
    %v1075 = vld [vmem:[%s13] sm:$0xf]
    %v1076 = vld [vmem:[%s13 + $0x4] sm:$0xf]
    %v1077 = vld [vmem:[%s13 + $0x8] sm:$0xf]
    %v1078 = vld [vmem:[%s13 + $0xc] sm:$0xf]
    %v1079 = vld [vmem:[%s14] sm:$0x1]
    %v1081 = vlaneseq
    %v1082 = vshrl.u32 %v1081, 7
    %v1083 = vsub.s32 0, %v1082
    %v1084 = vrot.slane %v1079, %v1083
    %v1090 = vunpack.c.l.b16 %v1075
    %v1091 = vunpack.c.l.b16 %v1076
    %v1092 = vunpack.c.l.b16 %v1077
    %v1093 = vunpack.c.l.b16 %v1078
    %v1094 = vpack.c.b16 %v1091, %v1090
    %v1095 = vpack.c.b16 %v1093, %v1092
    %v1099 = vsel %vm289, %v1074, 0
    %1101 = vmatprep.subr.bf16.mxu0 0
    %1102 = vmatpush1.bf16.msra.mxu0 0
    %1103 = vmatprep.subr.bf16.mxu0 0
    %1104 = vmatpush1.bf16.msra.mxu0 0
    %1105 = vmatprep.subr.bf16.mxu0 0
    %1106 = vmatpush1.bf16.msra.mxu0 0
    %1107 = vmatprep.subr.bf16.mxu0 0
    %1108 = vmatpush1.bf16.msra.mxu0 0
    %1109 = vmatprep.subr.bf16.mxu0 0
    %1110 = vmatpush1.bf16.msra.mxu0 0
    %1111 = vmatprep.subr.bf16.mxu0 0
    %1112 = vmatpush1.bf16.msra.mxu0 0
    %1113 = vmatprep.subr.bf16.mxu0 0
    %1114 = vmatpush1.bf16.msra.mxu0 %v1095
    %1115 = vmatprep.subr.bf16.mxu0 0
    %1116 = vmatpush1.bf16.msra.mxu0 %v1094
    %1117 = vmatprep.subr.bf16.mxu0 0
    %1118 = vmatpush2.bf16.msra.mxu0 0
    %1119 = vmatprep.subr.bf16.mxu0 0
    %1120 = vmatpush2.bf16.msra.mxu0 0
    %1121 = vmatprep.subr.bf16.mxu0 0
    %1122 = vmatpush2.bf16.msra.mxu0 0
    %1123 = vmatprep.subr.bf16.mxu0 0
    %1124 = vmatpush2.bf16.msra.mxu0 0
    %1125 = vmatprep.subr.bf16.mxu0 0
    %1126 = vmatpush2.bf16.msra.mxu0 0
    %1127 = vmatprep.subr.bf16.mxu0 0
    %1128 = vmatpush2.bf16.msra.mxu0 0
    %1129 = vmatprep.subr.bf16.mxu0 0
    %1130 = vmatpush2.bf16.msra.mxu0 0
    %1131 = vmatprep.subr.bf16.mxu0 0
    %1132 = vmatpush2.bf16.msra.mxu0 0
    %1133 = vmatprep.mubr.bf16.mxu0 0
    %1134 = vmatmul.mubr.bf16.gmra.mxu0 %v1099
    %v1135 = vpop.f32.mrf.mxu0
    %v1136 = vadd.f32 %v1084, %v1135
    %v1137 = vpop.f32.mrf.mxu0
    %v1138 = vpop.f32.mrf.mxu0
    %v1139 = vadd.f32 %v1084, %v1138
    %v1140 = vpop.f32.mrf.mxu0
    %1141 = vdwg.mxu0
    %v1142 = vmul.f32 %v1136, 0.5
    %v1143 = vmul.f32 %v1139, 0.5
    %v1144 = vmul.f32 %v1136, 0.044715
    %v1145 = vmul.f32 %v1139, 0.044715
    %v1146 = vmul.f32 %v1144, %v1136
    %v1147 = vmul.f32 %v1145, %v1139
    %v1148 = vmul.f32 %v1146, %v1136
    %v1149 = vmul.f32 %v1147, %v1139
    %v1150 = vadd.f32 %v1136, %v1148
    %v1151 = vadd.f32 %v1139, %v1149
    %v1152 = vmul.f32 %v1150, 0.7978846
    %v1153 = vmul.f32 %v1151, 0.7978846
    %v1154 = vtanh.pop %v1152
    %v1155 = vtanh.pop %v1153
    %v1156 = vadd.f32 %v1154, 1.0
    %v1157 = vadd.f32 %v1155, 1.0
    %v1158 = vmul.f32 %v1142, %v1156
    %v1159 = vmul.f32 %v1143, %v1157
    %v1160 = vpack.c.bf16 %v1159, %v1158
    %v1161 = vld [vmem:[%s15] sm:$0xf]
    %v1162 = vld [vmem:[%s15 + $0x4] sm:$0xf]
    %v1163 = vld [vmem:[%s15 + $0x8] sm:$0xf]
    %v1164 = vld [vmem:[%s15 + $0xc] sm:$0xf]
    %v1165 = vld [vmem:[%s15 + $0x10] sm:$0xf]
    %v1166 = vld [vmem:[%s15 + $0x14] sm:$0xf]
    %v1167 = vld [vmem:[%s15 + $0x18] sm:$0xf]
    %v1168 = vld [vmem:[%s15 + $0x1c] sm:$0xf]
    %v1169 = vld [vmem:[%s16] sm:$0x1]
    %v1171 = vlaneseq
    %v1172 = vshrl.u32 %v1171, 7
    %v1173 = vsub.s32 0, %v1172
    %v1174 = vrot.slane %v1169, %v1173
    %v1184 = vunpack.c.l.b16 %v1161
    %v1185 = vunpack.c.l.b16 %v1162
    %v1186 = vunpack.c.l.b16 %v1163
    %v1187 = vunpack.c.l.b16 %v1164
    %v1188 = vunpack.c.l.b16 %v1165
    %v1189 = vunpack.c.l.b16 %v1166
    %v1190 = vunpack.c.l.b16 %v1167
    %v1191 = vunpack.c.l.b16 %v1168
    %v1192 = vpack.c.b16 %v1185, %v1184
    %v1193 = vpack.c.b16 %v1187, %v1186
    %v1194 = vpack.c.b16 %v1189, %v1188
    %v1195 = vpack.c.b16 %v1191, %v1190
    %vm1200 = vcmask 523264
    %v1202 = vsel %vm1200, %v1160, 0
    %1204 = vmatprep.subr.bf16.mxu0 0
    %1205 = vmatpush1.bf16.msra.mxu0 0
    %1206 = vmatprep.subr.bf16.mxu0 0
    %1207 = vmatpush1.bf16.msra.mxu0 0
    %1208 = vmatprep.subr.bf16.mxu0 0
    %1209 = vmatpush1.bf16.msra.mxu0 0
    %1210 = vmatprep.subr.bf16.mxu0 0
    %1211 = vmatpush1.bf16.msra.mxu0 0
    %1212 = vmatprep.subr.bf16.mxu0 0
    %1213 = vmatpush1.bf16.msra.mxu0 %v1195
    %1214 = vmatprep.subr.bf16.mxu0 0
    %1215 = vmatpush1.bf16.msra.mxu0 %v1194
    %1216 = vmatprep.subr.bf16.mxu0 0
    %1217 = vmatpush1.bf16.msra.mxu0 %v1193
    %1218 = vmatprep.subr.bf16.mxu0 0
    %1219 = vmatpush1.bf16.msra.mxu0 %v1192
    %1220 = vmatprep.subr.bf16.mxu0 0
    %1221 = vmatpush2.bf16.msra.mxu0 0
    %1222 = vmatprep.subr.bf16.mxu0 0
    %1223 = vmatpush2.bf16.msra.mxu0 0
    %1224 = vmatprep.subr.bf16.mxu0 0
    %1225 = vmatpush2.bf16.msra.mxu0 0
    %1226 = vmatprep.subr.bf16.mxu0 0
    %1227 = vmatpush2.bf16.msra.mxu0 0
    %1228 = vmatprep.subr.bf16.mxu0 0
    %1229 = vmatpush2.bf16.msra.mxu0 0
    %1230 = vmatprep.subr.bf16.mxu0 0
    %1231 = vmatpush2.bf16.msra.mxu0 0
    %1232 = vmatprep.subr.bf16.mxu0 0
    %1233 = vmatpush2.bf16.msra.mxu0 0
    %1234 = vmatprep.subr.bf16.mxu0 0
    %1235 = vmatpush2.bf16.msra.mxu0 0
    %1236 = vmatprep.mubr.bf16.mxu0 0
    %1237 = vmatmul.mubr.bf16.gmra.mxu0 %v1202
    %v1238 = vpop.f32.mrf.mxu0
    %v1239 = vadd.f32 %v1174, %v1238
    %v1240 = vpop.f32.mrf.mxu0
    %v1241 = vpop.f32.mrf.mxu0
    %v1242 = vadd.f32 %v1174, %v1241
    %v1243 = vpop.f32.mrf.mxu0
    %1244 = vdwg.mxu0
    %v1245 = vadd.f32 %v1239, %v1072
    %v1246 = vadd.f32 %v1242, %v1073
    %v1247 = vld [vmem:[%s17] sm:$0x1]
    %v1248 = vld [vmem:[%s18] sm:$0x1]
    %v1249 = vsel %vm289, %v1245, 0.0
    %1250 = vadd.xlane.f32.xlu0 %v1249
    %v1251 = vpop.xlane.xlu0 %1250
    %v1252 = vsel %vm289, %v1246, 0.0
    %1253 = vadd.xlane.f32.xlu0 %v1252
    %v1254 = vpop.xlane.xlu0 %1253
    %v1255 = vmul.f32 %v1251, %v296
    %v1256 = vmul.f32 %v1254, %v296
    %v1257 = vsub.f32 %v1245, %v1255
    %v1258 = vsub.f32 %v1246, %v1256
    %v1259 = vmul.f32 %v1257, %v1257
    %v1260 = vmul.f32 %v1258, %v1258
    %v1261 = vsel %vm289, %v1259, 0.0
    %1262 = vadd.xlane.f32.xlu0 %v1261
    %v1263 = vpop.xlane.xlu0 %1262
    %v1264 = vsel %vm289, %v1260, 0.0
    %1265 = vadd.xlane.f32.xlu0 %v1264
    %v1266 = vpop.xlane.xlu0 %1265
    %v1267 = vmul.f32 %v1263, %v296
    %v1268 = vmul.f32 %v1266, %v296
    %v1269 = vadd.f32 %v1267, 1e-12
    %v1270 = vadd.f32 %v1268, 1e-12
    %v1271 = vrsqrt.pop %v1269
    %v1272 = vrsqrt.pop %v1270
    %v1273 = vmul.f32 %v1257, %v1271
    %v1274 = vmul.f32 %v1258, %v1272
    %v1276 = vlaneseq
    %v1277 = vshrl.u32 %v1276, 7
    %v1278 = vsub.s32 0, %v1277
    %v1279 = vrot.slane %v1247, %v1278
    %v1281 = vmul.f32 %v1273, %v1279
    %v1282 = vmul.f32 %v1274, %v1279
    %v1284 = vlaneseq
    %v1285 = vshrl.u32 %v1284, 7
    %v1286 = vsub.s32 0, %v1285
    %v1287 = vrot.slane %v1248, %v1286
    %v1289 = vadd.f32 %v1281, %v1287
    %v1290 = vadd.f32 %v1282, %v1287
    %v1291 = vpack.c.bf16 %v1290, %v1289
    %s1292 = scalar_lea.vmem %s7, 16
    %v1293 = vld [vmem:[%s1292] sm:$0xf]
    %v1294 = vld [vmem:[%s1292 + $0x4] sm:$0xf]
    %v1295 = vld [vmem:[%s1292 + $0x8] sm:$0xf]
    %v1296 = vld [vmem:[%s1292 + $0xc] sm:$0xf]
    %s1297 = scalar_lea.vmem %s8, 1
    %v1298 = vld [vmem:[%s1297] sm:$0x1]
    %v1300 = vlaneseq
    %v1301 = vshrl.u32 %v1300, 7
    %v1302 = vsub.s32 0, %v1301
    %v1303 = vrot.slane %v1298, %v1302
    %v1309 = vunpack.c.l.b16 %v1293
    %v1310 = vunpack.c.l.b16 %v1294
    %v1311 = vunpack.c.l.b16 %v1295
    %v1312 = vunpack.c.l.b16 %v1296
    %v1313 = vpack.c.b16 %v1310, %v1309
    %v1314 = vpack.c.b16 %v1312, %v1311
    %v1318 = vsel %vm289, %v1291, 0
    %1320 = vmatprep.subr.bf16.mxu0 0
    %1321 = vmatpush1.bf16.msra.mxu0 0
    %1322 = vmatprep.subr.bf16.mxu0 0
    %1323 = vmatpush1.bf16.msra.mxu0 0
    %1324 = vmatprep.subr.bf16.mxu0 0
    %1325 = vmatpush1.bf16.msra.mxu0 0
    %1326 = vmatprep.subr.bf16.mxu0 0
    %1327 = vmatpush1.bf16.msra.mxu0 0
    %1328 = vmatprep.subr.bf16.mxu0 0
    %1329 = vmatpush1.bf16.msra.mxu0 0
    %1330 = vmatprep.subr.bf16.mxu0 0
    %1331 = vmatpush1.bf16.msra.mxu0 0
    %1332 = vmatprep.subr.bf16.mxu0 0
    %1333 = vmatpush1.bf16.msra.mxu0 %v1314
    %1334 = vmatprep.subr.bf16.mxu0 0
    %1335 = vmatpush1.bf16.msra.mxu0 %v1313
    %1336 = vmatprep.subr.bf16.mxu0 0
    %1337 = vmatpush2.bf16.msra.mxu0 0
    %1338 = vmatprep.subr.bf16.mxu0 0
    %1339 = vmatpush2.bf16.msra.mxu0 0
    %1340 = vmatprep.subr.bf16.mxu0 0
    %1341 = vmatpush2.bf16.msra.mxu0 0
    %1342 = vmatprep.subr.bf16.mxu0 0
    %1343 = vmatpush2.bf16.msra.mxu0 0
    %1344 = vmatprep.subr.bf16.mxu0 0
    %1345 = vmatpush2.bf16.msra.mxu0 0
    %1346 = vmatprep.subr.bf16.mxu0 0
    %1347 = vmatpush2.bf16.msra.mxu0 0
    %1348 = vmatprep.subr.bf16.mxu0 0
    %1349 = vmatpush2.bf16.msra.mxu0 0
    %1350 = vmatprep.subr.bf16.mxu0 0
    %1351 = vmatpush2.bf16.msra.mxu0 0
    %1352 = vmatprep.mubr.bf16.mxu0 0
    %1353 = vmatmul.mubr.bf16.gmra.mxu0 %v1318
    %v1354 = vpop.f32.mrf.mxu0
    %v1355 = vadd.f32 %v1303, %v1354
    %v1356 = vpop.f32.mrf.mxu0
    %v1357 = vpop.f32.mrf.mxu0
    %v1358 = vadd.f32 %v1303, %v1357
    %v1359 = vpop.f32.mrf.mxu0
    %1360 = vdwg.mxu0
    %v1361 = vpack.c.bf16 %v1358, %v1355
    %1363 = vrot.lane.b32.xlu0 %v1361, 96
    %v1364 = vpop.permute.xlu0 %1363
    %v1366 = vsel %vm123, %v1361, 0
    %v1369 = vsel %vm123, %v1364, 0
    %1371 = vmatprep.subr.bf16.mxu0 0
    %1372 = vmatpush1.bf16.xpose.msra.mxu0 0
    %1373 = vmatprep.subr.bf16.mxu0 0
    %1374 = vmatpush1.bf16.xpose.msra.mxu0 0
    %1375 = vmatprep.subr.bf16.mxu0 0
    %1376 = vmatpush1.bf16.xpose.msra.mxu0 0
    %1377 = vmatprep.subr.bf16.mxu0 0
    %1378 = vmatpush1.bf16.xpose.msra.mxu0 0
    %1379 = vmatprep.subr.bf16.mxu0 0
    %1380 = vmatpush1.bf16.xpose.msra.mxu0 0
    %1381 = vmatprep.subr.bf16.mxu0 0
    %1382 = vmatpush1.bf16.xpose.msra.mxu0 0
    %1383 = vmatprep.subr.bf16.mxu0 0
    %1384 = vmatpush1.bf16.xpose.msra.mxu0 0
    %1385 = vmatprep.subr.bf16.mxu0 0
    %1386 = vmatpush1.bf16.xpose.msra.mxu0 %v1369
    %1387 = vmatprep.subr.bf16.mxu0 0
    %1388 = vmatpush2.bf16.xpose.msra.mxu0 0
    %1389 = vmatprep.subr.bf16.mxu0 0
    %1390 = vmatpush2.bf16.xpose.msra.mxu0 0
    %1391 = vmatprep.subr.bf16.mxu0 0
    %1392 = vmatpush2.bf16.xpose.msra.mxu0 0
    %1393 = vmatprep.subr.bf16.mxu0 0
    %1394 = vmatpush2.bf16.xpose.msra.mxu0 0
    %1395 = vmatprep.subr.bf16.mxu0 0
    %1396 = vmatpush2.bf16.xpose.msra.mxu0 0
    %1397 = vmatprep.subr.bf16.mxu0 0
    %1398 = vmatpush2.bf16.xpose.msra.mxu0 0
    %1399 = vmatprep.subr.bf16.mxu0 0
    %1400 = vmatpush2.bf16.xpose.msra.mxu0 0
    %1401 = vmatprep.subr.bf16.mxu0 0
    %1402 = vmatpush2.bf16.xpose.msra.mxu0 0
    %1403 = vmatprep.mubr.bf16.mxu0 0
    %1404 = vmatmul.mubr.bf16.gmra.mxu0 %v1366
    %v1405 = vpop.f32.mrf.mxu0
    %v1406 = vadd.f32 %v368, %v1405
    %v1407 = vpop.f32.mrf.mxu0
    %v1408 = vpop.f32.mrf.mxu0
    %v1409 = vadd.f32 %v369, %v1408
    %v1410 = vpop.f32.mrf.mxu0
    %1411 = vdwg.mxu0
    %v1412 = vsel %vm489, %v1406, -inf
    %1413 = vmax.xlane.f32.xlu0 %v1412
    %v1414 = vpop.xlane.xlu0 %1413
    %v1415 = vsel %vm489, %v1409, -inf
    %1416 = vmax.xlane.f32.xlu0 %v1415
    %v1417 = vpop.xlane.xlu0 %1416
    %v1418 = vsub.f32 %v1406, %v1414
    %v1419 = vsub.f32 %v1409, %v1417
    %v1420 = vmul.f32 %v1418, 1.442695
    %v1421 = vpow.pop %v1420
    %v1422 = vmul.f32 %v1419, 1.442695
    %v1423 = vpow.pop %v1422
    %v1424 = vsel %vm489, %v1421, 0.0
    %1425 = vadd.xlane.f32.xlu0 %v1424
    %v1426 = vpop.xlane.xlu0 %1425
    %v1427 = vsel %vm489, %v1423, 0.0
    %1428 = vadd.xlane.f32.xlu0 %v1427
    %v1429 = vpop.xlane.xlu0 %1428
    %v1430 = vrcp.pop %v1426
    %v1431 = vmul.f32 %v1421, %v1430
    %v1432 = vrcp.pop %v1429
    %v1433 = vmul.f32 %v1423, %v1432
    %v1434 = vpack.c.bf16 %v1433, %v1431
    %1435 = vrot.lane.b32.xlu0 %v1361, 64
    %v1436 = vpop.permute.xlu0 %1435
    %v1439 = vsel %vm489, %v1434, 0
    %1441 = vmatprep.subr.bf16.mxu0 0
    %1442 = vmatpush1.bf16.msra.mxu0 0
    %1443 = vmatprep.subr.bf16.mxu0 0
    %1444 = vmatpush1.bf16.msra.mxu0 0
    %1445 = vmatprep.subr.bf16.mxu0 0
    %1446 = vmatpush1.bf16.msra.mxu0 0
    %1447 = vmatprep.subr.bf16.mxu0 0
    %1448 = vmatpush1.bf16.msra.mxu0 0
    %1449 = vmatprep.subr.bf16.mxu0 0
    %1450 = vmatpush1.bf16.msra.mxu0 0
    %1451 = vmatprep.subr.bf16.mxu0 0
    %1452 = vmatpush1.bf16.msra.mxu0 0
    %1453 = vmatprep.subr.bf16.mxu0 0
    %1454 = vmatpush1.bf16.msra.mxu0 0
    %1455 = vmatprep.subr.bf16.mxu0 0
    %1456 = vmatpush1.bf16.msra.mxu0 %v1436
    %1457 = vmatprep.subr.bf16.mxu0 0
    %1458 = vmatpush2.bf16.msra.mxu0 0
    %1459 = vmatprep.subr.bf16.mxu0 0
    %1460 = vmatpush2.bf16.msra.mxu0 0
    %1461 = vmatprep.subr.bf16.mxu0 0
    %1462 = vmatpush2.bf16.msra.mxu0 0
    %1463 = vmatprep.subr.bf16.mxu0 0
    %1464 = vmatpush2.bf16.msra.mxu0 0
    %1465 = vmatprep.subr.bf16.mxu0 0
    %1466 = vmatpush2.bf16.msra.mxu0 0
    %1467 = vmatprep.subr.bf16.mxu0 0
    %1468 = vmatpush2.bf16.msra.mxu0 0
    %1469 = vmatprep.subr.bf16.mxu0 0
    %1470 = vmatpush2.bf16.msra.mxu0 0
    %1471 = vmatprep.subr.bf16.mxu0 0
    %1472 = vmatpush2.bf16.msra.mxu0 0
    %1473 = vmatprep.mubr.bf16.mxu0 0
    %1474 = vmatmul.mubr.bf16.gmra.mxu0 %v1439
    %v1475 = vpop.f32.mrf.mxu0
    %v1476 = vadd.f32 0.0, %v1475
    %v1477 = vpop.f32.mrf.mxu0
    %v1478 = vpop.f32.mrf.mxu0
    %v1479 = vadd.f32 0.0, %v1478
    %v1480 = vpop.f32.mrf.mxu0
    %1481 = vdwg.mxu0
    %1482 = vst.msk [vmem:[#allocation2] sm:$0xff] %vm123, %v1476
    %1483 = vst.msk [vmem:[#allocation2 + $0x8] sm:$0xff] %vm123, %v1479
    %1484 = vrot.lane.b32.xlu0 %v1361, 120
    %v1485 = vpop.permute.xlu0 %1484
    %1486 = vrot.lane.b32.xlu0 %v1361, 88
    %v1487 = vpop.permute.xlu0 %1486
    %v1489 = vsel %vm123, %v1485, 0
    %v1492 = vsel %vm123, %v1487, 0
    %1494 = vmatprep.subr.bf16.mxu0 0
    %1495 = vmatpush1.bf16.xpose.msra.mxu0 0
    %1496 = vmatprep.subr.bf16.mxu0 0
    %1497 = vmatpush1.bf16.xpose.msra.mxu0 0
    %1498 = vmatprep.subr.bf16.mxu0 0
    %1499 = vmatpush1.bf16.xpose.msra.mxu0 0
    %1500 = vmatprep.subr.bf16.mxu0 0
    %1501 = vmatpush1.bf16.xpose.msra.mxu0 0
    %1502 = vmatprep.subr.bf16.mxu0 0
    %1503 = vmatpush1.bf16.xpose.msra.mxu0 0
    %1504 = vmatprep.subr.bf16.mxu0 0
    %1505 = vmatpush1.bf16.xpose.msra.mxu0 0
    %1506 = vmatprep.subr.bf16.mxu0 0
    %1507 = vmatpush1.bf16.xpose.msra.mxu0 0
    %1508 = vmatprep.subr.bf16.mxu0 0
    %1509 = vmatpush1.bf16.xpose.msra.mxu0 %v1492
    %1510 = vmatprep.subr.bf16.mxu0 0
    %1511 = vmatpush2.bf16.xpose.msra.mxu0 0
    %1512 = vmatprep.subr.bf16.mxu0 0
    %1513 = vmatpush2.bf16.xpose.msra.mxu0 0
    %1514 = vmatprep.subr.bf16.mxu0 0
    %1515 = vmatpush2.bf16.xpose.msra.mxu0 0
    %1516 = vmatprep.subr.bf16.mxu0 0
    %1517 = vmatpush2.bf16.xpose.msra.mxu0 0
    %1518 = vmatprep.subr.bf16.mxu0 0
    %1519 = vmatpush2.bf16.xpose.msra.mxu0 0
    %1520 = vmatprep.subr.bf16.mxu0 0
    %1521 = vmatpush2.bf16.xpose.msra.mxu0 0
    %1522 = vmatprep.subr.bf16.mxu0 0
    %1523 = vmatpush2.bf16.xpose.msra.mxu0 0
    %1524 = vmatprep.subr.bf16.mxu0 0
    %1525 = vmatpush2.bf16.xpose.msra.mxu0 0
    %1526 = vmatprep.mubr.bf16.mxu0 0
    %1527 = vmatmul.mubr.bf16.gmra.mxu0 %v1489
    %v1528 = vpop.f32.mrf.mxu0
    %v1529 = vadd.f32 %v368, %v1528
    %v1530 = vpop.f32.mrf.mxu0
    %v1531 = vpop.f32.mrf.mxu0
    %v1532 = vadd.f32 %v369, %v1531
    %v1533 = vpop.f32.mrf.mxu0
    %1534 = vdwg.mxu0
    %v1535 = vsel %vm489, %v1529, -inf
    %1536 = vmax.xlane.f32.xlu0 %v1535
    %v1537 = vpop.xlane.xlu0 %1536
    %v1538 = vsel %vm489, %v1532, -inf
    %1539 = vmax.xlane.f32.xlu0 %v1538
    %v1540 = vpop.xlane.xlu0 %1539
    %v1541 = vsub.f32 %v1529, %v1537
    %v1542 = vsub.f32 %v1532, %v1540
    %v1543 = vmul.f32 %v1541, 1.442695
    %v1544 = vpow.pop %v1543
    %v1545 = vmul.f32 %v1542, 1.442695
    %v1546 = vpow.pop %v1545
    %v1547 = vsel %vm489, %v1544, 0.0
    %1548 = vadd.xlane.f32.xlu0 %v1547
    %v1549 = vpop.xlane.xlu0 %1548
    %v1550 = vsel %vm489, %v1546, 0.0
    %1551 = vadd.xlane.f32.xlu0 %v1550
    %v1552 = vpop.xlane.xlu0 %1551
    %v1553 = vrcp.pop %v1549
    %v1554 = vmul.f32 %v1544, %v1553
    %v1555 = vrcp.pop %v1552
    %v1556 = vmul.f32 %v1546, %v1555
    %v1557 = vpack.c.bf16 %v1556, %v1554
    %1558 = vrot.lane.b32.xlu0 %v1361, 56
    %v1559 = vpop.permute.xlu0 %1558
    %v1562 = vsel %vm489, %v1557, 0
    %1564 = vmatprep.subr.bf16.mxu0 0
    %1565 = vmatpush1.bf16.msra.mxu0 0
    %1566 = vmatprep.subr.bf16.mxu0 0
    %1567 = vmatpush1.bf16.msra.mxu0 0
    %1568 = vmatprep.subr.bf16.mxu0 0
    %1569 = vmatpush1.bf16.msra.mxu0 0
    %1570 = vmatprep.subr.bf16.mxu0 0
    %1571 = vmatpush1.bf16.msra.mxu0 0
    %1572 = vmatprep.subr.bf16.mxu0 0
    %1573 = vmatpush1.bf16.msra.mxu0 0
    %1574 = vmatprep.subr.bf16.mxu0 0
    %1575 = vmatpush1.bf16.msra.mxu0 0
    %1576 = vmatprep.subr.bf16.mxu0 0
    %1577 = vmatpush1.bf16.msra.mxu0 0
    %1578 = vmatprep.subr.bf16.mxu0 0
    %1579 = vmatpush1.bf16.msra.mxu0 %v1559
    %1580 = vmatprep.subr.bf16.mxu0 0
    %1581 = vmatpush2.bf16.msra.mxu0 0
    %1582 = vmatprep.subr.bf16.mxu0 0
    %1583 = vmatpush2.bf16.msra.mxu0 0
    %1584 = vmatprep.subr.bf16.mxu0 0
    %1585 = vmatpush2.bf16.msra.mxu0 0
    %1586 = vmatprep.subr.bf16.mxu0 0
    %1587 = vmatpush2.bf16.msra.mxu0 0
    %1588 = vmatprep.subr.bf16.mxu0 0
    %1589 = vmatpush2.bf16.msra.mxu0 0
    %1590 = vmatprep.subr.bf16.mxu0 0
    %1591 = vmatpush2.bf16.msra.mxu0 0
    %1592 = vmatprep.subr.bf16.mxu0 0
    %1593 = vmatpush2.bf16.msra.mxu0 0
    %1594 = vmatprep.subr.bf16.mxu0 0
    %1595 = vmatpush2.bf16.msra.mxu0 0
    %1596 = vmatprep.mubr.bf16.mxu0 0
    %1597 = vmatmul.mubr.bf16.gmra.mxu0 %v1562
    %v1598 = vpop.f32.mrf.mxu0
    %v1599 = vadd.f32 0.0, %v1598
    %v1600 = vpop.f32.mrf.mxu0
    %v1601 = vpop.f32.mrf.mxu0
    %v1602 = vadd.f32 0.0, %v1601
    %v1603 = vpop.f32.mrf.mxu0
    %1604 = vdwg.mxu0
    %1607 = vrot.lane.b32.xlu0 %v1599, 8
    %v1608 = vpop.permute.xlu0 %1607
    %1609 = vrot.lane.b32.xlu0 %v1602, 8
    %v1610 = vpop.permute.xlu0 %1609
    %1613 = vst.msk [vmem:[#allocation2] sm:$0xff] %vm691, %v1608
    %1614 = vst.msk [vmem:[#allocation2 + $0x8] sm:$0xff] %vm691, %v1610
    %1615 = vrot.lane.b32.xlu0 %v1361, 112
    %v1616 = vpop.permute.xlu0 %1615
    %1617 = vrot.lane.b32.xlu0 %v1361, 80
    %v1618 = vpop.permute.xlu0 %1617
    %v1620 = vsel %vm123, %v1616, 0
    %v1623 = vsel %vm123, %v1618, 0
    %1625 = vmatprep.subr.bf16.mxu0 0
    %1626 = vmatpush1.bf16.xpose.msra.mxu0 0
    %1627 = vmatprep.subr.bf16.mxu0 0
    %1628 = vmatpush1.bf16.xpose.msra.mxu0 0
    %1629 = vmatprep.subr.bf16.mxu0 0
    %1630 = vmatpush1.bf16.xpose.msra.mxu0 0
    %1631 = vmatprep.subr.bf16.mxu0 0
    %1632 = vmatpush1.bf16.xpose.msra.mxu0 0
    %1633 = vmatprep.subr.bf16.mxu0 0
    %1634 = vmatpush1.bf16.xpose.msra.mxu0 0
    %1635 = vmatprep.subr.bf16.mxu0 0
    %1636 = vmatpush1.bf16.xpose.msra.mxu0 0
    %1637 = vmatprep.subr.bf16.mxu0 0
    %1638 = vmatpush1.bf16.xpose.msra.mxu0 0
    %1639 = vmatprep.subr.bf16.mxu0 0
    %1640 = vmatpush1.bf16.xpose.msra.mxu0 %v1623
    %1641 = vmatprep.subr.bf16.mxu0 0
    %1642 = vmatpush2.bf16.xpose.msra.mxu0 0
    %1643 = vmatprep.subr.bf16.mxu0 0
    %1644 = vmatpush2.bf16.xpose.msra.mxu0 0
    %1645 = vmatprep.subr.bf16.mxu0 0
    %1646 = vmatpush2.bf16.xpose.msra.mxu0 0
    %1647 = vmatprep.subr.bf16.mxu0 0
    %1648 = vmatpush2.bf16.xpose.msra.mxu0 0
    %1649 = vmatprep.subr.bf16.mxu0 0
    %1650 = vmatpush2.bf16.xpose.msra.mxu0 0
    %1651 = vmatprep.subr.bf16.mxu0 0
    %1652 = vmatpush2.bf16.xpose.msra.mxu0 0
    %1653 = vmatprep.subr.bf16.mxu0 0
    %1654 = vmatpush2.bf16.xpose.msra.mxu0 0
    %1655 = vmatprep.subr.bf16.mxu0 0
    %1656 = vmatpush2.bf16.xpose.msra.mxu0 0
    %1657 = vmatprep.mubr.bf16.mxu0 0
    %1658 = vmatmul.mubr.bf16.gmra.mxu0 %v1620
    %v1659 = vpop.f32.mrf.mxu0
    %v1660 = vadd.f32 %v368, %v1659
    %v1661 = vpop.f32.mrf.mxu0
    %v1662 = vpop.f32.mrf.mxu0
    %v1663 = vadd.f32 %v369, %v1662
    %v1664 = vpop.f32.mrf.mxu0
    %1665 = vdwg.mxu0
    %v1666 = vsel %vm489, %v1660, -inf
    %1667 = vmax.xlane.f32.xlu0 %v1666
    %v1668 = vpop.xlane.xlu0 %1667
    %v1669 = vsel %vm489, %v1663, -inf
    %1670 = vmax.xlane.f32.xlu0 %v1669
    %v1671 = vpop.xlane.xlu0 %1670
    %v1672 = vsub.f32 %v1660, %v1668
    %v1673 = vsub.f32 %v1663, %v1671
    %v1674 = vmul.f32 %v1672, 1.442695
    %v1675 = vpow.pop %v1674
    %v1676 = vmul.f32 %v1673, 1.442695
    %v1677 = vpow.pop %v1676
    %v1678 = vsel %vm489, %v1675, 0.0
    %1679 = vadd.xlane.f32.xlu0 %v1678
    %v1680 = vpop.xlane.xlu0 %1679
    %v1681 = vsel %vm489, %v1677, 0.0
    %1682 = vadd.xlane.f32.xlu0 %v1681
    %v1683 = vpop.xlane.xlu0 %1682
    %v1684 = vrcp.pop %v1680
    %v1685 = vmul.f32 %v1675, %v1684
    %v1686 = vrcp.pop %v1683
    %v1687 = vmul.f32 %v1677, %v1686
    %v1688 = vpack.c.bf16 %v1687, %v1685
    %1689 = vrot.lane.b32.xlu0 %v1361, 48
    %v1690 = vpop.permute.xlu0 %1689
    %v1693 = vsel %vm489, %v1688, 0
    %1695 = vmatprep.subr.bf16.mxu0 0
    %1696 = vmatpush1.bf16.msra.mxu0 0
    %1697 = vmatprep.subr.bf16.mxu0 0
    %1698 = vmatpush1.bf16.msra.mxu0 0
    %1699 = vmatprep.subr.bf16.mxu0 0
    %1700 = vmatpush1.bf16.msra.mxu0 0
    %1701 = vmatprep.subr.bf16.mxu0 0
    %1702 = vmatpush1.bf16.msra.mxu0 0
    %1703 = vmatprep.subr.bf16.mxu0 0
    %1704 = vmatpush1.bf16.msra.mxu0 0
    %1705 = vmatprep.subr.bf16.mxu0 0
    %1706 = vmatpush1.bf16.msra.mxu0 0
    %1707 = vmatprep.subr.bf16.mxu0 0
    %1708 = vmatpush1.bf16.msra.mxu0 0
    %1709 = vmatprep.subr.bf16.mxu0 0
    %1710 = vmatpush1.bf16.msra.mxu0 %v1690
    %1711 = vmatprep.subr.bf16.mxu0 0
    %1712 = vmatpush2.bf16.msra.mxu0 0
    %1713 = vmatprep.subr.bf16.mxu0 0
    %1714 = vmatpush2.bf16.msra.mxu0 0
    %1715 = vmatprep.subr.bf16.mxu0 0
    %1716 = vmatpush2.bf16.msra.mxu0 0
    %1717 = vmatprep.subr.bf16.mxu0 0
    %1718 = vmatpush2.bf16.msra.mxu0 0
    %1719 = vmatprep.subr.bf16.mxu0 0
    %1720 = vmatpush2.bf16.msra.mxu0 0
    %1721 = vmatprep.subr.bf16.mxu0 0
    %1722 = vmatpush2.bf16.msra.mxu0 0
    %1723 = vmatprep.subr.bf16.mxu0 0
    %1724 = vmatpush2.bf16.msra.mxu0 0
    %1725 = vmatprep.subr.bf16.mxu0 0
    %1726 = vmatpush2.bf16.msra.mxu0 0
    %1727 = vmatprep.mubr.bf16.mxu0 0
    %1728 = vmatmul.mubr.bf16.gmra.mxu0 %v1693
    %v1729 = vpop.f32.mrf.mxu0
    %v1730 = vadd.f32 0.0, %v1729
    %v1731 = vpop.f32.mrf.mxu0
    %v1732 = vpop.f32.mrf.mxu0
    %v1733 = vadd.f32 0.0, %v1732
    %v1734 = vpop.f32.mrf.mxu0
    %1735 = vdwg.mxu0
    %1738 = vrot.lane.b32.xlu0 %v1730, 16
    %v1739 = vpop.permute.xlu0 %1738
    %1740 = vrot.lane.b32.xlu0 %v1733, 16
    %v1741 = vpop.permute.xlu0 %1740
    %1744 = vst.msk [vmem:[#allocation2] sm:$0xff] %vm823, %v1739
    %1745 = vst.msk [vmem:[#allocation2 + $0x8] sm:$0xff] %vm823, %v1741
    %1746 = vrot.lane.b32.xlu0 %v1361, 104
    %v1747 = vpop.permute.xlu0 %1746
    %1748 = vrot.lane.b32.xlu0 %v1361, 72
    %v1749 = vpop.permute.xlu0 %1748
    %v1751 = vsel %vm123, %v1747, 0
    %v1754 = vsel %vm123, %v1749, 0
    %1756 = vmatprep.subr.bf16.mxu0 0
    %1757 = vmatpush1.bf16.xpose.msra.mxu0 0
    %1758 = vmatprep.subr.bf16.mxu0 0
    %1759 = vmatpush1.bf16.xpose.msra.mxu0 0
    %1760 = vmatprep.subr.bf16.mxu0 0
    %1761 = vmatpush1.bf16.xpose.msra.mxu0 0
    %1762 = vmatprep.subr.bf16.mxu0 0
    %1763 = vmatpush1.bf16.xpose.msra.mxu0 0
    %1764 = vmatprep.subr.bf16.mxu0 0
    %1765 = vmatpush1.bf16.xpose.msra.mxu0 0
    %1766 = vmatprep.subr.bf16.mxu0 0
    %1767 = vmatpush1.bf16.xpose.msra.mxu0 0
    %1768 = vmatprep.subr.bf16.mxu0 0
    %1769 = vmatpush1.bf16.xpose.msra.mxu0 0
    %1770 = vmatprep.subr.bf16.mxu0 0
    %1771 = vmatpush1.bf16.xpose.msra.mxu0 %v1754
    %1772 = vmatprep.subr.bf16.mxu0 0
    %1773 = vmatpush2.bf16.xpose.msra.mxu0 0
    %1774 = vmatprep.subr.bf16.mxu0 0
    %1775 = vmatpush2.bf16.xpose.msra.mxu0 0
    %1776 = vmatprep.subr.bf16.mxu0 0
    %1777 = vmatpush2.bf16.xpose.msra.mxu0 0
    %1778 = vmatprep.subr.bf16.mxu0 0
    %1779 = vmatpush2.bf16.xpose.msra.mxu0 0
    %1780 = vmatprep.subr.bf16.mxu0 0
    %1781 = vmatpush2.bf16.xpose.msra.mxu0 0
    %1782 = vmatprep.subr.bf16.mxu0 0
    %1783 = vmatpush2.bf16.xpose.msra.mxu0 0
    %1784 = vmatprep.subr.bf16.mxu0 0
    %1785 = vmatpush2.bf16.xpose.msra.mxu0 0
    %1786 = vmatprep.subr.bf16.mxu0 0
    %1787 = vmatpush2.bf16.xpose.msra.mxu0 0
    %1788 = vmatprep.mubr.bf16.mxu0 0
    %1789 = vmatmul.mubr.bf16.gmra.mxu0 %v1751
    %v1790 = vpop.f32.mrf.mxu0
    %v1791 = vadd.f32 %v368, %v1790
    %v1792 = vpop.f32.mrf.mxu0
    %v1793 = vpop.f32.mrf.mxu0
    %v1794 = vadd.f32 %v369, %v1793
    %v1795 = vpop.f32.mrf.mxu0
    %1796 = vdwg.mxu0
    %v1797 = vsel %vm489, %v1791, -inf
    %1798 = vmax.xlane.f32.xlu0 %v1797
    %v1799 = vpop.xlane.xlu0 %1798
    %v1800 = vsel %vm489, %v1794, -inf
    %1801 = vmax.xlane.f32.xlu0 %v1800
    %v1802 = vpop.xlane.xlu0 %1801
    %v1803 = vsub.f32 %v1791, %v1799
    %v1804 = vsub.f32 %v1794, %v1802
    %v1805 = vmul.f32 %v1803, 1.442695
    %v1806 = vpow.pop %v1805
    %v1807 = vmul.f32 %v1804, 1.442695
    %v1808 = vpow.pop %v1807
    %v1809 = vsel %vm489, %v1806, 0.0
    %1810 = vadd.xlane.f32.xlu0 %v1809
    %v1811 = vpop.xlane.xlu0 %1810
    %v1812 = vsel %vm489, %v1808, 0.0
    %1813 = vadd.xlane.f32.xlu0 %v1812
    %v1814 = vpop.xlane.xlu0 %1813
    %v1815 = vrcp.pop %v1811
    %v1816 = vmul.f32 %v1806, %v1815
    %v1817 = vrcp.pop %v1814
    %v1818 = vmul.f32 %v1808, %v1817
    %v1819 = vpack.c.bf16 %v1818, %v1816
    %1820 = vrot.lane.b32.xlu0 %v1361, 40
    %v1821 = vpop.permute.xlu0 %1820
    %v1824 = vsel %vm489, %v1819, 0
    %1826 = vmatprep.subr.bf16.mxu0 0
    %1827 = vmatpush1.bf16.msra.mxu0 0
    %1828 = vmatprep.subr.bf16.mxu0 0
    %1829 = vmatpush1.bf16.msra.mxu0 0
    %1830 = vmatprep.subr.bf16.mxu0 0
    %1831 = vmatpush1.bf16.msra.mxu0 0
    %1832 = vmatprep.subr.bf16.mxu0 0
    %1833 = vmatpush1.bf16.msra.mxu0 0
    %1834 = vmatprep.subr.bf16.mxu0 0
    %1835 = vmatpush1.bf16.msra.mxu0 0
    %1836 = vmatprep.subr.bf16.mxu0 0
    %1837 = vmatpush1.bf16.msra.mxu0 0
    %1838 = vmatprep.subr.bf16.mxu0 0
    %1839 = vmatpush1.bf16.msra.mxu0 0
    %1840 = vmatprep.subr.bf16.mxu0 0
    %1841 = vmatpush1.bf16.msra.mxu0 %v1821
    %1842 = vmatprep.subr.bf16.mxu0 0
    %1843 = vmatpush2.bf16.msra.mxu0 0
    %1844 = vmatprep.subr.bf16.mxu0 0
    %1845 = vmatpush2.bf16.msra.mxu0 0
    %1846 = vmatprep.subr.bf16.mxu0 0
    %1847 = vmatpush2.bf16.msra.mxu0 0
    %1848 = vmatprep.subr.bf16.mxu0 0
    %1849 = vmatpush2.bf16.msra.mxu0 0
    %1850 = vmatprep.subr.bf16.mxu0 0
    %1851 = vmatpush2.bf16.msra.mxu0 0
    %1852 = vmatprep.subr.bf16.mxu0 0
    %1853 = vmatpush2.bf16.msra.mxu0 0
    %1854 = vmatprep.subr.bf16.mxu0 0
    %1855 = vmatpush2.bf16.msra.mxu0 0
    %1856 = vmatprep.subr.bf16.mxu0 0
    %1857 = vmatpush2.bf16.msra.mxu0 0
    %1858 = vmatprep.mubr.bf16.mxu0 0
    %1859 = vmatmul.mubr.bf16.gmra.mxu0 %v1824
    %v1860 = vpop.f32.mrf.mxu0
    %v1861 = vadd.f32 0.0, %v1860
    %v1862 = vpop.f32.mrf.mxu0
    %v1863 = vpop.f32.mrf.mxu0
    %v1864 = vadd.f32 0.0, %v1863
    %v1865 = vpop.f32.mrf.mxu0
    %1866 = vdwg.mxu0
    %1869 = vrot.lane.b32.xlu0 %v1861, 24
    %v1870 = vpop.permute.xlu0 %1869
    %1871 = vrot.lane.b32.xlu0 %v1864, 24
    %v1872 = vpop.permute.xlu0 %1871
    %1875 = vst.msk [vmem:[#allocation2] sm:$0xff] %vm955, %v1870
    %1876 = vst.msk [vmem:[#allocation2 + $0x8] sm:$0xff] %vm955, %v1872
    %v1877 = vld [vmem:[#allocation2] sm:$0xff]
    %v1878 = vld [vmem:[#allocation2 + $0x8] sm:$0xff]
    %v1879 = vpack.c.bf16 %v1878, %v1877
    %s1880 = scalar_lea.vmem %s9, 16
    %v1881 = vld [vmem:[%s1880] sm:$0xf]
    %v1882 = vld [vmem:[%s1880 + $0x4] sm:$0xf]
    %v1883 = vld [vmem:[%s1880 + $0x8] sm:$0xf]
    %v1884 = vld [vmem:[%s1880 + $0xc] sm:$0xf]
    %s1885 = scalar_lea.vmem %s10, 1
    %v1886 = vld [vmem:[%s1885] sm:$0x1]
    %v1888 = vlaneseq
    %v1889 = vshrl.u32 %v1888, 7
    %v1890 = vsub.s32 0, %v1889
    %v1891 = vrot.slane %v1886, %v1890
    %v1897 = vunpack.c.l.b16 %v1881
    %v1898 = vunpack.c.l.b16 %v1882
    %v1899 = vunpack.c.l.b16 %v1883
    %v1900 = vunpack.c.l.b16 %v1884
    %v1901 = vpack.c.b16 %v1898, %v1897
    %v1902 = vpack.c.b16 %v1900, %v1899
    %v1906 = vsel %vm289, %v1879, 0
    %1908 = vmatprep.subr.bf16.mxu0 0
    %1909 = vmatpush1.bf16.msra.mxu0 0
    %1910 = vmatprep.subr.bf16.mxu0 0
    %1911 = vmatpush1.bf16.msra.mxu0 0
    %1912 = vmatprep.subr.bf16.mxu0 0
    %1913 = vmatpush1.bf16.msra.mxu0 0
    %1914 = vmatprep.subr.bf16.mxu0 0
    %1915 = vmatpush1.bf16.msra.mxu0 0
    %1916 = vmatprep.subr.bf16.mxu0 0
    %1917 = vmatpush1.bf16.msra.mxu0 0
    %1918 = vmatprep.subr.bf16.mxu0 0
    %1919 = vmatpush1.bf16.msra.mxu0 0
    %1920 = vmatprep.subr.bf16.mxu0 0
    %1921 = vmatpush1.bf16.msra.mxu0 %v1902
    %1922 = vmatprep.subr.bf16.mxu0 0
    %1923 = vmatpush1.bf16.msra.mxu0 %v1901
    %1924 = vmatprep.subr.bf16.mxu0 0
    %1925 = vmatpush2.bf16.msra.mxu0 0
    %1926 = vmatprep.subr.bf16.mxu0 0
    %1927 = vmatpush2.bf16.msra.mxu0 0
    %1928 = vmatprep.subr.bf16.mxu0 0
    %1929 = vmatpush2.bf16.msra.mxu0 0
    %1930 = vmatprep.subr.bf16.mxu0 0
    %1931 = vmatpush2.bf16.msra.mxu0 0
    %1932 = vmatprep.subr.bf16.mxu0 0
    %1933 = vmatpush2.bf16.msra.mxu0 0
    %1934 = vmatprep.subr.bf16.mxu0 0
    %1935 = vmatpush2.bf16.msra.mxu0 0
    %1936 = vmatprep.subr.bf16.mxu0 0
    %1937 = vmatpush2.bf16.msra.mxu0 0
    %1938 = vmatprep.subr.bf16.mxu0 0
    %1939 = vmatpush2.bf16.msra.mxu0 0
    %1940 = vmatprep.mubr.bf16.mxu0 0
    %1941 = vmatmul.mubr.bf16.gmra.mxu0 %v1906
    %v1942 = vpop.f32.mrf.mxu0
    %v1943 = vadd.f32 %v1891, %v1942
    %v1944 = vpop.f32.mrf.mxu0
    %v1945 = vpop.f32.mrf.mxu0
    %v1946 = vadd.f32 %v1891, %v1945
    %v1947 = vpop.f32.mrf.mxu0
    %1948 = vdwg.mxu0
    %v1949 = vadd.f32 %v1943, %v1289
    %v1950 = vadd.f32 %v1946, %v1290
    %s1951 = scalar_lea.vmem %s11, 1
    %v1952 = vld [vmem:[%s1951] sm:$0x1]
    %s1953 = scalar_lea.vmem %s12, 1
    %v1954 = vld [vmem:[%s1953] sm:$0x1]
    %v1955 = vsel %vm289, %v1949, 0.0
    %1956 = vadd.xlane.f32.xlu0 %v1955
    %v1957 = vpop.xlane.xlu0 %1956
    %v1958 = vsel %vm289, %v1950, 0.0
    %1959 = vadd.xlane.f32.xlu0 %v1958
    %v1960 = vpop.xlane.xlu0 %1959
    %v1961 = vmul.f32 %v1957, %v296
    %v1962 = vmul.f32 %v1960, %v296
    %v1963 = vsub.f32 %v1949, %v1961
    %v1964 = vsub.f32 %v1950, %v1962
    %v1965 = vmul.f32 %v1963, %v1963
    %v1966 = vmul.f32 %v1964, %v1964
    %v1967 = vsel %vm289, %v1965, 0.0
    %1968 = vadd.xlane.f32.xlu0 %v1967
    %v1969 = vpop.xlane.xlu0 %1968
    %v1970 = vsel %vm289, %v1966, 0.0
    %1971 = vadd.xlane.f32.xlu0 %v1970
    %v1972 = vpop.xlane.xlu0 %1971
    %v1973 = vmul.f32 %v1969, %v296
    %v1974 = vmul.f32 %v1972, %v296
    %v1975 = vadd.f32 %v1973, 1e-12
    %v1976 = vadd.f32 %v1974, 1e-12
    %v1977 = vrsqrt.pop %v1975
    %v1978 = vrsqrt.pop %v1976
    %v1979 = vmul.f32 %v1963, %v1977
    %v1980 = vmul.f32 %v1964, %v1978
    %v1982 = vlaneseq
    %v1983 = vshrl.u32 %v1982, 7
    %v1984 = vsub.s32 0, %v1983
    %v1985 = vrot.slane %v1952, %v1984
    %v1987 = vmul.f32 %v1979, %v1985
    %v1988 = vmul.f32 %v1980, %v1985
    %v1990 = vlaneseq
    %v1991 = vshrl.u32 %v1990, 7
    %v1992 = vsub.s32 0, %v1991
    %v1993 = vrot.slane %v1954, %v1992
    %v1995 = vadd.f32 %v1987, %v1993
    %v1996 = vadd.f32 %v1988, %v1993
    %v1997 = vpack.c.bf16 %v1996, %v1995
    %s1998 = scalar_lea.vmem %s13, 16
    %v1999 = vld [vmem:[%s1998] sm:$0xf]
    %v2000 = vld [vmem:[%s1998 + $0x4] sm:$0xf]
    %v2001 = vld [vmem:[%s1998 + $0x8] sm:$0xf]
    %v2002 = vld [vmem:[%s1998 + $0xc] sm:$0xf]
    %s2003 = scalar_lea.vmem %s14, 1
    %v2004 = vld [vmem:[%s2003] sm:$0x1]
    %v2006 = vlaneseq
    %v2007 = vshrl.u32 %v2006, 7
    %v2008 = vsub.s32 0, %v2007
    %v2009 = vrot.slane %v2004, %v2008
    %v2015 = vunpack.c.l.b16 %v1999
    %v2016 = vunpack.c.l.b16 %v2000
    %v2017 = vunpack.c.l.b16 %v2001
    %v2018 = vunpack.c.l.b16 %v2002
    %v2019 = vpack.c.b16 %v2016, %v2015
    %v2020 = vpack.c.b16 %v2018, %v2017
    %v2024 = vsel %vm289, %v1997, 0
    %2026 = vmatprep.subr.bf16.mxu0 0
    %2027 = vmatpush1.bf16.msra.mxu0 0
    %2028 = vmatprep.subr.bf16.mxu0 0
    %2029 = vmatpush1.bf16.msra.mxu0 0
    %2030 = vmatprep.subr.bf16.mxu0 0
    %2031 = vmatpush1.bf16.msra.mxu0 0
    %2032 = vmatprep.subr.bf16.mxu0 0
    %2033 = vmatpush1.bf16.msra.mxu0 0
    %2034 = vmatprep.subr.bf16.mxu0 0
    %2035 = vmatpush1.bf16.msra.mxu0 0
    %2036 = vmatprep.subr.bf16.mxu0 0
    %2037 = vmatpush1.bf16.msra.mxu0 0
    %2038 = vmatprep.subr.bf16.mxu0 0
    %2039 = vmatpush1.bf16.msra.mxu0 %v2020
    %2040 = vmatprep.subr.bf16.mxu0 0
    %2041 = vmatpush1.bf16.msra.mxu0 %v2019
    %2042 = vmatprep.subr.bf16.mxu0 0
    %2043 = vmatpush2.bf16.msra.mxu0 0
    %2044 = vmatprep.subr.bf16.mxu0 0
    %2045 = vmatpush2.bf16.msra.mxu0 0
    %2046 = vmatprep.subr.bf16.mxu0 0
    %2047 = vmatpush2.bf16.msra.mxu0 0
    %2048 = vmatprep.subr.bf16.mxu0 0
    %2049 = vmatpush2.bf16.msra.mxu0 0
    %2050 = vmatprep.subr.bf16.mxu0 0
    %2051 = vmatpush2.bf16.msra.mxu0 0
    %2052 = vmatprep.subr.bf16.mxu0 0
    %2053 = vmatpush2.bf16.msra.mxu0 0
    %2054 = vmatprep.subr.bf16.mxu0 0
    %2055 = vmatpush2.bf16.msra.mxu0 0
    %2056 = vmatprep.subr.bf16.mxu0 0
    %2057 = vmatpush2.bf16.msra.mxu0 0
    %2058 = vmatprep.mubr.bf16.mxu0 0
    %2059 = vmatmul.mubr.bf16.gmra.mxu0 %v2024
    %v2060 = vpop.f32.mrf.mxu0
    %v2061 = vadd.f32 %v2009, %v2060
    %v2062 = vpop.f32.mrf.mxu0
    %v2063 = vpop.f32.mrf.mxu0
    %v2064 = vadd.f32 %v2009, %v2063
    %v2065 = vpop.f32.mrf.mxu0
    %2066 = vdwg.mxu0
    %v2067 = vmul.f32 %v2061, 0.5
    %v2068 = vmul.f32 %v2064, 0.5
    %v2069 = vmul.f32 %v2061, 0.044715
    %v2070 = vmul.f32 %v2064, 0.044715
    %v2071 = vmul.f32 %v2069, %v2061
    %v2072 = vmul.f32 %v2070, %v2064
    %v2073 = vmul.f32 %v2071, %v2061
    %v2074 = vmul.f32 %v2072, %v2064
    %v2075 = vadd.f32 %v2061, %v2073
    %v2076 = vadd.f32 %v2064, %v2074
    %v2077 = vmul.f32 %v2075, 0.7978846
    %v2078 = vmul.f32 %v2076, 0.7978846
    %v2079 = vtanh.pop %v2077
    %v2080 = vtanh.pop %v2078
    %v2081 = vadd.f32 %v2079, 1.0
    %v2082 = vadd.f32 %v2080, 1.0
    %v2083 = vmul.f32 %v2067, %v2081
    %v2084 = vmul.f32 %v2068, %v2082
    %v2085 = vpack.c.bf16 %v2084, %v2083
    %s2086 = scalar_lea.vmem %s15, 32
    %v2087 = vld [vmem:[%s2086] sm:$0xf]
    %v2088 = vld [vmem:[%s2086 + $0x4] sm:$0xf]
    %v2089 = vld [vmem:[%s2086 + $0x8] sm:$0xf]
    %v2090 = vld [vmem:[%s2086 + $0xc] sm:$0xf]
    %v2091 = vld [vmem:[%s2086 + $0x10] sm:$0xf]
    %v2092 = vld [vmem:[%s2086 + $0x14] sm:$0xf]
    %v2093 = vld [vmem:[%s2086 + $0x18] sm:$0xf]
    %v2094 = vld [vmem:[%s2086 + $0x1c] sm:$0xf]
    %s2095 = scalar_lea.vmem %s16, 1
    %v2096 = vld [vmem:[%s2095] sm:$0x1]
    %v2098 = vlaneseq
    %v2099 = vshrl.u32 %v2098, 7
    %v2100 = vsub.s32 0, %v2099
    %v2101 = vrot.slane %v2096, %v2100
    %v2111 = vunpack.c.l.b16 %v2087
    %v2112 = vunpack.c.l.b16 %v2088
    %v2113 = vunpack.c.l.b16 %v2089
    %v2114 = vunpack.c.l.b16 %v2090
    %v2115 = vunpack.c.l.b16 %v2091
    %v2116 = vunpack.c.l.b16 %v2092
    %v2117 = vunpack.c.l.b16 %v2093
    %v2118 = vunpack.c.l.b16 %v2094
    %v2119 = vpack.c.b16 %v2112, %v2111
    %v2120 = vpack.c.b16 %v2114, %v2113
    %v2121 = vpack.c.b16 %v2116, %v2115
    %v2122 = vpack.c.b16 %v2118, %v2117
    %v2128 = vsel %vm1200, %v2085, 0
    %2130 = vmatprep.subr.bf16.mxu0 0
    %2131 = vmatpush1.bf16.msra.mxu0 0
    %2132 = vmatprep.subr.bf16.mxu0 0
    %2133 = vmatpush1.bf16.msra.mxu0 0
    %2134 = vmatprep.subr.bf16.mxu0 0
    %2135 = vmatpush1.bf16.msra.mxu0 0
    %2136 = vmatprep.subr.bf16.mxu0 0
    %2137 = vmatpush1.bf16.msra.mxu0 0
    %2138 = vmatprep.subr.bf16.mxu0 0
    %2139 = vmatpush1.bf16.msra.mxu0 %v2122
    %2140 = vmatprep.subr.bf16.mxu0 0
    %2141 = vmatpush1.bf16.msra.mxu0 %v2121
    %2142 = vmatprep.subr.bf16.mxu0 0
    %2143 = vmatpush1.bf16.msra.mxu0 %v2120
    %2144 = vmatprep.subr.bf16.mxu0 0
    %2145 = vmatpush1.bf16.msra.mxu0 %v2119
    %2146 = vmatprep.subr.bf16.mxu0 0
    %2147 = vmatpush2.bf16.msra.mxu0 0
    %2148 = vmatprep.subr.bf16.mxu0 0
    %2149 = vmatpush2.bf16.msra.mxu0 0
    %2150 = vmatprep.subr.bf16.mxu0 0
    %2151 = vmatpush2.bf16.msra.mxu0 0
    %2152 = vmatprep.subr.bf16.mxu0 0
    %2153 = vmatpush2.bf16.msra.mxu0 0
    %2154 = vmatprep.subr.bf16.mxu0 0
    %2155 = vmatpush2.bf16.msra.mxu0 0
    %2156 = vmatprep.subr.bf16.mxu0 0
    %2157 = vmatpush2.bf16.msra.mxu0 0
    %2158 = vmatprep.subr.bf16.mxu0 0
    %2159 = vmatpush2.bf16.msra.mxu0 0
    %2160 = vmatprep.subr.bf16.mxu0 0
    %2161 = vmatpush2.bf16.msra.mxu0 0
    %2162 = vmatprep.mubr.bf16.mxu0 0
    %2163 = vmatmul.mubr.bf16.gmra.mxu0 %v2128
    %v2164 = vpop.f32.mrf.mxu0
    %v2165 = vadd.f32 %v2101, %v2164
    %v2166 = vpop.f32.mrf.mxu0
    %v2167 = vpop.f32.mrf.mxu0
    %v2168 = vadd.f32 %v2101, %v2167
    %v2169 = vpop.f32.mrf.mxu0
    %2170 = vdwg.mxu0
    %v2171 = vadd.f32 %v2165, %v1995
    %v2172 = vadd.f32 %v2168, %v1996
    %s2173 = scalar_lea.vmem %s17, 1
    %v2174 = vld [vmem:[%s2173] sm:$0x1]
    %s2175 = scalar_lea.vmem %s18, 1
    %v2176 = vld [vmem:[%s2175] sm:$0x1]
    %v2177 = vsel %vm289, %v2171, 0.0
    %2178 = vadd.xlane.f32.xlu0 %v2177
    %v2179 = vpop.xlane.xlu0 %2178
    %v2180 = vsel %vm289, %v2172, 0.0
    %2181 = vadd.xlane.f32.xlu0 %v2180
    %v2182 = vpop.xlane.xlu0 %2181
    %v2183 = vmul.f32 %v2179, %v296
    %v2184 = vmul.f32 %v2182, %v296
    %v2185 = vsub.f32 %v2171, %v2183
    %v2186 = vsub.f32 %v2172, %v2184
    %v2187 = vmul.f32 %v2185, %v2185
    %v2188 = vmul.f32 %v2186, %v2186
    %v2189 = vsel %vm289, %v2187, 0.0
    %2190 = vadd.xlane.f32.xlu0 %v2189
    %v2191 = vpop.xlane.xlu0 %2190
    %v2192 = vsel %vm289, %v2188, 0.0
    %2193 = vadd.xlane.f32.xlu0 %v2192
    %v2194 = vpop.xlane.xlu0 %2193
    %v2195 = vmul.f32 %v2191, %v296
    %v2196 = vmul.f32 %v2194, %v296
    %v2197 = vadd.f32 %v2195, 1e-12
    %v2198 = vadd.f32 %v2196, 1e-12
    %v2199 = vrsqrt.pop %v2197
    %v2200 = vrsqrt.pop %v2198
    %v2201 = vmul.f32 %v2185, %v2199
    %v2202 = vmul.f32 %v2186, %v2200
    %v2204 = vlaneseq
    %v2205 = vshrl.u32 %v2204, 7
    %v2206 = vsub.s32 0, %v2205
    %v2207 = vrot.slane %v2174, %v2206
    %v2209 = vmul.f32 %v2201, %v2207
    %v2210 = vmul.f32 %v2202, %v2207
    %v2212 = vlaneseq
    %v2213 = vshrl.u32 %v2212, 7
    %v2214 = vsub.s32 0, %v2213
    %v2215 = vrot.slane %v2176, %v2214
    %v2217 = vadd.f32 %v2209, %v2215
    %v2218 = vadd.f32 %v2210, %v2215
    %2219 = vst.msk [vmem:[#allocation3] sm:$0xff] %vm289, %v2217
    %2220 = vst.msk [vmem:[#allocation3 + $0x8] sm:$0xff] %vm289, %v2218
    %v2221 = vld [vmem:[#allocation3] ss:$8 sm:$0x3]
    %v2222 = vpack.c.bf16 %v2221, %v2221
    %v2223 = vld [vmem:[%s19] sm:$0xf]
    %v2224 = vld [vmem:[%s19 + $0x4] sm:$0xf]
    %v2225 = vld [vmem:[%s19 + $0x8] sm:$0xf]
    %v2226 = vld [vmem:[%s19 + $0xc] sm:$0xf]
    %v2227 = vld [vmem:[%s20] sm:$0x1]
    %v2229 = vlaneseq
    %v2230 = vshrl.u32 %v2229, 7
    %v2231 = vsub.s32 0, %v2230
    %v2232 = vrot.slane %v2227, %v2231
    %v2238 = vunpack.c.l.b16 %v2223
    %v2239 = vunpack.c.l.b16 %v2224
    %v2240 = vunpack.c.l.b16 %v2225
    %v2241 = vunpack.c.l.b16 %v2226
    %v2242 = vpack.c.b16 %v2239, %v2238
    %v2243 = vpack.c.b16 %v2241, %v2240
    %v2247 = vsel %vm289, %v2222, 0
    %2249 = vmatprep.subr.bf16.mxu0 0
    %2250 = vmatpush1.bf16.msra.mxu0 0
    %2251 = vmatprep.subr.bf16.mxu0 0
    %2252 = vmatpush1.bf16.msra.mxu0 0
    %2253 = vmatprep.subr.bf16.mxu0 0
    %2254 = vmatpush1.bf16.msra.mxu0 0
    %2255 = vmatprep.subr.bf16.mxu0 0
    %2256 = vmatpush1.bf16.msra.mxu0 0
    %2257 = vmatprep.subr.bf16.mxu0 0
    %2258 = vmatpush1.bf16.msra.mxu0 0
    %2259 = vmatprep.subr.bf16.mxu0 0
    %2260 = vmatpush1.bf16.msra.mxu0 0
    %2261 = vmatprep.subr.bf16.mxu0 0
    %2262 = vmatpush1.bf16.msra.mxu0 %v2243
    %2263 = vmatprep.subr.bf16.mxu0 0
    %2264 = vmatpush1.bf16.msra.mxu0 %v2242
    %2265 = vmatprep.subr.bf16.mxu0 0
    %2266 = vmatpush2.bf16.msra.mxu0 0
    %2267 = vmatprep.subr.bf16.mxu0 0
    %2268 = vmatpush2.bf16.msra.mxu0 0
    %2269 = vmatprep.subr.bf16.mxu0 0
    %2270 = vmatpush2.bf16.msra.mxu0 0
    %2271 = vmatprep.subr.bf16.mxu0 0
    %2272 = vmatpush2.bf16.msra.mxu0 0
    %2273 = vmatprep.subr.bf16.mxu0 0
    %2274 = vmatpush2.bf16.msra.mxu0 0
    %2275 = vmatprep.subr.bf16.mxu0 0
    %2276 = vmatpush2.bf16.msra.mxu0 0
    %2277 = vmatprep.subr.bf16.mxu0 0
    %2278 = vmatpush2.bf16.msra.mxu0 0
    %2279 = vmatprep.subr.bf16.mxu0 0
    %2280 = vmatpush2.bf16.msra.mxu0 0
    %2281 = vmatprep.mubr.bf16.mxu0 0
    %2282 = vmatmul.mubr.bf16.gmra.mxu0 %v2247
    %v2283 = vpop.f32.mrf.mxu0
    %v2284 = vadd.f32 %v2232, %v2283
    %v2285 = vpop.f32.mrf.mxu0
    %v2286 = vpop.f32.mrf.mxu0
    %v2287 = vpop.f32.mrf.mxu0
    %2288 = vdwg.mxu0
    %v2289 = vtanh.pop %v2284
    %v2290 = vpack.c.bf16 %v2289, %v2289
    %v2291 = vld [vmem:[%s21] sm:$0xf]
    %v2292 = vld [vmem:[%s21 + $0x4] sm:$0xf]
    %v2293 = vld [vmem:[%s21 + $0x8] sm:$0xf]
    %v2294 = vld [vmem:[%s21 + $0xc] sm:$0xf]
    %v2295 = vld [vmem:[%s22] sm:$0x1]
    %v2297 = vlaneseq
    %v2298 = vshrl.u32 %v2297, 7
    %v2299 = vsub.s32 0, %v2298
    %v2300 = vrot.slane %v2295, %v2299
    %v2306 = vunpack.c.l.b16 %v2291
    %v2307 = vunpack.c.l.b16 %v2292
    %v2308 = vunpack.c.l.b16 %v2293
    %v2309 = vunpack.c.l.b16 %v2294
    %v2310 = vpack.c.b16 %v2307, %v2306
    %v2311 = vpack.c.b16 %v2309, %v2308
    %v2315 = vsel %vm289, %v2290, 0
    %2317 = vmatprep.subr.bf16.mxu0 0
    %2318 = vmatpush1.bf16.msra.mxu0 0
    %2319 = vmatprep.subr.bf16.mxu0 0
    %2320 = vmatpush1.bf16.msra.mxu0 0
    %2321 = vmatprep.subr.bf16.mxu0 0
    %2322 = vmatpush1.bf16.msra.mxu0 0
    %2323 = vmatprep.subr.bf16.mxu0 0
    %2324 = vmatpush1.bf16.msra.mxu0 0
    %2325 = vmatprep.subr.bf16.mxu0 0
    %2326 = vmatpush1.bf16.msra.mxu0 0
    %2327 = vmatprep.subr.bf16.mxu0 0
    %2328 = vmatpush1.bf16.msra.mxu0 0
    %2329 = vmatprep.subr.bf16.mxu0 0
    %2330 = vmatpush1.bf16.msra.mxu0 %v2311
    %2331 = vmatprep.subr.bf16.mxu0 0
    %2332 = vmatpush1.bf16.msra.mxu0 %v2310
    %2333 = vmatprep.subr.bf16.mxu0 0
    %2334 = vmatpush2.bf16.msra.mxu0 0
    %2335 = vmatprep.subr.bf16.mxu0 0
    %2336 = vmatpush2.bf16.msra.mxu0 0
    %2337 = vmatprep.subr.bf16.mxu0 0
    %2338 = vmatpush2.bf16.msra.mxu0 0
    %2339 = vmatprep.subr.bf16.mxu0 0
    %2340 = vmatpush2.bf16.msra.mxu0 0
    %2341 = vmatprep.subr.bf16.mxu0 0
    %2342 = vmatpush2.bf16.msra.mxu0 0
    %2343 = vmatprep.subr.bf16.mxu0 0
    %2344 = vmatpush2.bf16.msra.mxu0 0
    %2345 = vmatprep.subr.bf16.mxu0 0
    %2346 = vmatpush2.bf16.msra.mxu0 0
    %2347 = vmatprep.subr.bf16.mxu0 0
    %2348 = vmatpush2.bf16.msra.mxu0 0
    %2349 = vmatprep.mubr.bf16.mxu0 0
    %2350 = vmatmul.mubr.bf16.gmra.mxu0 %v2315
    %v2351 = vpop.f32.mrf.mxu0
    %v2352 = vadd.f32 %v2300, %v2351
    %v2353 = vpop.f32.mrf.mxu0
    %v2354 = vpop.f32.mrf.mxu0
    %v2355 = vpop.f32.mrf.mxu0
    %2356 = vdwg.mxu0
    %2357 = vst [vmem:[#allocation4] sm:$0x3] %v2352
    // Predicated region
    $region94: #{_lambda_.1} parent=1 // pred_check
      _
    $region95: #{_lambda_.1} parent=1 // pred_check_branch
      %2359 = sbr.rel (0) target = $region97
    $region96: #{_lambda_.1} parent=1 // pred_region
      %s2361 = ssub.s32 32, 32
      %2362 = vsyncadd [#allocation5], %s2361
      %s2364 = sshll.u32 [#allocation4], 4
      %s2365 = int_to_ptr.vmem [resolvable:$true] %s2364
      %2367 = dma.vmem_to_hbm [thread:$0]  %s2365, 32, %s23, [#allocation5]
    $region97: #{_lambda_.1} parent=1 // pred_fallthru
      _
    // Predicated region
    $region98: #{_lambda_.1} parent=1 // pred_check
      _
    $region99: #{_lambda_.1} parent=1 // pred_check_branch
      %2369 = sbr.rel (0) target = $region101
    $region100: #{_lambda_.1} parent=1 // pred_region
      %2370 = dma.done [#allocation5], 32
    $region101: #{_lambda_.1} parent=1 // pred_fallthru
      _
    %2371 = vsyncpa [#allocation5], 1

</llo_original>
